<compile_context>
chip_gen: v5e
topology: v5e:2x2
jax: 0.10.0
libtpu: 0.0.40
codegen_flags: <defaults>
</compile_context>

<pallas_src>
import functools

import jax
import jax.numpy as jnp
from jax.experimental import pallas as pl
from jax.experimental.pallas import tpu as pltpu

LANE = 128


def _round_up(x, m):
    return (x + m - 1) // m * m


# ---------------------------------------------------------------------------
# Kernel 1: conv-as-matmul with fused bias + ReLU.
#   a_ref: (tm, K) bf16 im2col tile, b_ref: (K, Cpad) bf16 weights,
#   bias_ref: (1, Cpad) f32, o_ref: (tm, Cpad) f32 (Cpad is a multiple of 128).
# ---------------------------------------------------------------------------
def _conv_mm_bias_relu_kernel(a_ref, b_ref, bias_ref, o_ref):
    acc = jnp.dot(a_ref[...], b_ref[...], preferred_element_type=jnp.float32)
    o_ref[...] = jnp.maximum(acc + bias_ref[...], 0.0)


def conv3x3_relu_pallas(x_nhwc, w_hwio, bias, *, tm=1024):
    """3x3 'same' conv + ReLU.

    im2col is XLA glue; the matmul+bias+ReLU hot path is Pallas.  Output
    channels are zero-padded to a multiple of 128 (zero weights + zero bias ->
    relu(0) = 0) so stores are unmasked and the padded features flow
    harmlessly into the cosine kernel.  Returns (M_pad, Cpad) float32 where
    rows >= N*H*W are padding.
    """
    N, H, W, Cin = x_nhwc.shape
    Cout = w_hwio.shape[-1]
    K = 9 * Cin
    Cpad = _round_up(Cout, LANE)

    # TODO(synk): at non-toy resolutions move im2col into the kernel
    # (accumulate 9 shifted matmuls from a VMEM-resident x tile) to avoid the
    # 9x-inflated patch tensor round-tripping through HBM.
    xp = jnp.pad(x_nhwc, ((0, 0), (1, 1), (1, 1), (0, 0)))
    parts = [xp[:, kh:kh + H, kw:kw + W, :] for kh in range(3) for kw in range(3)]
    patches = jnp.concatenate(parts, axis=-1)                  # (N, H, W, 9*Cin)

    M = N * H * W
    tm = min(tm, _round_up(M, 16))          # bf16 sublane-pack friendly tile
    M_pad = _round_up(M, tm)

    A = patches.reshape(M, K).astype(jnp.bfloat16)             # bf16 MXU operand
    if M_pad != M:
        A = jnp.pad(A, ((0, M_pad - M), (0, 0)))
    B = jnp.pad(w_hwio.reshape(K, Cout),
                ((0, 0), (0, Cpad - Cout))).astype(jnp.bfloat16)
    bias2 = jnp.pad(bias, (0, Cpad - Cout)).reshape(1, Cpad).astype(jnp.float32)

    out = pl.pallas_call(
        _conv_mm_bias_relu_kernel,
        out_shape=jax.ShapeDtypeStruct((M_pad, Cpad), jnp.float32),
        grid=(M_pad // tm,),
        in_specs=[
            pl.BlockSpec((tm, K), lambda i: (i, 0)),
            pl.BlockSpec((K, Cpad), lambda i: (0, 0)),
            pl.BlockSpec((1, Cpad), lambda i: (0, 0)),
        ],
        out_specs=pl.BlockSpec((tm, Cpad), lambda i: (i, 0)),
        compiler_params=pltpu.CompilerParams(
            dimension_semantics=("parallel",)),
    )(A, B, bias2)
    return out                                                  # (M_pad, Cpad) f32


# ---------------------------------------------------------------------------
# Kernel 2: channel cosine similarity -> parallel per-tile partial sums.
#   f_ref: (2, tm, C) f32 block: f_ref[0] = y_true tile, f_ref[1] = y_pred tile.
#   o_ref: (1, 1, 128) f32, partial sum stored in lane 0 (lane-dense store).
# ---------------------------------------------------------------------------
def _make_cos_partial_kernel(eps):
    def kernel(f_ref, o_ref):
        f0 = f_ref[0]                                           # (tm, C)
        f1 = f_ref[1]
        dot = jnp.sum(f0 * f1, axis=1, keepdims=True)           # (tm, 1)
        s0 = jnp.maximum(jnp.sum(f0 * f0, axis=1, keepdims=True), eps)
        s1 = jnp.maximum(jnp.sum(f1 * f1, axis=1, keepdims=True), eps)
        # Matches the torch module: sqrt(clamp(sum_sq, eps)); rsqrt -> EUP slot.
        cos = dot * jax.lax.rsqrt(s0) * jax.lax.rsqrt(s1)
        partial = jnp.sum(cos)
        lane = jax.lax.broadcasted_iota(jnp.int32, (1, 1, LANE), 2)
        o_ref[...] = jnp.where(lane == 0, partial, 0.0)

    return kernel


def cosine_sim_mean_pallas(feat, m_half, eps, *, tm=1024):
    """feat: (M_pad, C) f32; rows [0, m_half) are y_true features, rows
    [m_half, 2*m_half) are y_pred features (C is already lane-padded; padded
    channels are exactly zero).  Returns mean per-pixel cosine similarity."""
    C = feat.shape[1]
    f = feat[:2 * m_half].reshape(2, m_half, C)

    tm = min(tm, _round_up(m_half, 8))
    mh_pad = _round_up(m_half, tm)
    if mh_pad != m_half:
        # zero rows -> dot = 0, norms clamp to eps -> cos = 0 -> no effect.
        f = jnp.pad(f, ((0, 0), (0, mh_pad - m_half), (0, 0)))
    n_tiles = mh_pad // tm

    partials = pl.pallas_call(
        _make_cos_partial_kernel(eps),
        out_shape=jax.ShapeDtypeStruct((n_tiles, 1, LANE), jnp.float32),
        grid=(n_tiles,),
        in_specs=[pl.BlockSpec((2, tm, C), lambda i: (0, i, 0))],
        out_specs=pl.BlockSpec((1, 1, LANE), lambda i: (i, 0, 0)),
        compiler_params=pltpu.CompilerParams(
            dimension_semantics=("parallel",)),
    )(f)
    return jnp.sum(partials) / m_half


# ---------------------------------------------------------------------------
# Synthetic frozen seg_model + DeepSimRaw forward.
# ---------------------------------------------------------------------------
def init_params(key, cin=4, c1=16, c2=32):
    k1, k2, k3, k4 = jax.random.split(key, 4)
    std1 = (2.0 / (9 * cin)) ** 0.5
    std2 = (2.0 / (9 * c1)) ** 0.5
    return {
        "w1": jax.random.normal(k1, (3, 3, cin, c1), jnp.float32) * std1,
        "b1": jax.random.normal(k2, (c1,), jnp.float32) * 0.1,
        "w2": jax.random.normal(k3, (3, 3, c1, c2), jnp.float32) * std2,
        "b2": jax.random.normal(k4, (c2,), jnp.float32) * 0.1,
    }


def extract_features_concat(x_nhwc, params):
    """x_nhwc: (2N, H, W, Cin) -- y_true and y_pred stacked on the batch axis.
    Returns a list of (M_pad, 128k) float32 channel-padded feature slabs."""
    N2, H, W, _ = x_nhwc.shape
    M = N2 * H * W
    c1 = params["b1"].shape[0]
    f1 = conv3x3_relu_pallas(x_nhwc, params["w1"], params["b1"])
    # stage-2 input: real rows / real channels only (keeps im2col K = 9*c1).
    h1 = f1[:M, :c1].reshape(N2, H, W, c1)
    f2 = conv3x3_relu_pallas(h1, params["w2"], params["b2"])
    return [f1, f2]


def deep_sim_raw(y_true_nchw, y_pred_nchw, params, eps=1e-6):
    # NCHW (PyTorch convention) -> NHWC for the TPU kernels.
    y_true = jnp.transpose(y_true_nchw, (0, 2, 3, 1))
    y_pred = jnp.transpose(y_pred_nchw, (0, 2, 3, 1))
    N, H, W, _ = y_true.shape
    m_half = N * H * W
    x = jnp.concatenate([y_true, y_pred], axis=0)   # one conv chain for both
    feats = extract_features_concat(x, params)
    losses = [cosine_sim_mean_pallas(f, m_half, eps) for f in feats]
    return -jnp.mean(jnp.stack(losses)) + 1.0


# ---------------------------------------------------------------------------
# Pure-JAX reference (independent of the Pallas path) for correctness check.
# Mirrors the kernel's bf16 MXU operands / f32 accumulation.
# ---------------------------------------------------------------------------
def reference_loss(y_true_nchw, y_pred_nchw, params, eps=1e-6):
    dn = ("NHWC", "HWIO", "NHWC")

    def conv(x, w, b):
        y = jax.lax.conv_general_dilated(
            x.astype(jnp.bfloat16), w.astype(jnp.bfloat16), (1, 1), "SAME",
            dimension_numbers=dn, preferred_element_type=jnp.float32)
        return jax.nn.relu(y + b)

    def feats(x_nchw):
        x = jnp.transpose(x_nchw, (0, 2, 3, 1))
        h1 = conv(x, params["w1"], params["b1"])
        h2 = conv(h1, params["w2"], params["b2"])
        return [h1, h2]

    losses = []
    for f0, f1 in zip(feats(y_true_nchw), feats(y_pred_nchw)):
        prod = jnp.sum(f0 * f1, axis=-1)
        n0 = jnp.sqrt(jnp.maximum(jnp.sum(f0 ** 2, axis=-1), eps))
        n1 = jnp.sqrt(jnp.maximum(jnp.sum(f1 ** 2, axis=-1), eps))
        losses.append(jnp.mean(prod / (n0 * n1)))
    return -jnp.mean(jnp.stack(losses)) + 1.0


if __name__ == "__main__":
    key = jax.random.PRNGKey(0)
    k_true, k_pred, k_params = jax.random.split(key, 3)

    # Small NCHW inputs consistent with the module (batch=2, C=4, 16x16).
    y_true = jax.random.normal(k_true, (2, 4, 16, 16), jnp.float32)
    y_pred = jax.random.normal(k_pred, (2, 4, 16, 16), jnp.float32)
    params = init_params(k_params)

    loss_fn = jax.jit(functools.partial(deep_sim_raw, params=params))
    loss = loss_fn(y_true, y_pred)
    jax.block_until_ready(loss)

    ref = reference_loss(y_true, y_pred, params)
    assert jnp.allclose(loss, ref, atol=2e-3, rtol=2e-3), (loss, ref)

    print("KERNEL_OK")
</pallas_src>

<mosaic_0001>
module attributes {stable_mosaic.version = 11 : i64} {
  func.func @_conv_mm_bias_relu_kernel(%arg0: i32, %arg1: memref<1024x36xbf16, #tpu.memory_space<vmem>>, %arg2: memref<36x128xbf16, #tpu.memory_space<vmem>>, %arg3: memref<1x128xf32, #tpu.memory_space<vmem>>, %arg4: memref<1024x128xf32, #tpu.memory_space<vmem>>) attributes {dimension_semantics = [#tpu.dimension_semantics<parallel>], iteration_bounds = array<i64: 1>, scalar_prefetch = 0 : i64, scratch_operands = 0 : i64, tpu.core_type = #tpu.core_type<tc>, window_params = [{transform_indices = @transform_0, window_bounds = array<i64: 1024, 36>}, {pipeline_mode = #tpu.pipeline_mode<synchronous>, transform_indices = @transform_1, window_bounds = array<i64: 36, 128>}, {pipeline_mode = #tpu.pipeline_mode<synchronous>, transform_indices = @transform_2, window_bounds = array<i64: 1, 128>}, {transform_indices = @transform_3, window_bounds = array<i64: 1024, 128>}]} {
    %c0 = arith.constant 0 : index
    %c0_0 = arith.constant 0 : index
    %0 = vector.load %arg1[%c0, %c0_0] : memref<1024x36xbf16, #tpu.memory_space<vmem>>, vector<1024x36xbf16>
    %c0_1 = arith.constant 0 : index
    %c0_2 = arith.constant 0 : index
    %1 = vector.load %arg2[%c0_1, %c0_2] : memref<36x128xbf16, #tpu.memory_space<vmem>>, vector<36x128xbf16>
    %cst = arith.constant dense<0.000000e+00> : vector<1024x128xf32>
    %2 = tpu.matmul %0, %1, %cst {dimension_numbers = #tpu.dot_dimension_numbers<[1], [0], [0], [1], [0, 0, 1, 1], [], []>} : vector<1024x36xbf16>, vector<36x128xbf16>, vector<1024x128xf32> -> vector<1024x128xf32>
    %c0_3 = arith.constant 0 : index
    %c0_4 = arith.constant 0 : index
    %3 = vector.load %arg3[%c0_3, %c0_4] : memref<1x128xf32, #tpu.memory_space<vmem>>, vector<1x128xf32>
    %4 = vector.broadcast %3 : vector<1x128xf32> to vector<1024x128xf32>
    %5 = arith.addf %2, %4 : vector<1024x128xf32>
    %cst_5 = arith.constant 0.000000e+00 : f32
    %6 = vector.broadcast %cst_5 : f32 to vector<1024x128xf32>
    %7 = arith.maximumf %5, %6 : vector<1024x128xf32>
    %c0_6 = arith.constant 0 : index
    %c0_7 = arith.constant 0 : index
    %8 = vector.load %arg4[%c0_6, %c0_7] : memref<1024x128xf32, #tpu.memory_space<vmem>>, vector<1024x128xf32>
    tpu.vector_store %arg4[%c0_6, %c0_7], %7 {strides = array<i32>} : memref<1024x128xf32, #tpu.memory_space<vmem>>, vector<1024x128xf32>,
    return
  }
  func.func @transform_0(%arg0: i32) -> (i32, i32) {
    %c0_i32 = arith.constant 0 : i32
    %c0_i32_0 = arith.constant 0 : i32
    return %arg0, %c0_i32 : i32, i32
  }
  func.func @transform_1(%arg0: i32) -> (i32, i32) {
    %c0_i32 = arith.constant 0 : i32
    %c0_i32_0 = arith.constant 0 : i32
    %c0_i32_1 = arith.constant 0 : i32
    return %c0_i32, %c0_i32_0 : i32, i32
  }
  func.func @transform_2(%arg0: i32) -> (i32, i32) {
    %c0_i32 = arith.constant 0 : i32
    %c0_i32_0 = arith.constant 0 : i32
    %c0_i32_1 = arith.constant 0 : i32
    return %c0_i32, %c0_i32_0 : i32, i32
  }
  func.func @transform_3(%arg0: i32) -> (i32, i32) {
    %c0_i32 = arith.constant 0 : i32
    %c0_i32_0 = arith.constant 0 : i32
    return %arg0, %c0_i32 : i32, i32
  }
}

module attributes {stable_mosaic.version = 11 : i64} {
  func.func @kernel(%arg0: i32, %arg1: memref<2x512x128xf32, #tpu.memory_space<vmem>>, %arg2: memref<1x1x128xf32, #tpu.memory_space<vmem>>) attributes {dimension_semantics = [#tpu.dimension_semantics<parallel>], iteration_bounds = array<i64: 1>, scalar_prefetch = 0 : i64, scratch_operands = 0 : i64, tpu.core_type = #tpu.core_type<tc>, window_params = [{transform_indices = @transform_0, window_bounds = array<i64: 2, 512, 128>}, {transform_indices = @transform_1, window_bounds = array<i64: 1, 1, 128>}]} {
    %c0 = arith.constant 0 : index
    %c0_0 = arith.constant 0 : index
    %c0_1 = arith.constant 0 : index
    %0 = vector.load %arg1[%c0, %c0_0, %c0_1] : memref<2x512x128xf32, #tpu.memory_space<vmem>>, vector<1x512x128xf32>
    %1 = vector.shape_cast %0 : vector<1x512x128xf32> to vector<512x128xf32>
    %c1 = arith.constant 1 : index
    %c0_2 = arith.constant 0 : index
    %c0_3 = arith.constant 0 : index
    %2 = vector.load %arg1[%c1, %c0_2, %c0_3] : memref<2x512x128xf32, #tpu.memory_space<vmem>>, vector<1x512x128xf32>
    %3 = vector.shape_cast %2 : vector<1x512x128xf32> to vector<512x128xf32>
    %4 = arith.mulf %1, %3 : vector<512x128xf32>
    %cst = arith.constant dense<0.000000e+00> : vector<512xf32>
    %5 = vector.multi_reduction <add>, %4, %cst [1] : vector<512x128xf32> to vector<512xf32>
    %6 = vector.shape_cast %5 : vector<512xf32> to vector<512x1xf32>
    %7 = arith.mulf %1, %1 : vector<512x128xf32>
    %cst_4 = arith.constant dense<0.000000e+00> : vector<512xf32>
    %8 = vector.multi_reduction <add>, %7, %cst_4 [1] : vector<512x128xf32> to vector<512xf32>
    %9 = vector.shape_cast %8 : vector<512xf32> to vector<512x1xf32>
    %cst_5 = arith.constant 9.99999997E-7 : f32
    %10 = vector.broadcast %cst_5 : f32 to vector<512x1xf32>
    %11 = arith.maximumf %9, %10 : vector<512x1xf32>
    %12 = arith.mulf %3, %3 : vector<512x128xf32>
    %cst_6 = arith.constant dense<0.000000e+00> : vector<512xf32>
    %13 = vector.multi_reduction <add>, %12, %cst_6 [1] : vector<512x128xf32> to vector<512xf32>
    %14 = vector.shape_cast %13 : vector<512xf32> to vector<512x1xf32>
    %cst_7 = arith.constant 9.99999997E-7 : f32
    %15 = vector.broadcast %cst_7 : f32 to vector<512x1xf32>
    %16 = arith.maximumf %14, %15 : vector<512x1xf32>
    %17 = math.rsqrt %11 : vector<512x1xf32>
    %18 = arith.mulf %6, %17 : vector<512x1xf32>
    %19 = math.rsqrt %16 : vector<512x1xf32>
    %20 = arith.mulf %18, %19 : vector<512x1xf32>
    %21 = vector.shape_cast %20 : vector<512x1xf32> to vector<1x512x1xf32>
    %cst_8 = arith.constant dense<0.000000e+00> : vector<1xf32>
    %22 = vector.multi_reduction <add>, %21, %cst_8 [1, 2] : vector<1x512x1xf32> to vector<1xf32>
    %23 = vector.shape_cast %22 : vector<1xf32> to vector<1x1x1xf32>
    %24 = vector.extract %23[0, 0, 0] : f32 from vector<1x1x1xf32>
    %25 = tpu.iota {dimensions = array<i32: 2>} : vector<1x1x128xi32>
    %c0_i32 = arith.constant 0 : i32
    %26 = vector.broadcast %c0_i32 : i32 to vector<1x1x128xi32>
    %27 = arith.cmpi eq, %25, %26 : vector<1x1x128xi32>
    %cst_9 = arith.constant 0.000000e+00 : f32
    %28 = vector.broadcast %24 : f32 to vector<1x1x128xf32>
    %29 = vector.broadcast %cst_9 : f32 to vector<1x1x128xf32>
    %30 = arith.select %27, %28, %29 : vector<1x1x128xi1>, vector<1x1x128xf32>
    %c0_10 = arith.constant 0 : index
    %c0_11 = arith.constant 0 : index
    %c0_12 = arith.constant 0 : index
    %31 = vector.load %arg2[%c0_10, %c0_11, %c0_12] : memref<1x1x128xf32, #tpu.memory_space<vmem>>, vector<1x1x128xf32>
    tpu.vector_store %arg2[%c0_10, %c0_11, %c0_12], %30 {strides = array<i32>} : memref<1x1x128xf32, #tpu.memory_space<vmem>>, vector<1x1x128xf32>,
    return
  }
  func.func @transform_0(%arg0: i32) -> (i32, i32, i32) {
    %c0_i32 = arith.constant 0 : i32
    %c0_i32_0 = arith.constant 0 : i32
    %c0_i32_1 = arith.constant 0 : i32
    return %c0_i32, %arg0, %c0_i32_0 : i32, i32, i32
  }
  func.func @transform_1(%arg0: i32) -> (i32, i32, i32) {
    %c0_i32 = arith.constant 0 : i32
    %c0_i32_0 = arith.constant 0 : i32
    %c0_i32_1 = arith.constant 0 : i32
    return %arg0, %c0_i32, %c0_i32_0 : i32, i32, i32
  }
}

module attributes {stable_mosaic.version = 11 : i64} {
  func.func @_conv_mm_bias_relu_kernel(%arg0: i32, %arg1: memref<1024x144xbf16, #tpu.memory_space<vmem>>, %arg2: memref<144x128xbf16, #tpu.memory_space<vmem>>, %arg3: memref<1x128xf32, #tpu.memory_space<vmem>>, %arg4: memref<1024x128xf32, #tpu.memory_space<vmem>>) attributes {dimension_semantics = [#tpu.dimension_semantics<parallel>], iteration_bounds = array<i64: 1>, scalar_prefetch = 0 : i64, scratch_operands = 0 : i64, tpu.core_type = #tpu.core_type<tc>, window_params = [{transform_indices = @transform_0, window_bounds = array<i64: 1024, 144>}, {pipeline_mode = #tpu.pipeline_mode<synchronous>, transform_indices = @transform_1, window_bounds = array<i64: 144, 128>}, {pipeline_mode = #tpu.pipeline_mode<synchronous>, transform_indices = @transform_2, window_bounds = array<i64: 1, 128>}, {transform_indices = @transform_3, window_bounds = array<i64: 1024, 128>}]} {
    %c0 = arith.constant 0 : index
    %c0_0 = arith.constant 0 : index
    %0 = vector.load %arg1[%c0, %c0_0] : memref<1024x144xbf16, #tpu.memory_space<vmem>>, vector<1024x144xbf16>
    %c0_1 = arith.constant 0 : index
    %c0_2 = arith.constant 0 : index
    %1 = vector.load %arg2[%c0_1, %c0_2] : memref<144x128xbf16, #tpu.memory_space<vmem>>, vector<144x128xbf16>
    %cst = arith.constant dense<0.000000e+00> : vector<1024x128xf32>
    %2 = tpu.matmul %0, %1, %cst {dimension_numbers = #tpu.dot_dimension_numbers<[1], [0], [0], [1], [0, 0, 1, 1], [], []>} : vector<1024x144xbf16>, vector<144x128xbf16>, vector<1024x128xf32> -> vector<1024x128xf32>
    %c0_3 = arith.constant 0 : index
    %c0_4 = arith.constant 0 : index
    %3 = vector.load %arg3[%c0_3, %c0_4] : memref<1x128xf32, #tpu.memory_space<vmem>>, vector<1x128xf32>
    %4 = vector.broadcast %3 : vector<1x128xf32> to vector<1024x128xf32>
    %5 = arith.addf %2, %4 : vector<1024x128xf32>
    %cst_5 = arith.constant 0.000000e+00 : f32
    %6 = vector.broadcast %cst_5 : f32 to vector<1024x128xf32>
    %7 = arith.maximumf %5, %6 : vector<1024x128xf32>
    %c0_6 = arith.constant 0 : index
    %c0_7 = arith.constant 0 : index
    %8 = vector.load %arg4[%c0_6, %c0_7] : memref<1024x128xf32, #tpu.memory_space<vmem>>, vector<1024x128xf32>
    tpu.vector_store %arg4[%c0_6, %c0_7], %7 {strides = array<i32>} : memref<1024x128xf32, #tpu.memory_space<vmem>>, vector<1024x128xf32>,
    return
  }
  func.func @transform_0(%arg0: i32) -> (i32, i32) {
    %c0_i32 = arith.constant 0 : i32
    %c0_i32_0 = arith.constant 0 : i32
    return %arg0, %c0_i32 : i32, i32
  }
  func.func @transform_1(%arg0: i32) -> (i32, i32) {
    %c0_i32 = arith.constant 0 : i32
    %c0_i32_0 = arith.constant 0 : i32
    %c0_i32_1 = arith.constant 0 : i32
    return %c0_i32, %c0_i32_0 : i32, i32
  }
  func.func @transform_2(%arg0: i32) -> (i32, i32) {
    %c0_i32 = arith.constant 0 : i32
    %c0_i32_0 = arith.constant 0 : i32
    %c0_i32_1 = arith.constant 0 : i32
    return %c0_i32, %c0_i32_0 : i32, i32
  }
  func.func @transform_3(%arg0: i32) -> (i32, i32) {
    %c0_i32 = arith.constant 0 : i32
    %c0_i32_0 = arith.constant 0 : i32
    return %arg0, %c0_i32 : i32, i32
  }
}

</mosaic_0001>

<llo_original>
// kernel: deep_sim_raw.6
$region0: #{deep_sim_raw.6}
  #allocation0 [shape = 'u32[]', space=smem, size = 0x4, offset = 0x4, fixed_abs, tag = 'smem constant byte address 0x4 - core index']
  #allocation1 [shape = 'u32[72,128]{1,0:T(1,128)}', space=vmem, size = 0x9000, scoped, tag = 'internal scratch']
  %s0 = inlined_call_operand.vmem [shape: f32[2,512,128], index: 0, kind: input, shape index: {}]
  %s1 = inlined_call_operand.vmem [shape: f32[1,1,128], index: 1, kind: output, shape index: {}]
  %s2 = sld [smem:[#allocation0]]
  $region14: #{deep_sim_raw.6} parent=0
    _
  %s4 = ssub.s32 1, %s2
  %s5 = scalar_select 0, %s4, %s2
  // Predicated region
  $region2: #{deep_sim_raw.6} parent=0 // pred_check
    _
  $region3: #{deep_sim_raw.6} parent=0 // pred_check_branch
    %7 = sbr.rel (0) target = $region5
  $region4: #{deep_sim_raw.6} parent=0 // pred_region
    _
  $region5: #{deep_sim_raw.6} parent=0 // pred_fallthru
    _
  %v8 = vld [vmem:[%s0] sm:$0xff]
  %v9 = vld [vmem:[%s0 + $0x8] sm:$0xff]
  %v10 = vld [vmem:[%s0 + $0x10] sm:$0xff]
  %v11 = vld [vmem:[%s0 + $0x18] sm:$0xff]
  %v12 = vld [vmem:[%s0 + $0x20] sm:$0xff]
  %v13 = vld [vmem:[%s0 + $0x28] sm:$0xff]
  %v14 = vld [vmem:[%s0 + $0x30] sm:$0xff]
  %v15 = vld [vmem:[%s0 + $0x38] sm:$0xff]
  %v16 = vld [vmem:[%s0 + $0x40] sm:$0xff]
  %v17 = vld [vmem:[%s0 + $0x48] sm:$0xff]
  %v18 = vld [vmem:[%s0 + $0x50] sm:$0xff]
  %v19 = vld [vmem:[%s0 + $0x58] sm:$0xff]
  %v20 = vld [vmem:[%s0 + $0x60] sm:$0xff]
  %v21 = vld [vmem:[%s0 + $0x68] sm:$0xff]
  %v22 = vld [vmem:[%s0 + $0x70] sm:$0xff]
  %v23 = vld [vmem:[%s0 + $0x78] sm:$0xff]
  %v24 = vld [vmem:[%s0 + $0x80] sm:$0xff]
  %v25 = vld [vmem:[%s0 + $0x88] sm:$0xff]
  %v26 = vld [vmem:[%s0 + $0x90] sm:$0xff]
  %v27 = vld [vmem:[%s0 + $0x98] sm:$0xff]
  %v28 = vld [vmem:[%s0 + $0xa0] sm:$0xff]
  %v29 = vld [vmem:[%s0 + $0xa8] sm:$0xff]
  %v30 = vld [vmem:[%s0 + $0xb0] sm:$0xff]
  %v31 = vld [vmem:[%s0 + $0xb8] sm:$0xff]
  %v32 = vld [vmem:[%s0 + $0xc0] sm:$0xff]
  %v33 = vld [vmem:[%s0 + $0xc8] sm:$0xff]
  %v34 = vld [vmem:[%s0 + $0xd0] sm:$0xff]
  %v35 = vld [vmem:[%s0 + $0xd8] sm:$0xff]
  %v36 = vld [vmem:[%s0 + $0xe0] sm:$0xff]
  %v37 = vld [vmem:[%s0 + $0xe8] sm:$0xff]
  %v38 = vld [vmem:[%s0 + $0xf0] sm:$0xff]
  %v39 = vld [vmem:[%s0 + $0xf8] sm:$0xff]
  %v40 = vld [vmem:[%s0 + $0x100] sm:$0xff]
  %v41 = vld [vmem:[%s0 + $0x108] sm:$0xff]
  %v42 = vld [vmem:[%s0 + $0x110] sm:$0xff]
  %v43 = vld [vmem:[%s0 + $0x118] sm:$0xff]
  %v44 = vld [vmem:[%s0 + $0x120] sm:$0xff]
  %v45 = vld [vmem:[%s0 + $0x128] sm:$0xff]
  %v46 = vld [vmem:[%s0 + $0x130] sm:$0xff]
  %v47 = vld [vmem:[%s0 + $0x138] sm:$0xff]
  %v48 = vld [vmem:[%s0 + $0x140] sm:$0xff]
  %v49 = vld [vmem:[%s0 + $0x148] sm:$0xff]
  %v50 = vld [vmem:[%s0 + $0x150] sm:$0xff]
  %v51 = vld [vmem:[%s0 + $0x158] sm:$0xff]
  %v52 = vld [vmem:[%s0 + $0x160] sm:$0xff]
  %v53 = vld [vmem:[%s0 + $0x168] sm:$0xff]
  %v54 = vld [vmem:[%s0 + $0x170] sm:$0xff]
  %v55 = vld [vmem:[%s0 + $0x178] sm:$0xff]
  %v56 = vld [vmem:[%s0 + $0x180] sm:$0xff]
  %v57 = vld [vmem:[%s0 + $0x188] sm:$0xff]
  %v58 = vld [vmem:[%s0 + $0x190] sm:$0xff]
  %v59 = vld [vmem:[%s0 + $0x198] sm:$0xff]
  %v60 = vld [vmem:[%s0 + $0x1a0] sm:$0xff]
  %v61 = vld [vmem:[%s0 + $0x1a8] sm:$0xff]
  %v62 = vld [vmem:[%s0 + $0x1b0] sm:$0xff]
  %v63 = vld [vmem:[%s0 + $0x1b8] sm:$0xff]
  %v64 = vld [vmem:[%s0 + $0x1c0] sm:$0xff]
  %v65 = vld [vmem:[%s0 + $0x1c8] sm:$0xff]
  %v66 = vld [vmem:[%s0 + $0x1d0] sm:$0xff]
  %v67 = vld [vmem:[%s0 + $0x1d8] sm:$0xff]
  %v68 = vld [vmem:[%s0 + $0x1e0] sm:$0xff]
  %v69 = vld [vmem:[%s0 + $0x1e8] sm:$0xff]
  %v70 = vld [vmem:[%s0 + $0x1f0] sm:$0xff]
  %v71 = vld [vmem:[%s0 + $0x1f8] sm:$0xff]
  %s72 = scalar_lea.vmem %s0, 512
  %v73 = vld [vmem:[%s72] sm:$0xff]
  %v74 = vld [vmem:[%s72 + $0x8] sm:$0xff]
  %v75 = vld [vmem:[%s72 + $0x10] sm:$0xff]
  %v76 = vld [vmem:[%s72 + $0x18] sm:$0xff]
  %v77 = vld [vmem:[%s72 + $0x20] sm:$0xff]
  %v78 = vld [vmem:[%s72 + $0x28] sm:$0xff]
  %v79 = vld [vmem:[%s72 + $0x30] sm:$0xff]
  %v80 = vld [vmem:[%s72 + $0x38] sm:$0xff]
  %v81 = vld [vmem:[%s72 + $0x40] sm:$0xff]
  %v82 = vld [vmem:[%s72 + $0x48] sm:$0xff]
  %v83 = vld [vmem:[%s72 + $0x50] sm:$0xff]
  %v84 = vld [vmem:[%s72 + $0x58] sm:$0xff]
  %v85 = vld [vmem:[%s72 + $0x60] sm:$0xff]
  %v86 = vld [vmem:[%s72 + $0x68] sm:$0xff]
  %v87 = vld [vmem:[%s72 + $0x70] sm:$0xff]
  %v88 = vld [vmem:[%s72 + $0x78] sm:$0xff]
  %v89 = vld [vmem:[%s72 + $0x80] sm:$0xff]
  %v90 = vld [vmem:[%s72 + $0x88] sm:$0xff]
  %v91 = vld [vmem:[%s72 + $0x90] sm:$0xff]
  %v92 = vld [vmem:[%s72 + $0x98] sm:$0xff]
  %v93 = vld [vmem:[%s72 + $0xa0] sm:$0xff]
  %v94 = vld [vmem:[%s72 + $0xa8] sm:$0xff]
  %v95 = vld [vmem:[%s72 + $0xb0] sm:$0xff]
  %v96 = vld [vmem:[%s72 + $0xb8] sm:$0xff]
  %v97 = vld [vmem:[%s72 + $0xc0] sm:$0xff]
  %v98 = vld [vmem:[%s72 + $0xc8] sm:$0xff]
  %v99 = vld [vmem:[%s72 + $0xd0] sm:$0xff]
  %v100 = vld [vmem:[%s72 + $0xd8] sm:$0xff]
  %v101 = vld [vmem:[%s72 + $0xe0] sm:$0xff]
  %v102 = vld [vmem:[%s72 + $0xe8] sm:$0xff]
  %v103 = vld [vmem:[%s72 + $0xf0] sm:$0xff]
  %v104 = vld [vmem:[%s72 + $0xf8] sm:$0xff]
  %v105 = vld [vmem:[%s72 + $0x100] sm:$0xff]
  %v106 = vld [vmem:[%s72 + $0x108] sm:$0xff]
  %v107 = vld [vmem:[%s72 + $0x110] sm:$0xff]
  %v108 = vld [vmem:[%s72 + $0x118] sm:$0xff]
  %v109 = vld [vmem:[%s72 + $0x120] sm:$0xff]
  %v110 = vld [vmem:[%s72 + $0x128] sm:$0xff]
  %v111 = vld [vmem:[%s72 + $0x130] sm:$0xff]
  %v112 = vld [vmem:[%s72 + $0x138] sm:$0xff]
  %v113 = vld [vmem:[%s72 + $0x140] sm:$0xff]
  %v114 = vld [vmem:[%s72 + $0x148] sm:$0xff]
  %v115 = vld [vmem:[%s72 + $0x150] sm:$0xff]
  %v116 = vld [vmem:[%s72 + $0x158] sm:$0xff]
  %v117 = vld [vmem:[%s72 + $0x160] sm:$0xff]
  %v118 = vld [vmem:[%s72 + $0x168] sm:$0xff]
  %v119 = vld [vmem:[%s72 + $0x170] sm:$0xff]
  %v120 = vld [vmem:[%s72 + $0x178] sm:$0xff]
  %v121 = vld [vmem:[%s72 + $0x180] sm:$0xff]
  %v122 = vld [vmem:[%s72 + $0x188] sm:$0xff]
  %v123 = vld [vmem:[%s72 + $0x190] sm:$0xff]
  %v124 = vld [vmem:[%s72 + $0x198] sm:$0xff]
  %v125 = vld [vmem:[%s72 + $0x1a0] sm:$0xff]
  %v126 = vld [vmem:[%s72 + $0x1a8] sm:$0xff]
  %v127 = vld [vmem:[%s72 + $0x1b0] sm:$0xff]
  %v128 = vld [vmem:[%s72 + $0x1b8] sm:$0xff]
  %v129 = vld [vmem:[%s72 + $0x1c0] sm:$0xff]
  %v130 = vld [vmem:[%s72 + $0x1c8] sm:$0xff]
  %v131 = vld [vmem:[%s72 + $0x1d0] sm:$0xff]
  %v132 = vld [vmem:[%s72 + $0x1d8] sm:$0xff]
  %v133 = vld [vmem:[%s72 + $0x1e0] sm:$0xff]
  %v134 = vld [vmem:[%s72 + $0x1e8] sm:$0xff]
  %v135 = vld [vmem:[%s72 + $0x1f0] sm:$0xff]
  %v136 = vld [vmem:[%s72 + $0x1f8] sm:$0xff]
  %v137 = vmul.f32 %v8, %v73
  %v138 = vmul.f32 %v9, %v74
  %v139 = vmul.f32 %v10, %v75
  %v140 = vmul.f32 %v11, %v76
  %v141 = vmul.f32 %v12, %v77
  %v142 = vmul.f32 %v13, %v78
  %v143 = vmul.f32 %v14, %v79
  %v144 = vmul.f32 %v15, %v80
  %v145 = vmul.f32 %v16, %v81
  %v146 = vmul.f32 %v17, %v82
  %v147 = vmul.f32 %v18, %v83
  %v148 = vmul.f32 %v19, %v84
  %v149 = vmul.f32 %v20, %v85
  %v150 = vmul.f32 %v21, %v86
  %v151 = vmul.f32 %v22, %v87
  %v152 = vmul.f32 %v23, %v88
  %v153 = vmul.f32 %v24, %v89
  %v154 = vmul.f32 %v25, %v90
  %v155 = vmul.f32 %v26, %v91
  %v156 = vmul.f32 %v27, %v92
  %v157 = vmul.f32 %v28, %v93
  %v158 = vmul.f32 %v29, %v94
  %v159 = vmul.f32 %v30, %v95
  %v160 = vmul.f32 %v31, %v96
  %v161 = vmul.f32 %v32, %v97
  %v162 = vmul.f32 %v33, %v98
  %v163 = vmul.f32 %v34, %v99
  %v164 = vmul.f32 %v35, %v100
  %v165 = vmul.f32 %v36, %v101
  %v166 = vmul.f32 %v37, %v102
  %v167 = vmul.f32 %v38, %v103
  %v168 = vmul.f32 %v39, %v104
  %v169 = vmul.f32 %v40, %v105
  %v170 = vmul.f32 %v41, %v106
  %v171 = vmul.f32 %v42, %v107
  %v172 = vmul.f32 %v43, %v108
  %v173 = vmul.f32 %v44, %v109
  %v174 = vmul.f32 %v45, %v110
  %v175 = vmul.f32 %v46, %v111
  %v176 = vmul.f32 %v47, %v112
  %v177 = vmul.f32 %v48, %v113
  %v178 = vmul.f32 %v49, %v114
  %v179 = vmul.f32 %v50, %v115
  %v180 = vmul.f32 %v51, %v116
  %v181 = vmul.f32 %v52, %v117
  %v182 = vmul.f32 %v53, %v118
  %v183 = vmul.f32 %v54, %v119
  %v184 = vmul.f32 %v55, %v120
  %v185 = vmul.f32 %v56, %v121
  %v186 = vmul.f32 %v57, %v122
  %v187 = vmul.f32 %v58, %v123
  %v188 = vmul.f32 %v59, %v124
  %v189 = vmul.f32 %v60, %v125
  %v190 = vmul.f32 %v61, %v126
  %v191 = vmul.f32 %v62, %v127
  %v192 = vmul.f32 %v63, %v128
  %v193 = vmul.f32 %v64, %v129
  %v194 = vmul.f32 %v65, %v130
  %v195 = vmul.f32 %v66, %v131
  %v196 = vmul.f32 %v67, %v132
  %v197 = vmul.f32 %v68, %v133
  %v198 = vmul.f32 %v69, %v134
  %v199 = vmul.f32 %v70, %v135
  %v200 = vmul.f32 %v71, %v136
  %201 = vadd.xlane.f32.xlu0 %v137
  %v202 = vpop.xlane.xlu0 %201
  %203 = vadd.xlane.f32.xlu0 %v138
  %v204 = vpop.xlane.xlu0 %203
  %205 = vadd.xlane.f32.xlu0 %v139
  %v206 = vpop.xlane.xlu0 %205
  %207 = vadd.xlane.f32.xlu0 %v140
  %v208 = vpop.xlane.xlu0 %207
  %209 = vadd.xlane.f32.xlu0 %v141
  %v210 = vpop.xlane.xlu0 %209
  %211 = vadd.xlane.f32.xlu0 %v142
  %v212 = vpop.xlane.xlu0 %211
  %213 = vadd.xlane.f32.xlu0 %v143
  %v214 = vpop.xlane.xlu0 %213
  %215 = vadd.xlane.f32.xlu0 %v144
  %v216 = vpop.xlane.xlu0 %215
  %217 = vadd.xlane.f32.xlu0 %v145
  %v218 = vpop.xlane.xlu0 %217
  %219 = vadd.xlane.f32.xlu0 %v146
  %v220 = vpop.xlane.xlu0 %219
  %221 = vadd.xlane.f32.xlu0 %v147
  %v222 = vpop.xlane.xlu0 %221
  %223 = vadd.xlane.f32.xlu0 %v148
  %v224 = vpop.xlane.xlu0 %223
  %225 = vadd.xlane.f32.xlu0 %v149
  %v226 = vpop.xlane.xlu0 %225
  %227 = vadd.xlane.f32.xlu0 %v150
  %v228 = vpop.xlane.xlu0 %227
  %229 = vadd.xlane.f32.xlu0 %v151
  %v230 = vpop.xlane.xlu0 %229
  %231 = vadd.xlane.f32.xlu0 %v152
  %v232 = vpop.xlane.xlu0 %231
  %233 = vadd.xlane.f32.xlu0 %v153
  %v234 = vpop.xlane.xlu0 %233
  %235 = vadd.xlane.f32.xlu0 %v154
  %v236 = vpop.xlane.xlu0 %235
  %237 = vadd.xlane.f32.xlu0 %v155
  %v238 = vpop.xlane.xlu0 %237
  %239 = vadd.xlane.f32.xlu0 %v156
  %v240 = vpop.xlane.xlu0 %239
  %241 = vadd.xlane.f32.xlu0 %v157
  %v242 = vpop.xlane.xlu0 %241
  %243 = vadd.xlane.f32.xlu0 %v158
  %v244 = vpop.xlane.xlu0 %243
  %245 = vadd.xlane.f32.xlu0 %v159
  %v246 = vpop.xlane.xlu0 %245
  %247 = vadd.xlane.f32.xlu0 %v160
  %v248 = vpop.xlane.xlu0 %247
  %249 = vadd.xlane.f32.xlu0 %v161
  %v250 = vpop.xlane.xlu0 %249
  %251 = vadd.xlane.f32.xlu0 %v162
  %v252 = vpop.xlane.xlu0 %251
  %253 = vadd.xlane.f32.xlu0 %v163
  %v254 = vpop.xlane.xlu0 %253
  %255 = vadd.xlane.f32.xlu0 %v164
  %v256 = vpop.xlane.xlu0 %255
  %257 = vadd.xlane.f32.xlu0 %v165
  %v258 = vpop.xlane.xlu0 %257
  %259 = vadd.xlane.f32.xlu0 %v166
  %v260 = vpop.xlane.xlu0 %259
  %261 = vadd.xlane.f32.xlu0 %v167
  %v262 = vpop.xlane.xlu0 %261
  %263 = vadd.xlane.f32.xlu0 %v168
  %v264 = vpop.xlane.xlu0 %263
  %265 = vadd.xlane.f32.xlu0 %v169
  %v266 = vpop.xlane.xlu0 %265
  %267 = vadd.xlane.f32.xlu0 %v170
  %v268 = vpop.xlane.xlu0 %267
  %269 = vadd.xlane.f32.xlu0 %v171
  %v270 = vpop.xlane.xlu0 %269
  %271 = vadd.xlane.f32.xlu0 %v172
  %v272 = vpop.xlane.xlu0 %271
  %273 = vadd.xlane.f32.xlu0 %v173
  %v274 = vpop.xlane.xlu0 %273
  %275 = vadd.xlane.f32.xlu0 %v174
  %v276 = vpop.xlane.xlu0 %275
  %277 = vadd.xlane.f32.xlu0 %v175
  %v278 = vpop.xlane.xlu0 %277
  %279 = vadd.xlane.f32.xlu0 %v176
  %v280 = vpop.xlane.xlu0 %279
  %281 = vadd.xlane.f32.xlu0 %v177
  %v282 = vpop.xlane.xlu0 %281
  %283 = vadd.xlane.f32.xlu0 %v178
  %v284 = vpop.xlane.xlu0 %283
  %285 = vadd.xlane.f32.xlu0 %v179
  %v286 = vpop.xlane.xlu0 %285
  %287 = vadd.xlane.f32.xlu0 %v180
  %v288 = vpop.xlane.xlu0 %287
  %289 = vadd.xlane.f32.xlu0 %v181
  %v290 = vpop.xlane.xlu0 %289
  %291 = vadd.xlane.f32.xlu0 %v182
  %v292 = vpop.xlane.xlu0 %291
  %293 = vadd.xlane.f32.xlu0 %v183
  %v294 = vpop.xlane.xlu0 %293
  %295 = vadd.xlane.f32.xlu0 %v184
  %v296 = vpop.xlane.xlu0 %295
  %297 = vadd.xlane.f32.xlu0 %v185
  %v298 = vpop.xlane.xlu0 %297
  %299 = vadd.xlane.f32.xlu0 %v186
  %v300 = vpop.xlane.xlu0 %299
  %301 = vadd.xlane.f32.xlu0 %v187
  %v302 = vpop.xlane.xlu0 %301
  %303 = vadd.xlane.f32.xlu0 %v188
  %v304 = vpop.xlane.xlu0 %303
  %305 = vadd.xlane.f32.xlu0 %v189
  %v306 = vpop.xlane.xlu0 %305
  %307 = vadd.xlane.f32.xlu0 %v190
  %v308 = vpop.xlane.xlu0 %307
  %309 = vadd.xlane.f32.xlu0 %v191
  %v310 = vpop.xlane.xlu0 %309
  %311 = vadd.xlane.f32.xlu0 %v192
  %v312 = vpop.xlane.xlu0 %311
  %313 = vadd.xlane.f32.xlu0 %v193
  %v314 = vpop.xlane.xlu0 %313
  %315 = vadd.xlane.f32.xlu0 %v194
  %v316 = vpop.xlane.xlu0 %315
  %317 = vadd.xlane.f32.xlu0 %v195
  %v318 = vpop.xlane.xlu0 %317
  %319 = vadd.xlane.f32.xlu0 %v196
  %v320 = vpop.xlane.xlu0 %319
  %321 = vadd.xlane.f32.xlu0 %v197
  %v322 = vpop.xlane.xlu0 %321
  %323 = vadd.xlane.f32.xlu0 %v198
  %v324 = vpop.xlane.xlu0 %323
  %325 = vadd.xlane.f32.xlu0 %v199
  %v326 = vpop.xlane.xlu0 %325
  %327 = vadd.xlane.f32.xlu0 %v200
  %v328 = vpop.xlane.xlu0 %327
  %v329 = vmul.f32 %v8, %v8
  %v330 = vmul.f32 %v9, %v9
  %v331 = vmul.f32 %v10, %v10
  %v332 = vmul.f32 %v11, %v11
  %v333 = vmul.f32 %v12, %v12
  %v334 = vmul.f32 %v13, %v13
  %v335 = vmul.f32 %v14, %v14
  %v336 = vmul.f32 %v15, %v15
  %v337 = vmul.f32 %v16, %v16
  %v338 = vmul.f32 %v17, %v17
  %v339 = vmul.f32 %v18, %v18
  %v340 = vmul.f32 %v19, %v19
  %v341 = vmul.f32 %v20, %v20
  %v342 = vmul.f32 %v21, %v21
  %v343 = vmul.f32 %v22, %v22
  %v344 = vmul.f32 %v23, %v23
  %v345 = vmul.f32 %v24, %v24
  %v346 = vmul.f32 %v25, %v25
  %v347 = vmul.f32 %v26, %v26
  %v348 = vmul.f32 %v27, %v27
  %v349 = vmul.f32 %v28, %v28
  %v350 = vmul.f32 %v29, %v29
  %v351 = vmul.f32 %v30, %v30
  %v352 = vmul.f32 %v31, %v31
  %v353 = vmul.f32 %v32, %v32
  %v354 = vmul.f32 %v33, %v33
  %v355 = vmul.f32 %v34, %v34
  %v356 = vmul.f32 %v35, %v35
  %v357 = vmul.f32 %v36, %v36
  %v358 = vmul.f32 %v37, %v37
  %v359 = vmul.f32 %v38, %v38
  %v360 = vmul.f32 %v39, %v39
  %v361 = vmul.f32 %v40, %v40
  %v362 = vmul.f32 %v41, %v41
  %v363 = vmul.f32 %v42, %v42
  %v364 = vmul.f32 %v43, %v43
  %v365 = vmul.f32 %v44, %v44
  %v366 = vmul.f32 %v45, %v45
  %v367 = vmul.f32 %v46, %v46
  %v368 = vmul.f32 %v47, %v47
  %v369 = vmul.f32 %v48, %v48
  %v370 = vmul.f32 %v49, %v49
  %v371 = vmul.f32 %v50, %v50
  %v372 = vmul.f32 %v51, %v51
  %v373 = vmul.f32 %v52, %v52
  %v374 = vmul.f32 %v53, %v53
  %v375 = vmul.f32 %v54, %v54
  %v376 = vmul.f32 %v55, %v55
  %v377 = vmul.f32 %v56, %v56
  %v378 = vmul.f32 %v57, %v57
  %v379 = vmul.f32 %v58, %v58
  %v380 = vmul.f32 %v59, %v59
  %v381 = vmul.f32 %v60, %v60
  %v382 = vmul.f32 %v61, %v61
  %v383 = vmul.f32 %v62, %v62
  %v384 = vmul.f32 %v63, %v63
  %v385 = vmul.f32 %v64, %v64
  %v386 = vmul.f32 %v65, %v65
  %v387 = vmul.f32 %v66, %v66
  %v388 = vmul.f32 %v67, %v67
  %v389 = vmul.f32 %v68, %v68
  %v390 = vmul.f32 %v69, %v69
  %v391 = vmul.f32 %v70, %v70
  %v392 = vmul.f32 %v71, %v71
  %393 = vadd.xlane.f32.xlu0 %v329
  %v394 = vpop.xlane.xlu0 %393
  %395 = vadd.xlane.f32.xlu0 %v330
  %v396 = vpop.xlane.xlu0 %395
  %397 = vadd.xlane.f32.xlu0 %v331
  %v398 = vpop.xlane.xlu0 %397
  %399 = vadd.xlane.f32.xlu0 %v332
  %v400 = vpop.xlane.xlu0 %399
  %401 = vadd.xlane.f32.xlu0 %v333
  %v402 = vpop.xlane.xlu0 %401
  %403 = vadd.xlane.f32.xlu0 %v334
  %v404 = vpop.xlane.xlu0 %403
  %405 = vadd.xlane.f32.xlu0 %v335
  %v406 = vpop.xlane.xlu0 %405
  %407 = vadd.xlane.f32.xlu0 %v336
  %v408 = vpop.xlane.xlu0 %407
  %409 = vadd.xlane.f32.xlu0 %v337
  %v410 = vpop.xlane.xlu0 %409
  %411 = vadd.xlane.f32.xlu0 %v338
  %v412 = vpop.xlane.xlu0 %411
  %413 = vadd.xlane.f32.xlu0 %v339
  %v414 = vpop.xlane.xlu0 %413
  %415 = vadd.xlane.f32.xlu0 %v340
  %v416 = vpop.xlane.xlu0 %415
  %417 = vadd.xlane.f32.xlu0 %v341
  %v418 = vpop.xlane.xlu0 %417
  %419 = vadd.xlane.f32.xlu0 %v342
  %v420 = vpop.xlane.xlu0 %419
  %421 = vadd.xlane.f32.xlu0 %v343
  %v422 = vpop.xlane.xlu0 %421
  %423 = vadd.xlane.f32.xlu0 %v344
  %v424 = vpop.xlane.xlu0 %423
  %425 = vadd.xlane.f32.xlu0 %v345
  %v426 = vpop.xlane.xlu0 %425
  %427 = vadd.xlane.f32.xlu0 %v346
  %v428 = vpop.xlane.xlu0 %427
  %429 = vadd.xlane.f32.xlu0 %v347
  %v430 = vpop.xlane.xlu0 %429
  %431 = vadd.xlane.f32.xlu0 %v348
  %v432 = vpop.xlane.xlu0 %431
  %433 = vadd.xlane.f32.xlu0 %v349
  %v434 = vpop.xlane.xlu0 %433
  %435 = vadd.xlane.f32.xlu0 %v350
  %v436 = vpop.xlane.xlu0 %435
  %437 = vadd.xlane.f32.xlu0 %v351
  %v438 = vpop.xlane.xlu0 %437
  %439 = vadd.xlane.f32.xlu0 %v352
  %v440 = vpop.xlane.xlu0 %439
  %441 = vadd.xlane.f32.xlu0 %v353
  %v442 = vpop.xlane.xlu0 %441
  %443 = vadd.xlane.f32.xlu0 %v354
  %v444 = vpop.xlane.xlu0 %443
  %445 = vadd.xlane.f32.xlu0 %v355
  %v446 = vpop.xlane.xlu0 %445
  %447 = vadd.xlane.f32.xlu0 %v356
  %v448 = vpop.xlane.xlu0 %447
  %449 = vadd.xlane.f32.xlu0 %v357
  %v450 = vpop.xlane.xlu0 %449
  %451 = vadd.xlane.f32.xlu0 %v358
  %v452 = vpop.xlane.xlu0 %451
  %453 = vadd.xlane.f32.xlu0 %v359
  %v454 = vpop.xlane.xlu0 %453
  %455 = vadd.xlane.f32.xlu0 %v360
  %v456 = vpop.xlane.xlu0 %455
  %457 = vadd.xlane.f32.xlu0 %v361
  %v458 = vpop.xlane.xlu0 %457
  %459 = vadd.xlane.f32.xlu0 %v362
  %v460 = vpop.xlane.xlu0 %459
  %461 = vadd.xlane.f32.xlu0 %v363
  %v462 = vpop.xlane.xlu0 %461
  %463 = vadd.xlane.f32.xlu0 %v364
  %v464 = vpop.xlane.xlu0 %463
  %465 = vadd.xlane.f32.xlu0 %v365
  %v466 = vpop.xlane.xlu0 %465
  %467 = vadd.xlane.f32.xlu0 %v366
  %v468 = vpop.xlane.xlu0 %467
  %469 = vadd.xlane.f32.xlu0 %v367
  %v470 = vpop.xlane.xlu0 %469
  %471 = vadd.xlane.f32.xlu0 %v368
  %v472 = vpop.xlane.xlu0 %471
  %473 = vadd.xlane.f32.xlu0 %v369
  %v474 = vpop.xlane.xlu0 %473
  %475 = vadd.xlane.f32.xlu0 %v370
  %v476 = vpop.xlane.xlu0 %475
  %477 = vadd.xlane.f32.xlu0 %v371
  %v478 = vpop.xlane.xlu0 %477
  %479 = vadd.xlane.f32.xlu0 %v372
  %v480 = vpop.xlane.xlu0 %479
  %481 = vadd.xlane.f32.xlu0 %v373
  %v482 = vpop.xlane.xlu0 %481
  %483 = vadd.xlane.f32.xlu0 %v374
  %v484 = vpop.xlane.xlu0 %483
  %485 = vadd.xlane.f32.xlu0 %v375
  %v486 = vpop.xlane.xlu0 %485
  %487 = vadd.xlane.f32.xlu0 %v376
  %v488 = vpop.xlane.xlu0 %487
  %489 = vadd.xlane.f32.xlu0 %v377
  %v490 = vpop.xlane.xlu0 %489
  %491 = vadd.xlane.f32.xlu0 %v378
  %v492 = vpop.xlane.xlu0 %491
  %493 = vadd.xlane.f32.xlu0 %v379
  %v494 = vpop.xlane.xlu0 %493
  %495 = vadd.xlane.f32.xlu0 %v380
  %v496 = vpop.xlane.xlu0 %495
  %497 = vadd.xlane.f32.xlu0 %v381
  %v498 = vpop.xlane.xlu0 %497
  %499 = vadd.xlane.f32.xlu0 %v382
  %v500 = vpop.xlane.xlu0 %499
  %501 = vadd.xlane.f32.xlu0 %v383
  %v502 = vpop.xlane.xlu0 %501
  %503 = vadd.xlane.f32.xlu0 %v384
  %v504 = vpop.xlane.xlu0 %503
  %505 = vadd.xlane.f32.xlu0 %v385
  %v506 = vpop.xlane.xlu0 %505
  %507 = vadd.xlane.f32.xlu0 %v386
  %v508 = vpop.xlane.xlu0 %507
  %509 = vadd.xlane.f32.xlu0 %v387
  %v510 = vpop.xlane.xlu0 %509
  %511 = vadd.xlane.f32.xlu0 %v388
  %v512 = vpop.xlane.xlu0 %511
  %513 = vadd.xlane.f32.xlu0 %v389
  %v514 = vpop.xlane.xlu0 %513
  %515 = vadd.xlane.f32.xlu0 %v390
  %v516 = vpop.xlane.xlu0 %515
  %517 = vadd.xlane.f32.xlu0 %v391
  %v518 = vpop.xlane.xlu0 %517
  %519 = vadd.xlane.f32.xlu0 %v392
  %v520 = vpop.xlane.xlu0 %519
  %v521 = vmax.f32 %v394, 1e-06
  %v522 = vmax.f32 %v396, 1e-06
  %v523 = vmax.f32 %v398, 1e-06
  %v524 = vmax.f32 %v400, 1e-06
  %v525 = vmax.f32 %v402, 1e-06
  %v526 = vmax.f32 %v404, 1e-06
  %v527 = vmax.f32 %v406, 1e-06
  %v528 = vmax.f32 %v408, 1e-06
  %v529 = vmax.f32 %v410, 1e-06
  %v530 = vmax.f32 %v412, 1e-06
  %v531 = vmax.f32 %v414, 1e-06
  %v532 = vmax.f32 %v416, 1e-06
  %v533 = vmax.f32 %v418, 1e-06
  %v534 = vmax.f32 %v420, 1e-06
  %v535 = vmax.f32 %v422, 1e-06
  %v536 = vmax.f32 %v424, 1e-06
  %v537 = vmax.f32 %v426, 1e-06
  %v538 = vmax.f32 %v428, 1e-06
  %v539 = vmax.f32 %v430, 1e-06
  %v540 = vmax.f32 %v432, 1e-06
  %v541 = vmax.f32 %v434, 1e-06
  %v542 = vmax.f32 %v436, 1e-06
  %v543 = vmax.f32 %v438, 1e-06
  %v544 = vmax.f32 %v440, 1e-06
  %v545 = vmax.f32 %v442, 1e-06
  %v546 = vmax.f32 %v444, 1e-06
  %v547 = vmax.f32 %v446, 1e-06
  %v548 = vmax.f32 %v448, 1e-06
  %v549 = vmax.f32 %v450, 1e-06
  %v550 = vmax.f32 %v452, 1e-06
  %v551 = vmax.f32 %v454, 1e-06
  %v552 = vmax.f32 %v456, 1e-06
  %v553 = vmax.f32 %v458, 1e-06
  %v554 = vmax.f32 %v460, 1e-06
  %v555 = vmax.f32 %v462, 1e-06
  %v556 = vmax.f32 %v464, 1e-06
  %v557 = vmax.f32 %v466, 1e-06
  %v558 = vmax.f32 %v468, 1e-06
  %v559 = vmax.f32 %v470, 1e-06
  %v560 = vmax.f32 %v472, 1e-06
  %v561 = vmax.f32 %v474, 1e-06
  %v562 = vmax.f32 %v476, 1e-06
  %v563 = vmax.f32 %v478, 1e-06
  %v564 = vmax.f32 %v480, 1e-06
  %v565 = vmax.f32 %v482, 1e-06
  %v566 = vmax.f32 %v484, 1e-06
  %v567 = vmax.f32 %v486, 1e-06
  %v568 = vmax.f32 %v488, 1e-06
  %v569 = vmax.f32 %v490, 1e-06
  %v570 = vmax.f32 %v492, 1e-06
  %v571 = vmax.f32 %v494, 1e-06
  %v572 = vmax.f32 %v496, 1e-06
  %v573 = vmax.f32 %v498, 1e-06
  %v574 = vmax.f32 %v500, 1e-06
  %v575 = vmax.f32 %v502, 1e-06
  %v576 = vmax.f32 %v504, 1e-06
  %v577 = vmax.f32 %v506, 1e-06
  %v578 = vmax.f32 %v508, 1e-06
  %v579 = vmax.f32 %v510, 1e-06
  %v580 = vmax.f32 %v512, 1e-06
  %v581 = vmax.f32 %v514, 1e-06
  %v582 = vmax.f32 %v516, 1e-06
  %v583 = vmax.f32 %v518, 1e-06
  %v584 = vmax.f32 %v520, 1e-06
  %v585 = vmul.f32 %v73, %v73
  %v586 = vmul.f32 %v74, %v74
  %v587 = vmul.f32 %v75, %v75
  %v588 = vmul.f32 %v76, %v76
  %v589 = vmul.f32 %v77, %v77
  %v590 = vmul.f32 %v78, %v78
  %v591 = vmul.f32 %v79, %v79
  %v592 = vmul.f32 %v80, %v80
  %v593 = vmul.f32 %v81, %v81
  %v594 = vmul.f32 %v82, %v82
  %v595 = vmul.f32 %v83, %v83
  %v596 = vmul.f32 %v84, %v84
  %v597 = vmul.f32 %v85, %v85
  %v598 = vmul.f32 %v86, %v86
  %v599 = vmul.f32 %v87, %v87
  %v600 = vmul.f32 %v88, %v88
  %v601 = vmul.f32 %v89, %v89
  %v602 = vmul.f32 %v90, %v90
  %v603 = vmul.f32 %v91, %v91
  %v604 = vmul.f32 %v92, %v92
  %v605 = vmul.f32 %v93, %v93
  %v606 = vmul.f32 %v94, %v94
  %v607 = vmul.f32 %v95, %v95
  %v608 = vmul.f32 %v96, %v96
  %v609 = vmul.f32 %v97, %v97
  %v610 = vmul.f32 %v98, %v98
  %v611 = vmul.f32 %v99, %v99
  %v612 = vmul.f32 %v100, %v100
  %v613 = vmul.f32 %v101, %v101
  %v614 = vmul.f32 %v102, %v102
  %v615 = vmul.f32 %v103, %v103
  %v616 = vmul.f32 %v104, %v104
  %v617 = vmul.f32 %v105, %v105
  %v618 = vmul.f32 %v106, %v106
  %v619 = vmul.f32 %v107, %v107
  %v620 = vmul.f32 %v108, %v108
  %v621 = vmul.f32 %v109, %v109
  %v622 = vmul.f32 %v110, %v110
  %v623 = vmul.f32 %v111, %v111
  %v624 = vmul.f32 %v112, %v112
  %v625 = vmul.f32 %v113, %v113
  %v626 = vmul.f32 %v114, %v114
  %v627 = vmul.f32 %v115, %v115
  %v628 = vmul.f32 %v116, %v116
  %v629 = vmul.f32 %v117, %v117
  %v630 = vmul.f32 %v118, %v118
  %v631 = vmul.f32 %v119, %v119
  %v632 = vmul.f32 %v120, %v120
  %v633 = vmul.f32 %v121, %v121
  %v634 = vmul.f32 %v122, %v122
  %v635 = vmul.f32 %v123, %v123
  %v636 = vmul.f32 %v124, %v124
  %v637 = vmul.f32 %v125, %v125
  %v638 = vmul.f32 %v126, %v126
  %v639 = vmul.f32 %v127, %v127
  %v640 = vmul.f32 %v128, %v128
  %v641 = vmul.f32 %v129, %v129
  %v642 = vmul.f32 %v130, %v130
  %v643 = vmul.f32 %v131, %v131
  %v644 = vmul.f32 %v132, %v132
  %v645 = vmul.f32 %v133, %v133
  %v646 = vmul.f32 %v134, %v134
  %v647 = vmul.f32 %v135, %v135
  %v648 = vmul.f32 %v136, %v136
  %649 = vadd.xlane.f32.xlu0 %v585
  %v650 = vpop.xlane.xlu0 %649
  %651 = vadd.xlane.f32.xlu0 %v586
  %v652 = vpop.xlane.xlu0 %651
  %653 = vadd.xlane.f32.xlu0 %v587
  %v654 = vpop.xlane.xlu0 %653
  %655 = vadd.xlane.f32.xlu0 %v588
  %v656 = vpop.xlane.xlu0 %655
  %657 = vadd.xlane.f32.xlu0 %v589
  %v658 = vpop.xlane.xlu0 %657
  %659 = vadd.xlane.f32.xlu0 %v590
  %v660 = vpop.xlane.xlu0 %659
  %661 = vadd.xlane.f32.xlu0 %v591
  %v662 = vpop.xlane.xlu0 %661
  %663 = vadd.xlane.f32.xlu0 %v592
  %v664 = vpop.xlane.xlu0 %663
  %665 = vadd.xlane.f32.xlu0 %v593
  %v666 = vpop.xlane.xlu0 %665
  %667 = vadd.xlane.f32.xlu0 %v594
  %v668 = vpop.xlane.xlu0 %667
  %669 = vadd.xlane.f32.xlu0 %v595
  %v670 = vpop.xlane.xlu0 %669
  %671 = vadd.xlane.f32.xlu0 %v596
  %v672 = vpop.xlane.xlu0 %671
  %673 = vadd.xlane.f32.xlu0 %v597
  %v674 = vpop.xlane.xlu0 %673
  %675 = vadd.xlane.f32.xlu0 %v598
  %v676 = vpop.xlane.xlu0 %675
  %677 = vadd.xlane.f32.xlu0 %v599
  %v678 = vpop.xlane.xlu0 %677
  %679 = vadd.xlane.f32.xlu0 %v600
  %v680 = vpop.xlane.xlu0 %679
  %681 = vadd.xlane.f32.xlu0 %v601
  %v682 = vpop.xlane.xlu0 %681
  %683 = vadd.xlane.f32.xlu0 %v602
  %v684 = vpop.xlane.xlu0 %683
  %685 = vadd.xlane.f32.xlu0 %v603
  %v686 = vpop.xlane.xlu0 %685
  %687 = vadd.xlane.f32.xlu0 %v604
  %v688 = vpop.xlane.xlu0 %687
  %689 = vadd.xlane.f32.xlu0 %v605
  %v690 = vpop.xlane.xlu0 %689
  %691 = vadd.xlane.f32.xlu0 %v606
  %v692 = vpop.xlane.xlu0 %691
  %693 = vadd.xlane.f32.xlu0 %v607
  %v694 = vpop.xlane.xlu0 %693
  %695 = vadd.xlane.f32.xlu0 %v608
  %v696 = vpop.xlane.xlu0 %695
  %697 = vadd.xlane.f32.xlu0 %v609
  %v698 = vpop.xlane.xlu0 %697
  %699 = vadd.xlane.f32.xlu0 %v610
  %v700 = vpop.xlane.xlu0 %699
  %701 = vadd.xlane.f32.xlu0 %v611
  %v702 = vpop.xlane.xlu0 %701
  %703 = vadd.xlane.f32.xlu0 %v612
  %v704 = vpop.xlane.xlu0 %703
  %705 = vadd.xlane.f32.xlu0 %v613
  %v706 = vpop.xlane.xlu0 %705
  %707 = vadd.xlane.f32.xlu0 %v614
  %v708 = vpop.xlane.xlu0 %707
  %709 = vadd.xlane.f32.xlu0 %v615
  %v710 = vpop.xlane.xlu0 %709
  %711 = vadd.xlane.f32.xlu0 %v616
  %v712 = vpop.xlane.xlu0 %711
  %713 = vadd.xlane.f32.xlu0 %v617
  %v714 = vpop.xlane.xlu0 %713
  %715 = vadd.xlane.f32.xlu0 %v618
  %v716 = vpop.xlane.xlu0 %715
  %717 = vadd.xlane.f32.xlu0 %v619
  %v718 = vpop.xlane.xlu0 %717
  %719 = vadd.xlane.f32.xlu0 %v620
  %v720 = vpop.xlane.xlu0 %719
  %721 = vadd.xlane.f32.xlu0 %v621
  %v722 = vpop.xlane.xlu0 %721
  %723 = vadd.xlane.f32.xlu0 %v622
  %v724 = vpop.xlane.xlu0 %723
  %725 = vadd.xlane.f32.xlu0 %v623
  %v726 = vpop.xlane.xlu0 %725
  %727 = vadd.xlane.f32.xlu0 %v624
  %v728 = vpop.xlane.xlu0 %727
  %729 = vadd.xlane.f32.xlu0 %v625
  %v730 = vpop.xlane.xlu0 %729
  %731 = vadd.xlane.f32.xlu0 %v626
  %v732 = vpop.xlane.xlu0 %731
  %733 = vadd.xlane.f32.xlu0 %v627
  %v734 = vpop.xlane.xlu0 %733
  %735 = vadd.xlane.f32.xlu0 %v628
  %v736 = vpop.xlane.xlu0 %735
  %737 = vadd.xlane.f32.xlu0 %v629
  %v738 = vpop.xlane.xlu0 %737
  %739 = vadd.xlane.f32.xlu0 %v630
  %v740 = vpop.xlane.xlu0 %739
  %741 = vadd.xlane.f32.xlu0 %v631
  %v742 = vpop.xlane.xlu0 %741
  %743 = vadd.xlane.f32.xlu0 %v632
  %v744 = vpop.xlane.xlu0 %743
  %745 = vadd.xlane.f32.xlu0 %v633
  %v746 = vpop.xlane.xlu0 %745
  %747 = vadd.xlane.f32.xlu0 %v634
  %v748 = vpop.xlane.xlu0 %747
  %749 = vadd.xlane.f32.xlu0 %v635
  %v750 = vpop.xlane.xlu0 %749
  %751 = vadd.xlane.f32.xlu0 %v636
  %v752 = vpop.xlane.xlu0 %751
  %753 = vadd.xlane.f32.xlu0 %v637
  %v754 = vpop.xlane.xlu0 %753
  %755 = vadd.xlane.f32.xlu0 %v638
  %v756 = vpop.xlane.xlu0 %755
  %757 = vadd.xlane.f32.xlu0 %v639
  %v758 = vpop.xlane.xlu0 %757
  %759 = vadd.xlane.f32.xlu0 %v640
  %v760 = vpop.xlane.xlu0 %759
  %761 = vadd.xlane.f32.xlu0 %v641
  %v762 = vpop.xlane.xlu0 %761
  %763 = vadd.xlane.f32.xlu0 %v642
  %v764 = vpop.xlane.xlu0 %763
  %765 = vadd.xlane.f32.xlu0 %v643
  %v766 = vpop.xlane.xlu0 %765
  %767 = vadd.xlane.f32.xlu0 %v644
  %v768 = vpop.xlane.xlu0 %767
  %769 = vadd.xlane.f32.xlu0 %v645
  %v770 = vpop.xlane.xlu0 %769
  %771 = vadd.xlane.f32.xlu0 %v646
  %v772 = vpop.xlane.xlu0 %771
  %773 = vadd.xlane.f32.xlu0 %v647
  %v774 = vpop.xlane.xlu0 %773
  %775 = vadd.xlane.f32.xlu0 %v648
  %v776 = vpop.xlane.xlu0 %775
  %v777 = vmax.f32 %v650, 1e-06
  %v778 = vmax.f32 %v652, 1e-06
  %v779 = vmax.f32 %v654, 1e-06
  %v780 = vmax.f32 %v656, 1e-06
  %v781 = vmax.f32 %v658, 1e-06
  %v782 = vmax.f32 %v660, 1e-06
  %v783 = vmax.f32 %v662, 1e-06
  %v784 = vmax.f32 %v664, 1e-06
  %v785 = vmax.f32 %v666, 1e-06
  %v786 = vmax.f32 %v668, 1e-06
  %v787 = vmax.f32 %v670, 1e-06
  %v788 = vmax.f32 %v672, 1e-06
  %v789 = vmax.f32 %v674, 1e-06
  %v790 = vmax.f32 %v676, 1e-06
  %v791 = vmax.f32 %v678, 1e-06
  %v792 = vmax.f32 %v680, 1e-06
  %v793 = vmax.f32 %v682, 1e-06
  %v794 = vmax.f32 %v684, 1e-06
  %v795 = vmax.f32 %v686, 1e-06
  %v796 = vmax.f32 %v688, 1e-06
  %v797 = vmax.f32 %v690, 1e-06
  %v798 = vmax.f32 %v692, 1e-06
  %v799 = vmax.f32 %v694, 1e-06
  %v800 = vmax.f32 %v696, 1e-06
  %v801 = vmax.f32 %v698, 1e-06
  %v802 = vmax.f32 %v700, 1e-06
  %v803 = vmax.f32 %v702, 1e-06
  %v804 = vmax.f32 %v704, 1e-06
  %v805 = vmax.f32 %v706, 1e-06
  %v806 = vmax.f32 %v708, 1e-06
  %v807 = vmax.f32 %v710, 1e-06
  %v808 = vmax.f32 %v712, 1e-06
  %v809 = vmax.f32 %v714, 1e-06
  %v810 = vmax.f32 %v716, 1e-06
  %v811 = vmax.f32 %v718, 1e-06
  %v812 = vmax.f32 %v720, 1e-06
  %v813 = vmax.f32 %v722, 1e-06
  %v814 = vmax.f32 %v724, 1e-06
  %v815 = vmax.f32 %v726, 1e-06
  %v816 = vmax.f32 %v728, 1e-06
  %v817 = vmax.f32 %v730, 1e-06
  %v818 = vmax.f32 %v732, 1e-06
  %v819 = vmax.f32 %v734, 1e-06
  %v820 = vmax.f32 %v736, 1e-06
  %v821 = vmax.f32 %v738, 1e-06
  %v822 = vmax.f32 %v740, 1e-06
  %v823 = vmax.f32 %v742, 1e-06
  %v824 = vmax.f32 %v744, 1e-06
  %v825 = vmax.f32 %v746, 1e-06
  %v826 = vmax.f32 %v748, 1e-06
  %v827 = vmax.f32 %v750, 1e-06
  %v828 = vmax.f32 %v752, 1e-06
  %v829 = vmax.f32 %v754, 1e-06
  %v830 = vmax.f32 %v756, 1e-06
  %v831 = vmax.f32 %v758, 1e-06
  %v832 = vmax.f32 %v760, 1e-06
  %v833 = vmax.f32 %v762, 1e-06
  %v834 = vmax.f32 %v764, 1e-06
  %v835 = vmax.f32 %v766, 1e-06
  %v836 = vmax.f32 %v768, 1e-06
  %v837 = vmax.f32 %v770, 1e-06
  %v838 = vmax.f32 %v772, 1e-06
  %v839 = vmax.f32 %v774, 1e-06
  %v840 = vmax.f32 %v776, 1e-06
  %v841 = vrsqrt.pop %v521
  %v842 = vmul.f32 %v841, %v521
  %v843 = vmul.f32 %v842, %v841
  %v844 = vmul.f32 0.5, %v843
  %v845 = vsub.f32 1.5, %v844
  %v846 = vmul.f32 %v841, %v845
  %vm847 = vweird.f32 %v521
  %vm848 = vweird.f32 %v841
  %vm849 = vmor %vm847, %vm848
  %v850 = vsel %vm849, %v841, %v846
  %v851 = vrsqrt.pop %v522
  %v852 = vmul.f32 %v851, %v522
  %v853 = vmul.f32 %v852, %v851
  %v854 = vmul.f32 0.5, %v853
  %v855 = vsub.f32 1.5, %v854
  %v856 = vmul.f32 %v851, %v855
  %vm857 = vweird.f32 %v522
  %vm858 = vweird.f32 %v851
  %vm859 = vmor %vm857, %vm858
  %v860 = vsel %vm859, %v851, %v856
  %v861 = vrsqrt.pop %v523
  %v862 = vmul.f32 %v861, %v523
  %v863 = vmul.f32 %v862, %v861
  %v864 = vmul.f32 0.5, %v863
  %v865 = vsub.f32 1.5, %v864
  %v866 = vmul.f32 %v861, %v865
  %vm867 = vweird.f32 %v523
  %vm868 = vweird.f32 %v861
  %vm869 = vmor %vm867, %vm868
  %v870 = vsel %vm869, %v861, %v866
  %v871 = vrsqrt.pop %v524
  %v872 = vmul.f32 %v871, %v524
  %v873 = vmul.f32 %v872, %v871
  %v874 = vmul.f32 0.5, %v873
  %v875 = vsub.f32 1.5, %v874
  %v876 = vmul.f32 %v871, %v875
  %vm877 = vweird.f32 %v524
  %vm878 = vweird.f32 %v871
  %vm879 = vmor %vm877, %vm878
  %v880 = vsel %vm879, %v871, %v876
  %v881 = vrsqrt.pop %v525
  %v882 = vmul.f32 %v881, %v525
  %v883 = vmul.f32 %v882, %v881
  %v884 = vmul.f32 0.5, %v883
  %v885 = vsub.f32 1.5, %v884
  %v886 = vmul.f32 %v881, %v885
  %vm887 = vweird.f32 %v525
  %vm888 = vweird.f32 %v881
  %vm889 = vmor %vm887, %vm888
  %v890 = vsel %vm889, %v881, %v886
  %v891 = vrsqrt.pop %v526
  %v892 = vmul.f32 %v891, %v526
  %v893 = vmul.f32 %v892, %v891
  %v894 = vmul.f32 0.5, %v893
  %v895 = vsub.f32 1.5, %v894
  %v896 = vmul.f32 %v891, %v895
  %vm897 = vweird.f32 %v526
  %vm898 = vweird.f32 %v891
  %vm899 = vmor %vm897, %vm898
  %v900 = vsel %vm899, %v891, %v896
  %v901 = vrsqrt.pop %v527
  %v902 = vmul.f32 %v901, %v527
  %v903 = vmul.f32 %v902, %v901
  %v904 = vmul.f32 0.5, %v903
  %v905 = vsub.f32 1.5, %v904
  %v906 = vmul.f32 %v901, %v905
  %vm907 = vweird.f32 %v527
  %vm908 = vweird.f32 %v901
  %vm909 = vmor %vm907, %vm908
  %v910 = vsel %vm909, %v901, %v906
  %v911 = vrsqrt.pop %v528
  %v912 = vmul.f32 %v911, %v528
  %v913 = vmul.f32 %v912, %v911
  %v914 = vmul.f32 0.5, %v913
  %v915 = vsub.f32 1.5, %v914
  %v916 = vmul.f32 %v911, %v915
  %vm917 = vweird.f32 %v528
  %vm918 = vweird.f32 %v911
  %vm919 = vmor %vm917, %vm918
  %v920 = vsel %vm919, %v911, %v916
  %v921 = vrsqrt.pop %v529
  %v922 = vmul.f32 %v921, %v529
  %v923 = vmul.f32 %v922, %v921
  %v924 = vmul.f32 0.5, %v923
  %v925 = vsub.f32 1.5, %v924
  %v926 = vmul.f32 %v921, %v925
  %vm927 = vweird.f32 %v529
  %vm928 = vweird.f32 %v921
  %vm929 = vmor %vm927, %vm928
  %v930 = vsel %vm929, %v921, %v926
  %v931 = vrsqrt.pop %v530
  %v932 = vmul.f32 %v931, %v530
  %v933 = vmul.f32 %v932, %v931
  %v934 = vmul.f32 0.5, %v933
  %v935 = vsub.f32 1.5, %v934
  %v936 = vmul.f32 %v931, %v935
  %vm937 = vweird.f32 %v530
  %vm938 = vweird.f32 %v931
  %vm939 = vmor %vm937, %vm938
  %v940 = vsel %vm939, %v931, %v936
  %v941 = vrsqrt.pop %v531
  %v942 = vmul.f32 %v941, %v531
  %v943 = vmul.f32 %v942, %v941
  %v944 = vmul.f32 0.5, %v943
  %v945 = vsub.f32 1.5, %v944
  %v946 = vmul.f32 %v941, %v945
  %vm947 = vweird.f32 %v531
  %vm948 = vweird.f32 %v941
  %vm949 = vmor %vm947, %vm948
  %v950 = vsel %vm949, %v941, %v946
  %v951 = vrsqrt.pop %v532
  %v952 = vmul.f32 %v951, %v532
  %v953 = vmul.f32 %v952, %v951
  %v954 = vmul.f32 0.5, %v953
  %v955 = vsub.f32 1.5, %v954
  %v956 = vmul.f32 %v951, %v955
  %vm957 = vweird.f32 %v532
  %vm958 = vweird.f32 %v951
  %vm959 = vmor %vm957, %vm958
  %v960 = vsel %vm959, %v951, %v956
  %v961 = vrsqrt.pop %v533
  %v962 = vmul.f32 %v961, %v533
  %v963 = vmul.f32 %v962, %v961
  %v964 = vmul.f32 0.5, %v963
  %v965 = vsub.f32 1.5, %v964
  %v966 = vmul.f32 %v961, %v965
  %vm967 = vweird.f32 %v533
  %vm968 = vweird.f32 %v961
  %vm969 = vmor %vm967, %vm968
  %v970 = vsel %vm969, %v961, %v966
  %v971 = vrsqrt.pop %v534
  %v972 = vmul.f32 %v971, %v534
  %v973 = vmul.f32 %v972, %v971
  %v974 = vmul.f32 0.5, %v973
  %v975 = vsub.f32 1.5, %v974
  %v976 = vmul.f32 %v971, %v975
  %vm977 = vweird.f32 %v534
  %vm978 = vweird.f32 %v971
  %vm979 = vmor %vm977, %vm978
  %v980 = vsel %vm979, %v971, %v976
  %v981 = vrsqrt.pop %v535
  %v982 = vmul.f32 %v981, %v535
  %v983 = vmul.f32 %v982, %v981
  %v984 = vmul.f32 0.5, %v983
  %v985 = vsub.f32 1.5, %v984
  %v986 = vmul.f32 %v981, %v985
  %vm987 = vweird.f32 %v535
  %vm988 = vweird.f32 %v981
  %vm989 = vmor %vm987, %vm988
  %v990 = vsel %vm989, %v981, %v986
  %v991 = vrsqrt.pop %v536
  %v992 = vmul.f32 %v991, %v536
  %v993 = vmul.f32 %v992, %v991
  %v994 = vmul.f32 0.5, %v993
  %v995 = vsub.f32 1.5, %v994
  %v996 = vmul.f32 %v991, %v995
  %vm997 = vweird.f32 %v536
  %vm998 = vweird.f32 %v991
  %vm999 = vmor %vm997, %vm998
  %v1000 = vsel %vm999, %v991, %v996
  %v1001 = vrsqrt.pop %v537
  %v1002 = vmul.f32 %v1001, %v537
  %v1003 = vmul.f32 %v1002, %v1001
  %v1004 = vmul.f32 0.5, %v1003
  %v1005 = vsub.f32 1.5, %v1004
  %v1006 = vmul.f32 %v1001, %v1005
  %vm1007 = vweird.f32 %v537
  %vm1008 = vweird.f32 %v1001
  %vm1009 = vmor %vm1007, %vm1008
  %v1010 = vsel %vm1009, %v1001, %v1006
  %v1011 = vrsqrt.pop %v538
  %v1012 = vmul.f32 %v1011, %v538
  %v1013 = vmul.f32 %v1012, %v1011
  %v1014 = vmul.f32 0.5, %v1013
  %v1015 = vsub.f32 1.5, %v1014
  %v1016 = vmul.f32 %v1011, %v1015
  %vm1017 = vweird.f32 %v538
  %vm1018 = vweird.f32 %v1011
  %vm1019 = vmor %vm1017, %vm1018
  %v1020 = vsel %vm1019, %v1011, %v1016
  %v1021 = vrsqrt.pop %v539
  %v1022 = vmul.f32 %v1021, %v539
  %v1023 = vmul.f32 %v1022, %v1021
  %v1024 = vmul.f32 0.5, %v1023
  %v1025 = vsub.f32 1.5, %v1024
  %v1026 = vmul.f32 %v1021, %v1025
  %vm1027 = vweird.f32 %v539
  %vm1028 = vweird.f32 %v1021
  %vm1029 = vmor %vm1027, %vm1028
  %v1030 = vsel %vm1029, %v1021, %v1026
  %v1031 = vrsqrt.pop %v540
  %v1032 = vmul.f32 %v1031, %v540
  %v1033 = vmul.f32 %v1032, %v1031
  %v1034 = vmul.f32 0.5, %v1033
  %v1035 = vsub.f32 1.5, %v1034
  %v1036 = vmul.f32 %v1031, %v1035
  %vm1037 = vweird.f32 %v540
  %vm1038 = vweird.f32 %v1031
  %vm1039 = vmor %vm1037, %vm1038
  %v1040 = vsel %vm1039, %v1031, %v1036
  %v1041 = vrsqrt.pop %v541
  %v1042 = vmul.f32 %v1041, %v541
  %v1043 = vmul.f32 %v1042, %v1041
  %v1044 = vmul.f32 0.5, %v1043
  %v1045 = vsub.f32 1.5, %v1044
  %v1046 = vmul.f32 %v1041, %v1045
  %vm1047 = vweird.f32 %v541
  %vm1048 = vweird.f32 %v1041
  %vm1049 = vmor %vm1047, %vm1048
  %v1050 = vsel %vm1049, %v1041, %v1046
  %v1051 = vrsqrt.pop %v542
  %v1052 = vmul.f32 %v1051, %v542
  %v1053 = vmul.f32 %v1052, %v1051
  %v1054 = vmul.f32 0.5, %v1053
  %v1055 = vsub.f32 1.5, %v1054
  %v1056 = vmul.f32 %v1051, %v1055
  %vm1057 = vweird.f32 %v542
  %vm1058 = vweird.f32 %v1051
  %vm1059 = vmor %vm1057, %vm1058
  %v1060 = vsel %vm1059, %v1051, %v1056
  %v1061 = vrsqrt.pop %v543
  %v1062 = vmul.f32 %v1061, %v543
  %v1063 = vmul.f32 %v1062, %v1061
  %v1064 = vmul.f32 0.5, %v1063
  %v1065 = vsub.f32 1.5, %v1064
  %v1066 = vmul.f32 %v1061, %v1065
  %vm1067 = vweird.f32 %v543
  %vm1068 = vweird.f32 %v1061
  %vm1069 = vmor %vm1067, %vm1068
  %v1070 = vsel %vm1069, %v1061, %v1066
  %v1071 = vrsqrt.pop %v544
  %v1072 = vmul.f32 %v1071, %v544
  %v1073 = vmul.f32 %v1072, %v1071
  %v1074 = vmul.f32 0.5, %v1073
  %v1075 = vsub.f32 1.5, %v1074
  %v1076 = vmul.f32 %v1071, %v1075
  %vm1077 = vweird.f32 %v544
  %vm1078 = vweird.f32 %v1071
  %vm1079 = vmor %vm1077, %vm1078
  %v1080 = vsel %vm1079, %v1071, %v1076
  %v1081 = vrsqrt.pop %v545
  %v1082 = vmul.f32 %v1081, %v545
  %v1083 = vmul.f32 %v1082, %v1081
  %v1084 = vmul.f32 0.5, %v1083
  %v1085 = vsub.f32 1.5, %v1084
  %v1086 = vmul.f32 %v1081, %v1085
  %vm1087 = vweird.f32 %v545
  %vm1088 = vweird.f32 %v1081
  %vm1089 = vmor %vm1087, %vm1088
  %v1090 = vsel %vm1089, %v1081, %v1086
  %v1091 = vrsqrt.pop %v546
  %v1092 = vmul.f32 %v1091, %v546
  %v1093 = vmul.f32 %v1092, %v1091
  %v1094 = vmul.f32 0.5, %v1093
  %v1095 = vsub.f32 1.5, %v1094
  %v1096 = vmul.f32 %v1091, %v1095
  %vm1097 = vweird.f32 %v546
  %vm1098 = vweird.f32 %v1091
  %vm1099 = vmor %vm1097, %vm1098
  %v1100 = vsel %vm1099, %v1091, %v1096
  %v1101 = vrsqrt.pop %v547
  %v1102 = vmul.f32 %v1101, %v547
  %v1103 = vmul.f32 %v1102, %v1101
  %v1104 = vmul.f32 0.5, %v1103
  %v1105 = vsub.f32 1.5, %v1104
  %v1106 = vmul.f32 %v1101, %v1105
  %vm1107 = vweird.f32 %v547
  %vm1108 = vweird.f32 %v1101
  %vm1109 = vmor %vm1107, %vm1108
  %v1110 = vsel %vm1109, %v1101, %v1106
  %v1111 = vrsqrt.pop %v548
  %v1112 = vmul.f32 %v1111, %v548
  %v1113 = vmul.f32 %v1112, %v1111
  %v1114 = vmul.f32 0.5, %v1113
  %v1115 = vsub.f32 1.5, %v1114
  %v1116 = vmul.f32 %v1111, %v1115
  %vm1117 = vweird.f32 %v548
  %vm1118 = vweird.f32 %v1111
  %vm1119 = vmor %vm1117, %vm1118
  %v1120 = vsel %vm1119, %v1111, %v1116
  %v1121 = vrsqrt.pop %v549
  %v1122 = vmul.f32 %v1121, %v549
  %v1123 = vmul.f32 %v1122, %v1121
  %v1124 = vmul.f32 0.5, %v1123
  %v1125 = vsub.f32 1.5, %v1124
  %v1126 = vmul.f32 %v1121, %v1125
  %vm1127 = vweird.f32 %v549
  %vm1128 = vweird.f32 %v1121
  %vm1129 = vmor %vm1127, %vm1128
  %v1130 = vsel %vm1129, %v1121, %v1126
  %v1131 = vrsqrt.pop %v550
  %v1132 = vmul.f32 %v1131, %v550
  %v1133 = vmul.f32 %v1132, %v1131
  %v1134 = vmul.f32 0.5, %v1133
  %v1135 = vsub.f32 1.5, %v1134
  %v1136 = vmul.f32 %v1131, %v1135
  %vm1137 = vweird.f32 %v550
  %vm1138 = vweird.f32 %v1131
  %vm1139 = vmor %vm1137, %vm1138
  %v1140 = vsel %vm1139, %v1131, %v1136
  %v1141 = vrsqrt.pop %v551
  %v1142 = vmul.f32 %v1141, %v551
  %v1143 = vmul.f32 %v1142, %v1141
  %v1144 = vmul.f32 0.5, %v1143
  %v1145 = vsub.f32 1.5, %v1144
  %v1146 = vmul.f32 %v1141, %v1145
  %vm1147 = vweird.f32 %v551
  %vm1148 = vweird.f32 %v1141
  %vm1149 = vmor %vm1147, %vm1148
  %v1150 = vsel %vm1149, %v1141, %v1146
  %v1151 = vrsqrt.pop %v552
  %v1152 = vmul.f32 %v1151, %v552
  %v1153 = vmul.f32 %v1152, %v1151
  %v1154 = vmul.f32 0.5, %v1153
  %v1155 = vsub.f32 1.5, %v1154
  %v1156 = vmul.f32 %v1151, %v1155
  %vm1157 = vweird.f32 %v552
  %vm1158 = vweird.f32 %v1151
  %vm1159 = vmor %vm1157, %vm1158
  %v1160 = vsel %vm1159, %v1151, %v1156
  %v1161 = vrsqrt.pop %v553
  %v1162 = vmul.f32 %v1161, %v553
  %v1163 = vmul.f32 %v1162, %v1161
  %v1164 = vmul.f32 0.5, %v1163
  %v1165 = vsub.f32 1.5, %v1164
  %v1166 = vmul.f32 %v1161, %v1165
  %vm1167 = vweird.f32 %v553
  %vm1168 = vweird.f32 %v1161
  %vm1169 = vmor %vm1167, %vm1168
  %v1170 = vsel %vm1169, %v1161, %v1166
  %v1171 = vrsqrt.pop %v554
  %v1172 = vmul.f32 %v1171, %v554
  %v1173 = vmul.f32 %v1172, %v1171
  %v1174 = vmul.f32 0.5, %v1173
  %v1175 = vsub.f32 1.5, %v1174
  %v1176 = vmul.f32 %v1171, %v1175
  %vm1177 = vweird.f32 %v554
  %vm1178 = vweird.f32 %v1171
  %vm1179 = vmor %vm1177, %vm1178
  %v1180 = vsel %vm1179, %v1171, %v1176
  %v1181 = vrsqrt.pop %v555
  %v1182 = vmul.f32 %v1181, %v555
  %v1183 = vmul.f32 %v1182, %v1181
  %v1184 = vmul.f32 0.5, %v1183
  %v1185 = vsub.f32 1.5, %v1184
  %v1186 = vmul.f32 %v1181, %v1185
  %vm1187 = vweird.f32 %v555
  %vm1188 = vweird.f32 %v1181
  %vm1189 = vmor %vm1187, %vm1188
  %v1190 = vsel %vm1189, %v1181, %v1186
  %v1191 = vrsqrt.pop %v556
  %v1192 = vmul.f32 %v1191, %v556
  %v1193 = vmul.f32 %v1192, %v1191
  %v1194 = vmul.f32 0.5, %v1193
  %v1195 = vsub.f32 1.5, %v1194
  %v1196 = vmul.f32 %v1191, %v1195
  %vm1197 = vweird.f32 %v556
  %vm1198 = vweird.f32 %v1191
  %vm1199 = vmor %vm1197, %vm1198
  %v1200 = vsel %vm1199, %v1191, %v1196
  %v1201 = vrsqrt.pop %v557
  %v1202 = vmul.f32 %v1201, %v557
  %v1203 = vmul.f32 %v1202, %v1201
  %v1204 = vmul.f32 0.5, %v1203
  %v1205 = vsub.f32 1.5, %v1204
  %v1206 = vmul.f32 %v1201, %v1205
  %vm1207 = vweird.f32 %v557
  %vm1208 = vweird.f32 %v1201
  %vm1209 = vmor %vm1207, %vm1208
  %v1210 = vsel %vm1209, %v1201, %v1206
  %v1211 = vrsqrt.pop %v558
  %v1212 = vmul.f32 %v1211, %v558
  %v1213 = vmul.f32 %v1212, %v1211
  %v1214 = vmul.f32 0.5, %v1213
  %v1215 = vsub.f32 1.5, %v1214
  %v1216 = vmul.f32 %v1211, %v1215
  %vm1217 = vweird.f32 %v558
  %vm1218 = vweird.f32 %v1211
  %vm1219 = vmor %vm1217, %vm1218
  %v1220 = vsel %vm1219, %v1211, %v1216
  %v1221 = vrsqrt.pop %v559
  %v1222 = vmul.f32 %v1221, %v559
  %v1223 = vmul.f32 %v1222, %v1221
  %v1224 = vmul.f32 0.5, %v1223
  %v1225 = vsub.f32 1.5, %v1224
  %v1226 = vmul.f32 %v1221, %v1225
  %vm1227 = vweird.f32 %v559
  %vm1228 = vweird.f32 %v1221
  %vm1229 = vmor %vm1227, %vm1228
  %v1230 = vsel %vm1229, %v1221, %v1226
  %v1231 = vrsqrt.pop %v560
  %v1232 = vmul.f32 %v1231, %v560
  %v1233 = vmul.f32 %v1232, %v1231
  %v1234 = vmul.f32 0.5, %v1233
  %v1235 = vsub.f32 1.5, %v1234
  %v1236 = vmul.f32 %v1231, %v1235
  %vm1237 = vweird.f32 %v560
  %vm1238 = vweird.f32 %v1231
  %vm1239 = vmor %vm1237, %vm1238
  %v1240 = vsel %vm1239, %v1231, %v1236
  %v1241 = vrsqrt.pop %v561
  %v1242 = vmul.f32 %v1241, %v561
  %v1243 = vmul.f32 %v1242, %v1241
  %v1244 = vmul.f32 0.5, %v1243
  %v1245 = vsub.f32 1.5, %v1244
  %v1246 = vmul.f32 %v1241, %v1245
  %vm1247 = vweird.f32 %v561
  %vm1248 = vweird.f32 %v1241
  %vm1249 = vmor %vm1247, %vm1248
  %v1250 = vsel %vm1249, %v1241, %v1246
  %v1251 = vrsqrt.pop %v562
  %v1252 = vmul.f32 %v1251, %v562
  %v1253 = vmul.f32 %v1252, %v1251
  %v1254 = vmul.f32 0.5, %v1253
  %v1255 = vsub.f32 1.5, %v1254
  %v1256 = vmul.f32 %v1251, %v1255
  %vm1257 = vweird.f32 %v562
  %vm1258 = vweird.f32 %v1251
  %vm1259 = vmor %vm1257, %vm1258
  %v1260 = vsel %vm1259, %v1251, %v1256
  %v1261 = vrsqrt.pop %v563
  %v1262 = vmul.f32 %v1261, %v563
  %v1263 = vmul.f32 %v1262, %v1261
  %v1264 = vmul.f32 0.5, %v1263
  %v1265 = vsub.f32 1.5, %v1264
  %v1266 = vmul.f32 %v1261, %v1265
  %vm1267 = vweird.f32 %v563
  %vm1268 = vweird.f32 %v1261
  %vm1269 = vmor %vm1267, %vm1268
  %v1270 = vsel %vm1269, %v1261, %v1266
  %v1271 = vrsqrt.pop %v564
  %v1272 = vmul.f32 %v1271, %v564
  %v1273 = vmul.f32 %v1272, %v1271
  %v1274 = vmul.f32 0.5, %v1273
  %v1275 = vsub.f32 1.5, %v1274
  %v1276 = vmul.f32 %v1271, %v1275
  %vm1277 = vweird.f32 %v564
  %vm1278 = vweird.f32 %v1271
  %vm1279 = vmor %vm1277, %vm1278
  %v1280 = vsel %vm1279, %v1271, %v1276
  %v1281 = vrsqrt.pop %v565
  %v1282 = vmul.f32 %v1281, %v565
  %v1283 = vmul.f32 %v1282, %v1281
  %v1284 = vmul.f32 0.5, %v1283
  %v1285 = vsub.f32 1.5, %v1284
  %v1286 = vmul.f32 %v1281, %v1285
  %vm1287 = vweird.f32 %v565
  %vm1288 = vweird.f32 %v1281
  %vm1289 = vmor %vm1287, %vm1288
  %v1290 = vsel %vm1289, %v1281, %v1286
  %v1291 = vrsqrt.pop %v566
  %v1292 = vmul.f32 %v1291, %v566
  %v1293 = vmul.f32 %v1292, %v1291
  %v1294 = vmul.f32 0.5, %v1293
  %v1295 = vsub.f32 1.5, %v1294
  %v1296 = vmul.f32 %v1291, %v1295
  %vm1297 = vweird.f32 %v566
  %vm1298 = vweird.f32 %v1291
  %vm1299 = vmor %vm1297, %vm1298
  %v1300 = vsel %vm1299, %v1291, %v1296
  %v1301 = vrsqrt.pop %v567
  %v1302 = vmul.f32 %v1301, %v567
  %v1303 = vmul.f32 %v1302, %v1301
  %v1304 = vmul.f32 0.5, %v1303
  %v1305 = vsub.f32 1.5, %v1304
  %v1306 = vmul.f32 %v1301, %v1305
  %vm1307 = vweird.f32 %v567
  %vm1308 = vweird.f32 %v1301
  %vm1309 = vmor %vm1307, %vm1308
  %v1310 = vsel %vm1309, %v1301, %v1306
  %v1311 = vrsqrt.pop %v568
  %v1312 = vmul.f32 %v1311, %v568
  %v1313 = vmul.f32 %v1312, %v1311
  %v1314 = vmul.f32 0.5, %v1313
  %v1315 = vsub.f32 1.5, %v1314
  %v1316 = vmul.f32 %v1311, %v1315
  %vm1317 = vweird.f32 %v568
  %vm1318 = vweird.f32 %v1311
  %vm1319 = vmor %vm1317, %vm1318
  %v1320 = vsel %vm1319, %v1311, %v1316
  %v1321 = vrsqrt.pop %v569
  %v1322 = vmul.f32 %v1321, %v569
  %v1323 = vmul.f32 %v1322, %v1321
  %v1324 = vmul.f32 0.5, %v1323
  %v1325 = vsub.f32 1.5, %v1324
  %v1326 = vmul.f32 %v1321, %v1325
  %vm1327 = vweird.f32 %v569
  %vm1328 = vweird.f32 %v1321
  %vm1329 = vmor %vm1327, %vm1328
  %v1330 = vsel %vm1329, %v1321, %v1326
  %v1331 = vrsqrt.pop %v570
  %v1332 = vmul.f32 %v1331, %v570
  %v1333 = vmul.f32 %v1332, %v1331
  %v1334 = vmul.f32 0.5, %v1333
  %v1335 = vsub.f32 1.5, %v1334
  %v1336 = vmul.f32 %v1331, %v1335
  %vm1337 = vweird.f32 %v570
  %vm1338 = vweird.f32 %v1331
  %vm1339 = vmor %vm1337, %vm1338
  %v1340 = vsel %vm1339, %v1331, %v1336
  %v1341 = vrsqrt.pop %v571
  %v1342 = vmul.f32 %v1341, %v571
  %v1343 = vmul.f32 %v1342, %v1341
  %v1344 = vmul.f32 0.5, %v1343
  %v1345 = vsub.f32 1.5, %v1344
  %v1346 = vmul.f32 %v1341, %v1345
  %vm1347 = vweird.f32 %v571
  %vm1348 = vweird.f32 %v1341
  %vm1349 = vmor %vm1347, %vm1348
  %v1350 = vsel %vm1349, %v1341, %v1346
  %v1351 = vrsqrt.pop %v572
  %v1352 = vmul.f32 %v1351, %v572
  %v1353 = vmul.f32 %v1352, %v1351
  %v1354 = vmul.f32 0.5, %v1353
  %v1355 = vsub.f32 1.5, %v1354
  %v1356 = vmul.f32 %v1351, %v1355
  %vm1357 = vweird.f32 %v572
  %vm1358 = vweird.f32 %v1351
  %vm1359 = vmor %vm1357, %vm1358
  %v1360 = vsel %vm1359, %v1351, %v1356
  %v1361 = vrsqrt.pop %v573
  %v1362 = vmul.f32 %v1361, %v573
  %v1363 = vmul.f32 %v1362, %v1361
  %v1364 = vmul.f32 0.5, %v1363
  %v1365 = vsub.f32 1.5, %v1364
  %v1366 = vmul.f32 %v1361, %v1365
  %vm1367 = vweird.f32 %v573
  %vm1368 = vweird.f32 %v1361
  %vm1369 = vmor %vm1367, %vm1368
  %v1370 = vsel %vm1369, %v1361, %v1366
  %v1371 = vrsqrt.pop %v574
  %v1372 = vmul.f32 %v1371, %v574
  %v1373 = vmul.f32 %v1372, %v1371
  %v1374 = vmul.f32 0.5, %v1373
  %v1375 = vsub.f32 1.5, %v1374
  %v1376 = vmul.f32 %v1371, %v1375
  %vm1377 = vweird.f32 %v574
  %vm1378 = vweird.f32 %v1371
  %vm1379 = vmor %vm1377, %vm1378
  %v1380 = vsel %vm1379, %v1371, %v1376
  %v1381 = vrsqrt.pop %v575
  %v1382 = vmul.f32 %v1381, %v575
  %v1383 = vmul.f32 %v1382, %v1381
  %v1384 = vmul.f32 0.5, %v1383
  %v1385 = vsub.f32 1.5, %v1384
  %v1386 = vmul.f32 %v1381, %v1385
  %vm1387 = vweird.f32 %v575
  %vm1388 = vweird.f32 %v1381
  %vm1389 = vmor %vm1387, %vm1388
  %v1390 = vsel %vm1389, %v1381, %v1386
  %v1391 = vrsqrt.pop %v576
  %v1392 = vmul.f32 %v1391, %v576
  %v1393 = vmul.f32 %v1392, %v1391
  %v1394 = vmul.f32 0.5, %v1393
  %v1395 = vsub.f32 1.5, %v1394
  %v1396 = vmul.f32 %v1391, %v1395
  %vm1397 = vweird.f32 %v576
  %vm1398 = vweird.f32 %v1391
  %vm1399 = vmor %vm1397, %vm1398
  %v1400 = vsel %vm1399, %v1391, %v1396
  %v1401 = vrsqrt.pop %v577
  %v1402 = vmul.f32 %v1401, %v577
  %v1403 = vmul.f32 %v1402, %v1401
  %v1404 = vmul.f32 0.5, %v1403
  %v1405 = vsub.f32 1.5, %v1404
  %v1406 = vmul.f32 %v1401, %v1405
  %vm1407 = vweird.f32 %v577
  %vm1408 = vweird.f32 %v1401
  %vm1409 = vmor %vm1407, %vm1408
  %v1410 = vsel %vm1409, %v1401, %v1406
  %v1411 = vrsqrt.pop %v578
  %v1412 = vmul.f32 %v1411, %v578
  %v1413 = vmul.f32 %v1412, %v1411
  %v1414 = vmul.f32 0.5, %v1413
  %v1415 = vsub.f32 1.5, %v1414
  %v1416 = vmul.f32 %v1411, %v1415
  %vm1417 = vweird.f32 %v578
  %vm1418 = vweird.f32 %v1411
  %vm1419 = vmor %vm1417, %vm1418
  %v1420 = vsel %vm1419, %v1411, %v1416
  %v1421 = vrsqrt.pop %v579
  %v1422 = vmul.f32 %v1421, %v579
  %v1423 = vmul.f32 %v1422, %v1421
  %v1424 = vmul.f32 0.5, %v1423
  %v1425 = vsub.f32 1.5, %v1424
  %v1426 = vmul.f32 %v1421, %v1425
  %vm1427 = vweird.f32 %v579
  %vm1428 = vweird.f32 %v1421
  %vm1429 = vmor %vm1427, %vm1428
  %v1430 = vsel %vm1429, %v1421, %v1426
  %v1431 = vrsqrt.pop %v580
  %v1432 = vmul.f32 %v1431, %v580
  %v1433 = vmul.f32 %v1432, %v1431
  %v1434 = vmul.f32 0.5, %v1433
  %v1435 = vsub.f32 1.5, %v1434
  %v1436 = vmul.f32 %v1431, %v1435
  %vm1437 = vweird.f32 %v580
  %vm1438 = vweird.f32 %v1431
  %vm1439 = vmor %vm1437, %vm1438
  %v1440 = vsel %vm1439, %v1431, %v1436
  %v1441 = vrsqrt.pop %v581
  %v1442 = vmul.f32 %v1441, %v581
  %v1443 = vmul.f32 %v1442, %v1441
  %v1444 = vmul.f32 0.5, %v1443
  %v1445 = vsub.f32 1.5, %v1444
  %v1446 = vmul.f32 %v1441, %v1445
  %vm1447 = vweird.f32 %v581
  %vm1448 = vweird.f32 %v1441
  %vm1449 = vmor %vm1447, %vm1448
  %v1450 = vsel %vm1449, %v1441, %v1446
  %v1451 = vrsqrt.pop %v582
  %v1452 = vmul.f32 %v1451, %v582
  %v1453 = vmul.f32 %v1452, %v1451
  %v1454 = vmul.f32 0.5, %v1453
  %v1455 = vsub.f32 1.5, %v1454
  %v1456 = vmul.f32 %v1451, %v1455
  %vm1457 = vweird.f32 %v582
  %vm1458 = vweird.f32 %v1451
  %vm1459 = vmor %vm1457, %vm1458
  %v1460 = vsel %vm1459, %v1451, %v1456
  %v1461 = vrsqrt.pop %v583
  %v1462 = vmul.f32 %v1461, %v583
  %v1463 = vmul.f32 %v1462, %v1461
  %v1464 = vmul.f32 0.5, %v1463
  %v1465 = vsub.f32 1.5, %v1464
  %v1466 = vmul.f32 %v1461, %v1465
  %vm1467 = vweird.f32 %v583
  %vm1468 = vweird.f32 %v1461
  %vm1469 = vmor %vm1467, %vm1468
  %v1470 = vsel %vm1469, %v1461, %v1466
  %v1471 = vrsqrt.pop %v584
  %v1472 = vmul.f32 %v1471, %v584
  %v1473 = vmul.f32 %v1472, %v1471
  %v1474 = vmul.f32 0.5, %v1473
  %v1475 = vsub.f32 1.5, %v1474
  %v1476 = vmul.f32 %v1471, %v1475
  %vm1477 = vweird.f32 %v584
  %vm1478 = vweird.f32 %v1471
  %vm1479 = vmor %vm1477, %vm1478
  %v1480 = vsel %vm1479, %v1471, %v1476
  %v1481 = vmul.f32 %v202, %v850
  %v1482 = vmul.f32 %v204, %v860
  %v1483 = vmul.f32 %v206, %v870
  %v1484 = vmul.f32 %v208, %v880
  %v1485 = vmul.f32 %v210, %v890
  %v1486 = vmul.f32 %v212, %v900
  %v1487 = vmul.f32 %v214, %v910
  %v1488 = vmul.f32 %v216, %v920
  %v1489 = vmul.f32 %v218, %v930
  %v1490 = vmul.f32 %v220, %v940
  %v1491 = vmul.f32 %v222, %v950
  %v1492 = vmul.f32 %v224, %v960
  %v1493 = vmul.f32 %v226, %v970
  %v1494 = vmul.f32 %v228, %v980
  %v1495 = vmul.f32 %v230, %v990
  %v1496 = vmul.f32 %v232, %v1000
  %v1497 = vmul.f32 %v234, %v1010
  %v1498 = vmul.f32 %v236, %v1020
  %v1499 = vmul.f32 %v238, %v1030
  %v1500 = vmul.f32 %v240, %v1040
  %v1501 = vmul.f32 %v242, %v1050
  %v1502 = vmul.f32 %v244, %v1060
  %v1503 = vmul.f32 %v246, %v1070
  %v1504 = vmul.f32 %v248, %v1080
  %v1505 = vmul.f32 %v250, %v1090
  %v1506 = vmul.f32 %v252, %v1100
  %v1507 = vmul.f32 %v254, %v1110
  %v1508 = vmul.f32 %v256, %v1120
  %v1509 = vmul.f32 %v258, %v1130
  %v1510 = vmul.f32 %v260, %v1140
  %v1511 = vmul.f32 %v262, %v1150
  %v1512 = vmul.f32 %v264, %v1160
  %v1513 = vmul.f32 %v266, %v1170
  %v1514 = vmul.f32 %v268, %v1180
  %v1515 = vmul.f32 %v270, %v1190
  %v1516 = vmul.f32 %v272, %v1200
  %v1517 = vmul.f32 %v274, %v1210
  %v1518 = vmul.f32 %v276, %v1220
  %v1519 = vmul.f32 %v278, %v1230
  %v1520 = vmul.f32 %v280, %v1240
  %v1521 = vmul.f32 %v282, %v1250
  %v1522 = vmul.f32 %v284, %v1260
  %v1523 = vmul.f32 %v286, %v1270
  %v1524 = vmul.f32 %v288, %v1280
  %v1525 = vmul.f32 %v290, %v1290
  %v1526 = vmul.f32 %v292, %v1300
  %v1527 = vmul.f32 %v294, %v1310
  %v1528 = vmul.f32 %v296, %v1320
  %v1529 = vmul.f32 %v298, %v1330
  %v1530 = vmul.f32 %v300, %v1340
  %v1531 = vmul.f32 %v302, %v1350
  %v1532 = vmul.f32 %v304, %v1360
  %v1533 = vmul.f32 %v306, %v1370
  %v1534 = vmul.f32 %v308, %v1380
  %v1535 = vmul.f32 %v310, %v1390
  %v1536 = vmul.f32 %v312, %v1400
  %v1537 = vmul.f32 %v314, %v1410
  %v1538 = vmul.f32 %v316, %v1420
  %v1539 = vmul.f32 %v318, %v1430
  %v1540 = vmul.f32 %v320, %v1440
  %v1541 = vmul.f32 %v322, %v1450
  %v1542 = vmul.f32 %v324, %v1460
  %v1543 = vmul.f32 %v326, %v1470
  %v1544 = vmul.f32 %v328, %v1480
  %v1545 = vrsqrt.pop %v777
  %v1546 = vmul.f32 %v1545, %v777
  %v1547 = vmul.f32 %v1546, %v1545
  %v1548 = vmul.f32 0.5, %v1547
  %v1549 = vsub.f32 1.5, %v1548
  %v1550 = vmul.f32 %v1545, %v1549
  %vm1551 = vweird.f32 %v777
  %vm1552 = vweird.f32 %v1545
  %vm1553 = vmor %vm1551, %vm1552
  %v1554 = vsel %vm1553, %v1545, %v1550
  %v1555 = vrsqrt.pop %v778
  %v1556 = vmul.f32 %v1555, %v778
  %v1557 = vmul.f32 %v1556, %v1555
  %v1558 = vmul.f32 0.5, %v1557
  %v1559 = vsub.f32 1.5, %v1558
  %v1560 = vmul.f32 %v1555, %v1559
  %vm1561 = vweird.f32 %v778
  %vm1562 = vweird.f32 %v1555
  %vm1563 = vmor %vm1561, %vm1562
  %v1564 = vsel %vm1563, %v1555, %v1560
  %v1565 = vrsqrt.pop %v779
  %v1566 = vmul.f32 %v1565, %v779
  %v1567 = vmul.f32 %v1566, %v1565
  %v1568 = vmul.f32 0.5, %v1567
  %v1569 = vsub.f32 1.5, %v1568
  %v1570 = vmul.f32 %v1565, %v1569
  %vm1571 = vweird.f32 %v779
  %vm1572 = vweird.f32 %v1565
  %vm1573 = vmor %vm1571, %vm1572
  %v1574 = vsel %vm1573, %v1565, %v1570
  %v1575 = vrsqrt.pop %v780
  %v1576 = vmul.f32 %v1575, %v780
  %v1577 = vmul.f32 %v1576, %v1575
  %v1578 = vmul.f32 0.5, %v1577
  %v1579 = vsub.f32 1.5, %v1578
  %v1580 = vmul.f32 %v1575, %v1579
  %vm1581 = vweird.f32 %v780
  %vm1582 = vweird.f32 %v1575
  %vm1583 = vmor %vm1581, %vm1582
  %v1584 = vsel %vm1583, %v1575, %v1580
  %v1585 = vrsqrt.pop %v781
  %v1586 = vmul.f32 %v1585, %v781
  %v1587 = vmul.f32 %v1586, %v1585
  %v1588 = vmul.f32 0.5, %v1587
  %v1589 = vsub.f32 1.5, %v1588
  %v1590 = vmul.f32 %v1585, %v1589
  %vm1591 = vweird.f32 %v781
  %vm1592 = vweird.f32 %v1585
  %vm1593 = vmor %vm1591, %vm1592
  %v1594 = vsel %vm1593, %v1585, %v1590
  %v1595 = vrsqrt.pop %v782
  %v1596 = vmul.f32 %v1595, %v782
  %v1597 = vmul.f32 %v1596, %v1595
  %v1598 = vmul.f32 0.5, %v1597
  %v1599 = vsub.f32 1.5, %v1598
  %v1600 = vmul.f32 %v1595, %v1599
  %vm1601 = vweird.f32 %v782
  %vm1602 = vweird.f32 %v1595
  %vm1603 = vmor %vm1601, %vm1602
  %v1604 = vsel %vm1603, %v1595, %v1600
  %v1605 = vrsqrt.pop %v783
  %v1606 = vmul.f32 %v1605, %v783
  %v1607 = vmul.f32 %v1606, %v1605
  %v1608 = vmul.f32 0.5, %v1607
  %v1609 = vsub.f32 1.5, %v1608
  %v1610 = vmul.f32 %v1605, %v1609
  %vm1611 = vweird.f32 %v783
  %vm1612 = vweird.f32 %v1605
  %vm1613 = vmor %vm1611, %vm1612
  %v1614 = vsel %vm1613, %v1605, %v1610
  %v1615 = vrsqrt.pop %v784
  %v1616 = vmul.f32 %v1615, %v784
  %v1617 = vmul.f32 %v1616, %v1615
  %v1618 = vmul.f32 0.5, %v1617
  %v1619 = vsub.f32 1.5, %v1618
  %v1620 = vmul.f32 %v1615, %v1619
  %vm1621 = vweird.f32 %v784
  %vm1622 = vweird.f32 %v1615
  %vm1623 = vmor %vm1621, %vm1622
  %v1624 = vsel %vm1623, %v1615, %v1620
  %v1625 = vrsqrt.pop %v785
  %v1626 = vmul.f32 %v1625, %v785
  %v1627 = vmul.f32 %v1626, %v1625
  %v1628 = vmul.f32 0.5, %v1627
  %v1629 = vsub.f32 1.5, %v1628
  %v1630 = vmul.f32 %v1625, %v1629
  %vm1631 = vweird.f32 %v785
  %vm1632 = vweird.f32 %v1625
  %vm1633 = vmor %vm1631, %vm1632
  %v1634 = vsel %vm1633, %v1625, %v1630
  %v1635 = vrsqrt.pop %v786
  %v1636 = vmul.f32 %v1635, %v786
  %v1637 = vmul.f32 %v1636, %v1635
  %v1638 = vmul.f32 0.5, %v1637
  %v1639 = vsub.f32 1.5, %v1638
  %v1640 = vmul.f32 %v1635, %v1639
  %vm1641 = vweird.f32 %v786
  %vm1642 = vweird.f32 %v1635
  %vm1643 = vmor %vm1641, %vm1642
  %v1644 = vsel %vm1643, %v1635, %v1640
  %v1645 = vrsqrt.pop %v787
  %v1646 = vmul.f32 %v1645, %v787
  %v1647 = vmul.f32 %v1646, %v1645
  %v1648 = vmul.f32 0.5, %v1647
  %v1649 = vsub.f32 1.5, %v1648
  %v1650 = vmul.f32 %v1645, %v1649
  %vm1651 = vweird.f32 %v787
  %vm1652 = vweird.f32 %v1645
  %vm1653 = vmor %vm1651, %vm1652
  %v1654 = vsel %vm1653, %v1645, %v1650
  %v1655 = vrsqrt.pop %v788
  %v1656 = vmul.f32 %v1655, %v788
  %v1657 = vmul.f32 %v1656, %v1655
  %v1658 = vmul.f32 0.5, %v1657
  %v1659 = vsub.f32 1.5, %v1658
  %v1660 = vmul.f32 %v1655, %v1659
  %vm1661 = vweird.f32 %v788
  %vm1662 = vweird.f32 %v1655
  %vm1663 = vmor %vm1661, %vm1662
  %v1664 = vsel %vm1663, %v1655, %v1660
  %v1665 = vrsqrt.pop %v789
  %v1666 = vmul.f32 %v1665, %v789
  %v1667 = vmul.f32 %v1666, %v1665
  %v1668 = vmul.f32 0.5, %v1667
  %v1669 = vsub.f32 1.5, %v1668
  %v1670 = vmul.f32 %v1665, %v1669
  %vm1671 = vweird.f32 %v789
  %vm1672 = vweird.f32 %v1665
  %vm1673 = vmor %vm1671, %vm1672
  %v1674 = vsel %vm1673, %v1665, %v1670
  %v1675 = vrsqrt.pop %v790
  %v1676 = vmul.f32 %v1675, %v790
  %v1677 = vmul.f32 %v1676, %v1675
  %v1678 = vmul.f32 0.5, %v1677
  %v1679 = vsub.f32 1.5, %v1678
  %v1680 = vmul.f32 %v1675, %v1679
  %vm1681 = vweird.f32 %v790
  %vm1682 = vweird.f32 %v1675
  %vm1683 = vmor %vm1681, %vm1682
  %v1684 = vsel %vm1683, %v1675, %v1680
  %v1685 = vrsqrt.pop %v791
  %v1686 = vmul.f32 %v1685, %v791
  %v1687 = vmul.f32 %v1686, %v1685
  %v1688 = vmul.f32 0.5, %v1687
  %v1689 = vsub.f32 1.5, %v1688
  %v1690 = vmul.f32 %v1685, %v1689
  %vm1691 = vweird.f32 %v791
  %vm1692 = vweird.f32 %v1685
  %vm1693 = vmor %vm1691, %vm1692
  %v1694 = vsel %vm1693, %v1685, %v1690
  %v1695 = vrsqrt.pop %v792
  %v1696 = vmul.f32 %v1695, %v792
  %v1697 = vmul.f32 %v1696, %v1695
  %v1698 = vmul.f32 0.5, %v1697
  %v1699 = vsub.f32 1.5, %v1698
  %v1700 = vmul.f32 %v1695, %v1699
  %vm1701 = vweird.f32 %v792
  %vm1702 = vweird.f32 %v1695
  %vm1703 = vmor %vm1701, %vm1702
  %v1704 = vsel %vm1703, %v1695, %v1700
  %v1705 = vrsqrt.pop %v793
  %v1706 = vmul.f32 %v1705, %v793
  %v1707 = vmul.f32 %v1706, %v1705
  %v1708 = vmul.f32 0.5, %v1707
  %v1709 = vsub.f32 1.5, %v1708
  %v1710 = vmul.f32 %v1705, %v1709
  %vm1711 = vweird.f32 %v793
  %vm1712 = vweird.f32 %v1705
  %vm1713 = vmor %vm1711, %vm1712
  %v1714 = vsel %vm1713, %v1705, %v1710
  %v1715 = vrsqrt.pop %v794
  %v1716 = vmul.f32 %v1715, %v794
  %v1717 = vmul.f32 %v1716, %v1715
  %v1718 = vmul.f32 0.5, %v1717
  %v1719 = vsub.f32 1.5, %v1718
  %v1720 = vmul.f32 %v1715, %v1719
  %vm1721 = vweird.f32 %v794
  %vm1722 = vweird.f32 %v1715
  %vm1723 = vmor %vm1721, %vm1722
  %v1724 = vsel %vm1723, %v1715, %v1720
  %v1725 = vrsqrt.pop %v795
  %v1726 = vmul.f32 %v1725, %v795
  %v1727 = vmul.f32 %v1726, %v1725
  %v1728 = vmul.f32 0.5, %v1727
  %v1729 = vsub.f32 1.5, %v1728
  %v1730 = vmul.f32 %v1725, %v1729
  %vm1731 = vweird.f32 %v795
  %vm1732 = vweird.f32 %v1725
  %vm1733 = vmor %vm1731, %vm1732
  %v1734 = vsel %vm1733, %v1725, %v1730
  %v1735 = vrsqrt.pop %v796
  %v1736 = vmul.f32 %v1735, %v796
  %v1737 = vmul.f32 %v1736, %v1735
  %v1738 = vmul.f32 0.5, %v1737
  %v1739 = vsub.f32 1.5, %v1738
  %v1740 = vmul.f32 %v1735, %v1739
  %vm1741 = vweird.f32 %v796
  %vm1742 = vweird.f32 %v1735
  %vm1743 = vmor %vm1741, %vm1742
  %v1744 = vsel %vm1743, %v1735, %v1740
  %v1745 = vrsqrt.pop %v797
  %v1746 = vmul.f32 %v1745, %v797
  %v1747 = vmul.f32 %v1746, %v1745
  %v1748 = vmul.f32 0.5, %v1747
  %v1749 = vsub.f32 1.5, %v1748
  %v1750 = vmul.f32 %v1745, %v1749
  %vm1751 = vweird.f32 %v797
  %vm1752 = vweird.f32 %v1745
  %vm1753 = vmor %vm1751, %vm1752
  %v1754 = vsel %vm1753, %v1745, %v1750
  %v1755 = vrsqrt.pop %v798
  %v1756 = vmul.f32 %v1755, %v798
  %v1757 = vmul.f32 %v1756, %v1755
  %v1758 = vmul.f32 0.5, %v1757
  %v1759 = vsub.f32 1.5, %v1758
  %v1760 = vmul.f32 %v1755, %v1759
  %vm1761 = vweird.f32 %v798
  %vm1762 = vweird.f32 %v1755
  %vm1763 = vmor %vm1761, %vm1762
  %v1764 = vsel %vm1763, %v1755, %v1760
  %v1765 = vrsqrt.pop %v799
  %v1766 = vmul.f32 %v1765, %v799
  %v1767 = vmul.f32 %v1766, %v1765
  %v1768 = vmul.f32 0.5, %v1767
  %v1769 = vsub.f32 1.5, %v1768
  %v1770 = vmul.f32 %v1765, %v1769
  %vm1771 = vweird.f32 %v799
  %vm1772 = vweird.f32 %v1765
  %vm1773 = vmor %vm1771, %vm1772
  %v1774 = vsel %vm1773, %v1765, %v1770
  %v1775 = vrsqrt.pop %v800
  %v1776 = vmul.f32 %v1775, %v800
  %v1777 = vmul.f32 %v1776, %v1775
  %v1778 = vmul.f32 0.5, %v1777
  %v1779 = vsub.f32 1.5, %v1778
  %v1780 = vmul.f32 %v1775, %v1779
  %vm1781 = vweird.f32 %v800
  %vm1782 = vweird.f32 %v1775
  %vm1783 = vmor %vm1781, %vm1782
  %v1784 = vsel %vm1783, %v1775, %v1780
  %v1785 = vrsqrt.pop %v801
  %v1786 = vmul.f32 %v1785, %v801
  %v1787 = vmul.f32 %v1786, %v1785
  %v1788 = vmul.f32 0.5, %v1787
  %v1789 = vsub.f32 1.5, %v1788
  %v1790 = vmul.f32 %v1785, %v1789
  %vm1791 = vweird.f32 %v801
  %vm1792 = vweird.f32 %v1785
  %vm1793 = vmor %vm1791, %vm1792
  %v1794 = vsel %vm1793, %v1785, %v1790
  %v1795 = vrsqrt.pop %v802
  %v1796 = vmul.f32 %v1795, %v802
  %v1797 = vmul.f32 %v1796, %v1795
  %v1798 = vmul.f32 0.5, %v1797
  %v1799 = vsub.f32 1.5, %v1798
  %v1800 = vmul.f32 %v1795, %v1799
  %vm1801 = vweird.f32 %v802
  %vm1802 = vweird.f32 %v1795
  %vm1803 = vmor %vm1801, %vm1802
  %v1804 = vsel %vm1803, %v1795, %v1800
  %v1805 = vrsqrt.pop %v803
  %v1806 = vmul.f32 %v1805, %v803
  %v1807 = vmul.f32 %v1806, %v1805
  %v1808 = vmul.f32 0.5, %v1807
  %v1809 = vsub.f32 1.5, %v1808
  %v1810 = vmul.f32 %v1805, %v1809
  %vm1811 = vweird.f32 %v803
  %vm1812 = vweird.f32 %v1805
  %vm1813 = vmor %vm1811, %vm1812
  %v1814 = vsel %vm1813, %v1805, %v1810
  %v1815 = vrsqrt.pop %v804
  %v1816 = vmul.f32 %v1815, %v804
  %v1817 = vmul.f32 %v1816, %v1815
  %v1818 = vmul.f32 0.5, %v1817
  %v1819 = vsub.f32 1.5, %v1818
  %v1820 = vmul.f32 %v1815, %v1819
  %vm1821 = vweird.f32 %v804
  %vm1822 = vweird.f32 %v1815
  %vm1823 = vmor %vm1821, %vm1822
  %v1824 = vsel %vm1823, %v1815, %v1820
  %v1825 = vrsqrt.pop %v805
  %v1826 = vmul.f32 %v1825, %v805
  %v1827 = vmul.f32 %v1826, %v1825
  %v1828 = vmul.f32 0.5, %v1827
  %v1829 = vsub.f32 1.5, %v1828
  %v1830 = vmul.f32 %v1825, %v1829
  %vm1831 = vweird.f32 %v805
  %vm1832 = vweird.f32 %v1825
  %vm1833 = vmor %vm1831, %vm1832
  %v1834 = vsel %vm1833, %v1825, %v1830
  %v1835 = vrsqrt.pop %v806
  %v1836 = vmul.f32 %v1835, %v806
  %v1837 = vmul.f32 %v1836, %v1835
  %v1838 = vmul.f32 0.5, %v1837
  %v1839 = vsub.f32 1.5, %v1838
  %v1840 = vmul.f32 %v1835, %v1839
  %vm1841 = vweird.f32 %v806
  %vm1842 = vweird.f32 %v1835
  %vm1843 = vmor %vm1841, %vm1842
  %v1844 = vsel %vm1843, %v1835, %v1840
  %v1845 = vrsqrt.pop %v807
  %v1846 = vmul.f32 %v1845, %v807
  %v1847 = vmul.f32 %v1846, %v1845
  %v1848 = vmul.f32 0.5, %v1847
  %v1849 = vsub.f32 1.5, %v1848
  %v1850 = vmul.f32 %v1845, %v1849
  %vm1851 = vweird.f32 %v807
  %vm1852 = vweird.f32 %v1845
  %vm1853 = vmor %vm1851, %vm1852
  %v1854 = vsel %vm1853, %v1845, %v1850
  %v1855 = vrsqrt.pop %v808
  %v1856 = vmul.f32 %v1855, %v808
  %v1857 = vmul.f32 %v1856, %v1855
  %v1858 = vmul.f32 0.5, %v1857
  %v1859 = vsub.f32 1.5, %v1858
  %v1860 = vmul.f32 %v1855, %v1859
  %vm1861 = vweird.f32 %v808
  %vm1862 = vweird.f32 %v1855
  %vm1863 = vmor %vm1861, %vm1862
  %v1864 = vsel %vm1863, %v1855, %v1860
  %v1865 = vrsqrt.pop %v809
  %v1866 = vmul.f32 %v1865, %v809
  %v1867 = vmul.f32 %v1866, %v1865
  %v1868 = vmul.f32 0.5, %v1867
  %v1869 = vsub.f32 1.5, %v1868
  %v1870 = vmul.f32 %v1865, %v1869
  %vm1871 = vweird.f32 %v809
  %vm1872 = vweird.f32 %v1865
  %vm1873 = vmor %vm1871, %vm1872
  %v1874 = vsel %vm1873, %v1865, %v1870
  %v1875 = vrsqrt.pop %v810
  %v1876 = vmul.f32 %v1875, %v810
  %v1877 = vmul.f32 %v1876, %v1875
  %v1878 = vmul.f32 0.5, %v1877
  %v1879 = vsub.f32 1.5, %v1878
  %v1880 = vmul.f32 %v1875, %v1879
  %vm1881 = vweird.f32 %v810
  %vm1882 = vweird.f32 %v1875
  %vm1883 = vmor %vm1881, %vm1882
  %v1884 = vsel %vm1883, %v1875, %v1880
  %v1885 = vrsqrt.pop %v811
  %v1886 = vmul.f32 %v1885, %v811
  %v1887 = vmul.f32 %v1886, %v1885
  %v1888 = vmul.f32 0.5, %v1887
  %v1889 = vsub.f32 1.5, %v1888
  %v1890 = vmul.f32 %v1885, %v1889
  %vm1891 = vweird.f32 %v811
  %vm1892 = vweird.f32 %v1885
  %vm1893 = vmor %vm1891, %vm1892
  %v1894 = vsel %vm1893, %v1885, %v1890
  %v1895 = vrsqrt.pop %v812
  %v1896 = vmul.f32 %v1895, %v812
  %v1897 = vmul.f32 %v1896, %v1895
  %v1898 = vmul.f32 0.5, %v1897
  %v1899 = vsub.f32 1.5, %v1898
  %v1900 = vmul.f32 %v1895, %v1899
  %vm1901 = vweird.f32 %v812
  %vm1902 = vweird.f32 %v1895
  %vm1903 = vmor %vm1901, %vm1902
  %v1904 = vsel %vm1903, %v1895, %v1900
  %v1905 = vrsqrt.pop %v813
  %v1906 = vmul.f32 %v1905, %v813
  %v1907 = vmul.f32 %v1906, %v1905
  %v1908 = vmul.f32 0.5, %v1907
  %v1909 = vsub.f32 1.5, %v1908
  %v1910 = vmul.f32 %v1905, %v1909
  %vm1911 = vweird.f32 %v813
  %vm1912 = vweird.f32 %v1905
  %vm1913 = vmor %vm1911, %vm1912
  %v1914 = vsel %vm1913, %v1905, %v1910
  %v1915 = vrsqrt.pop %v814
  %v1916 = vmul.f32 %v1915, %v814
  %v1917 = vmul.f32 %v1916, %v1915
  %v1918 = vmul.f32 0.5, %v1917
  %v1919 = vsub.f32 1.5, %v1918
  %v1920 = vmul.f32 %v1915, %v1919
  %vm1921 = vweird.f32 %v814
  %vm1922 = vweird.f32 %v1915
  %vm1923 = vmor %vm1921, %vm1922
  %v1924 = vsel %vm1923, %v1915, %v1920
  %v1925 = vrsqrt.pop %v815
  %v1926 = vmul.f32 %v1925, %v815
  %v1927 = vmul.f32 %v1926, %v1925
  %v1928 = vmul.f32 0.5, %v1927
  %v1929 = vsub.f32 1.5, %v1928
  %v1930 = vmul.f32 %v1925, %v1929
  %vm1931 = vweird.f32 %v815
  %vm1932 = vweird.f32 %v1925
  %vm1933 = vmor %vm1931, %vm1932
  %v1934 = vsel %vm1933, %v1925, %v1930
  %v1935 = vrsqrt.pop %v816
  %v1936 = vmul.f32 %v1935, %v816
  %v1937 = vmul.f32 %v1936, %v1935
  %v1938 = vmul.f32 0.5, %v1937
  %v1939 = vsub.f32 1.5, %v1938
  %v1940 = vmul.f32 %v1935, %v1939
  %vm1941 = vweird.f32 %v816
  %vm1942 = vweird.f32 %v1935
  %vm1943 = vmor %vm1941, %vm1942
  %v1944 = vsel %vm1943, %v1935, %v1940
  %v1945 = vrsqrt.pop %v817
  %v1946 = vmul.f32 %v1945, %v817
  %v1947 = vmul.f32 %v1946, %v1945
  %v1948 = vmul.f32 0.5, %v1947
  %v1949 = vsub.f32 1.5, %v1948
  %v1950 = vmul.f32 %v1945, %v1949
  %vm1951 = vweird.f32 %v817
  %vm1952 = vweird.f32 %v1945
  %vm1953 = vmor %vm1951, %vm1952
  %v1954 = vsel %vm1953, %v1945, %v1950
  %v1955 = vrsqrt.pop %v818
  %v1956 = vmul.f32 %v1955, %v818
  %v1957 = vmul.f32 %v1956, %v1955
  %v1958 = vmul.f32 0.5, %v1957
  %v1959 = vsub.f32 1.5, %v1958
  %v1960 = vmul.f32 %v1955, %v1959
  %vm1961 = vweird.f32 %v818
  %vm1962 = vweird.f32 %v1955
  %vm1963 = vmor %vm1961, %vm1962
  %v1964 = vsel %vm1963, %v1955, %v1960
  %v1965 = vrsqrt.pop %v819
  %v1966 = vmul.f32 %v1965, %v819
  %v1967 = vmul.f32 %v1966, %v1965
  %v1968 = vmul.f32 0.5, %v1967
  %v1969 = vsub.f32 1.5, %v1968
  %v1970 = vmul.f32 %v1965, %v1969
  %vm1971 = vweird.f32 %v819
  %vm1972 = vweird.f32 %v1965
  %vm1973 = vmor %vm1971, %vm1972
  %v1974 = vsel %vm1973, %v1965, %v1970
  %v1975 = vrsqrt.pop %v820
  %v1976 = vmul.f32 %v1975, %v820
  %v1977 = vmul.f32 %v1976, %v1975
  %v1978 = vmul.f32 0.5, %v1977
  %v1979 = vsub.f32 1.5, %v1978
  %v1980 = vmul.f32 %v1975, %v1979
  %vm1981 = vweird.f32 %v820
  %vm1982 = vweird.f32 %v1975
  %vm1983 = vmor %vm1981, %vm1982
  %v1984 = vsel %vm1983, %v1975, %v1980
  %v1985 = vrsqrt.pop %v821
  %v1986 = vmul.f32 %v1985, %v821
  %v1987 = vmul.f32 %v1986, %v1985
  %v1988 = vmul.f32 0.5, %v1987
  %v1989 = vsub.f32 1.5, %v1988
  %v1990 = vmul.f32 %v1985, %v1989
  %vm1991 = vweird.f32 %v821
  %vm1992 = vweird.f32 %v1985
  %vm1993 = vmor %vm1991, %vm1992
  %v1994 = vsel %vm1993, %v1985, %v1990
  %v1995 = vrsqrt.pop %v822
  %v1996 = vmul.f32 %v1995, %v822
  %v1997 = vmul.f32 %v1996, %v1995
  %v1998 = vmul.f32 0.5, %v1997
  %v1999 = vsub.f32 1.5, %v1998
  %v2000 = vmul.f32 %v1995, %v1999
  %vm2001 = vweird.f32 %v822
  %vm2002 = vweird.f32 %v1995
  %vm2003 = vmor %vm2001, %vm2002
  %v2004 = vsel %vm2003, %v1995, %v2000
  %v2005 = vrsqrt.pop %v823
  %v2006 = vmul.f32 %v2005, %v823
  %v2007 = vmul.f32 %v2006, %v2005
  %v2008 = vmul.f32 0.5, %v2007
  %v2009 = vsub.f32 1.5, %v2008
  %v2010 = vmul.f32 %v2005, %v2009
  %vm2011 = vweird.f32 %v823
  %vm2012 = vweird.f32 %v2005
  %vm2013 = vmor %vm2011, %vm2012
  %v2014 = vsel %vm2013, %v2005, %v2010
  %v2015 = vrsqrt.pop %v824
  %v2016 = vmul.f32 %v2015, %v824
  %v2017 = vmul.f32 %v2016, %v2015
  %v2018 = vmul.f32 0.5, %v2017
  %v2019 = vsub.f32 1.5, %v2018
  %v2020 = vmul.f32 %v2015, %v2019
  %vm2021 = vweird.f32 %v824
  %vm2022 = vweird.f32 %v2015
  %vm2023 = vmor %vm2021, %vm2022
  %v2024 = vsel %vm2023, %v2015, %v2020
  %v2025 = vrsqrt.pop %v825
  %v2026 = vmul.f32 %v2025, %v825
  %v2027 = vmul.f32 %v2026, %v2025
  %v2028 = vmul.f32 0.5, %v2027
  %v2029 = vsub.f32 1.5, %v2028
  %v2030 = vmul.f32 %v2025, %v2029
  %vm2031 = vweird.f32 %v825
  %vm2032 = vweird.f32 %v2025
  %vm2033 = vmor %vm2031, %vm2032
  %v2034 = vsel %vm2033, %v2025, %v2030
  %v2035 = vrsqrt.pop %v826
  %v2036 = vmul.f32 %v2035, %v826
  %v2037 = vmul.f32 %v2036, %v2035
  %v2038 = vmul.f32 0.5, %v2037
  %v2039 = vsub.f32 1.5, %v2038
  %v2040 = vmul.f32 %v2035, %v2039
  %vm2041 = vweird.f32 %v826
  %vm2042 = vweird.f32 %v2035
  %vm2043 = vmor %vm2041, %vm2042
  %v2044 = vsel %vm2043, %v2035, %v2040
  %v2045 = vrsqrt.pop %v827
  %v2046 = vmul.f32 %v2045, %v827
  %v2047 = vmul.f32 %v2046, %v2045
  %v2048 = vmul.f32 0.5, %v2047
  %v2049 = vsub.f32 1.5, %v2048
  %v2050 = vmul.f32 %v2045, %v2049
  %vm2051 = vweird.f32 %v827
  %vm2052 = vweird.f32 %v2045
  %vm2053 = vmor %vm2051, %vm2052
  %v2054 = vsel %vm2053, %v2045, %v2050
  %v2055 = vrsqrt.pop %v828
  %v2056 = vmul.f32 %v2055, %v828
  %v2057 = vmul.f32 %v2056, %v2055
  %v2058 = vmul.f32 0.5, %v2057
  %v2059 = vsub.f32 1.5, %v2058
  %v2060 = vmul.f32 %v2055, %v2059
  %vm2061 = vweird.f32 %v828
  %vm2062 = vweird.f32 %v2055
  %vm2063 = vmor %vm2061, %vm2062
  %v2064 = vsel %vm2063, %v2055, %v2060
  %v2065 = vrsqrt.pop %v829
  %v2066 = vmul.f32 %v2065, %v829
  %v2067 = vmul.f32 %v2066, %v2065
  %v2068 = vmul.f32 0.5, %v2067
  %v2069 = vsub.f32 1.5, %v2068
  %v2070 = vmul.f32 %v2065, %v2069
  %vm2071 = vweird.f32 %v829
  %vm2072 = vweird.f32 %v2065
  %vm2073 = vmor %vm2071, %vm2072
  %v2074 = vsel %vm2073, %v2065, %v2070
  %v2075 = vrsqrt.pop %v830
  %v2076 = vmul.f32 %v2075, %v830
  %v2077 = vmul.f32 %v2076, %v2075
  %v2078 = vmul.f32 0.5, %v2077
  %v2079 = vsub.f32 1.5, %v2078
  %v2080 = vmul.f32 %v2075, %v2079
  %vm2081 = vweird.f32 %v830
  %vm2082 = vweird.f32 %v2075
  %vm2083 = vmor %vm2081, %vm2082
  %v2084 = vsel %vm2083, %v2075, %v2080
  %v2085 = vrsqrt.pop %v831
  %v2086 = vmul.f32 %v2085, %v831
  %v2087 = vmul.f32 %v2086, %v2085
  %v2088 = vmul.f32 0.5, %v2087
  %v2089 = vsub.f32 1.5, %v2088
  %v2090 = vmul.f32 %v2085, %v2089
  %vm2091 = vweird.f32 %v831
  %vm2092 = vweird.f32 %v2085
  %vm2093 = vmor %vm2091, %vm2092
  %v2094 = vsel %vm2093, %v2085, %v2090
  %v2095 = vrsqrt.pop %v832
  %v2096 = vmul.f32 %v2095, %v832
  %v2097 = vmul.f32 %v2096, %v2095
  %v2098 = vmul.f32 0.5, %v2097
  %v2099 = vsub.f32 1.5, %v2098
  %v2100 = vmul.f32 %v2095, %v2099
  %vm2101 = vweird.f32 %v832
  %vm2102 = vweird.f32 %v2095
  %vm2103 = vmor %vm2101, %vm2102
  %v2104 = vsel %vm2103, %v2095, %v2100
  %v2105 = vrsqrt.pop %v833
  %v2106 = vmul.f32 %v2105, %v833
  %v2107 = vmul.f32 %v2106, %v2105
  %v2108 = vmul.f32 0.5, %v2107
  %v2109 = vsub.f32 1.5, %v2108
  %v2110 = vmul.f32 %v2105, %v2109
  %vm2111 = vweird.f32 %v833
  %vm2112 = vweird.f32 %v2105
  %vm2113 = vmor %vm2111, %vm2112
  %v2114 = vsel %vm2113, %v2105, %v2110
  %v2115 = vrsqrt.pop %v834
  %v2116 = vmul.f32 %v2115, %v834
  %v2117 = vmul.f32 %v2116, %v2115
  %v2118 = vmul.f32 0.5, %v2117
  %v2119 = vsub.f32 1.5, %v2118
  %v2120 = vmul.f32 %v2115, %v2119
  %vm2121 = vweird.f32 %v834
  %vm2122 = vweird.f32 %v2115
  %vm2123 = vmor %vm2121, %vm2122
  %v2124 = vsel %vm2123, %v2115, %v2120
  %v2125 = vrsqrt.pop %v835
  %v2126 = vmul.f32 %v2125, %v835
  %v2127 = vmul.f32 %v2126, %v2125
  %v2128 = vmul.f32 0.5, %v2127
  %v2129 = vsub.f32 1.5, %v2128
  %v2130 = vmul.f32 %v2125, %v2129
  %vm2131 = vweird.f32 %v835
  %vm2132 = vweird.f32 %v2125
  %vm2133 = vmor %vm2131, %vm2132
  %v2134 = vsel %vm2133, %v2125, %v2130
  %v2135 = vrsqrt.pop %v836
  %v2136 = vmul.f32 %v2135, %v836
  %v2137 = vmul.f32 %v2136, %v2135
  %v2138 = vmul.f32 0.5, %v2137
  %v2139 = vsub.f32 1.5, %v2138
  %v2140 = vmul.f32 %v2135, %v2139
  %vm2141 = vweird.f32 %v836
  %vm2142 = vweird.f32 %v2135
  %vm2143 = vmor %vm2141, %vm2142
  %v2144 = vsel %vm2143, %v2135, %v2140
  %v2145 = vrsqrt.pop %v837
  %v2146 = vmul.f32 %v2145, %v837
  %v2147 = vmul.f32 %v2146, %v2145
  %v2148 = vmul.f32 0.5, %v2147
  %v2149 = vsub.f32 1.5, %v2148
  %v2150 = vmul.f32 %v2145, %v2149
  %vm2151 = vweird.f32 %v837
  %vm2152 = vweird.f32 %v2145
  %vm2153 = vmor %vm2151, %vm2152
  %v2154 = vsel %vm2153, %v2145, %v2150
  %v2155 = vrsqrt.pop %v838
  %v2156 = vmul.f32 %v2155, %v838
  %v2157 = vmul.f32 %v2156, %v2155
  %v2158 = vmul.f32 0.5, %v2157
  %v2159 = vsub.f32 1.5, %v2158
  %v2160 = vmul.f32 %v2155, %v2159
  %vm2161 = vweird.f32 %v838
  %vm2162 = vweird.f32 %v2155
  %vm2163 = vmor %vm2161, %vm2162
  %v2164 = vsel %vm2163, %v2155, %v2160
  %v2165 = vrsqrt.pop %v839
  %v2166 = vmul.f32 %v2165, %v839
  %v2167 = vmul.f32 %v2166, %v2165
  %v2168 = vmul.f32 0.5, %v2167
  %v2169 = vsub.f32 1.5, %v2168
  %v2170 = vmul.f32 %v2165, %v2169
  %vm2171 = vweird.f32 %v839
  %vm2172 = vweird.f32 %v2165
  %vm2173 = vmor %vm2171, %vm2172
  %v2174 = vsel %vm2173, %v2165, %v2170
  %v2175 = vrsqrt.pop %v840
  %v2176 = vmul.f32 %v2175, %v840
  %v2177 = vmul.f32 %v2176, %v2175
  %v2178 = vmul.f32 0.5, %v2177
  %v2179 = vsub.f32 1.5, %v2178
  %v2180 = vmul.f32 %v2175, %v2179
  %vm2181 = vweird.f32 %v840
  %vm2182 = vweird.f32 %v2175
  %vm2183 = vmor %vm2181, %vm2182
  %v2184 = vsel %vm2183, %v2175, %v2180
  %v2185 = vmul.f32 %v1481, %v1554
  %v2186 = vmul.f32 %v1482, %v1564
  %v2187 = vmul.f32 %v1483, %v1574
  %v2188 = vmul.f32 %v1484, %v1584
  %v2189 = vmul.f32 %v1485, %v1594
  %v2190 = vmul.f32 %v1486, %v1604
  %v2191 = vmul.f32 %v1487, %v1614
  %v2192 = vmul.f32 %v1488, %v1624
  %v2193 = vmul.f32 %v1489, %v1634
  %v2194 = vmul.f32 %v1490, %v1644
  %v2195 = vmul.f32 %v1491, %v1654
  %v2196 = vmul.f32 %v1492, %v1664
  %v2197 = vmul.f32 %v1493, %v1674
  %v2198 = vmul.f32 %v1494, %v1684
  %v2199 = vmul.f32 %v1495, %v1694
  %v2200 = vmul.f32 %v1496, %v1704
  %v2201 = vmul.f32 %v1497, %v1714
  %v2202 = vmul.f32 %v1498, %v1724
  %v2203 = vmul.f32 %v1499, %v1734
  %v2204 = vmul.f32 %v1500, %v1744
  %v2205 = vmul.f32 %v1501, %v1754
  %v2206 = vmul.f32 %v1502, %v1764
  %v2207 = vmul.f32 %v1503, %v1774
  %v2208 = vmul.f32 %v1504, %v1784
  %v2209 = vmul.f32 %v1505, %v1794
  %v2210 = vmul.f32 %v1506, %v1804
  %v2211 = vmul.f32 %v1507, %v1814
  %v2212 = vmul.f32 %v1508, %v1824
  %v2213 = vmul.f32 %v1509, %v1834
  %v2214 = vmul.f32 %v1510, %v1844
  %v2215 = vmul.f32 %v1511, %v1854
  %v2216 = vmul.f32 %v1512, %v1864
  %v2217 = vmul.f32 %v1513, %v1874
  %v2218 = vmul.f32 %v1514, %v1884
  %v2219 = vmul.f32 %v1515, %v1894
  %v2220 = vmul.f32 %v1516, %v1904
  %v2221 = vmul.f32 %v1517, %v1914
  %v2222 = vmul.f32 %v1518, %v1924
  %v2223 = vmul.f32 %v1519, %v1934
  %v2224 = vmul.f32 %v1520, %v1944
  %v2225 = vmul.f32 %v1521, %v1954
  %v2226 = vmul.f32 %v1522, %v1964
  %v2227 = vmul.f32 %v1523, %v1974
  %v2228 = vmul.f32 %v1524, %v1984
  %v2229 = vmul.f32 %v1525, %v1994
  %v2230 = vmul.f32 %v1526, %v2004
  %v2231 = vmul.f32 %v1527, %v2014
  %v2232 = vmul.f32 %v1528, %v2024
  %v2233 = vmul.f32 %v1529, %v2034
  %v2234 = vmul.f32 %v1530, %v2044
  %v2235 = vmul.f32 %v1531, %v2054
  %v2236 = vmul.f32 %v1532, %v2064
  %v2237 = vmul.f32 %v1533, %v2074
  %v2238 = vmul.f32 %v1534, %v2084
  %v2239 = vmul.f32 %v1535, %v2094
  %v2240 = vmul.f32 %v1536, %v2104
  %v2241 = vmul.f32 %v1537, %v2114
  %v2242 = vmul.f32 %v1538, %v2124
  %v2243 = vmul.f32 %v1539, %v2134
  %v2244 = vmul.f32 %v1540, %v2144
  %v2245 = vmul.f32 %v1541, %v2154
  %v2246 = vmul.f32 %v1542, %v2164
  %v2247 = vmul.f32 %v1543, %v2174
  %v2248 = vmul.f32 %v1544, %v2184
  %vm2249 = vcmask 7168
  %v2250 = vsel %vm2249, %v2185, 0.0
  %v2251 = vsel %vm2249, %v2186, 0.0
  %v2252 = vadd.f32 %v2250, %v2251
  %v2253 = vsel %vm2249, %v2187, 0.0
  %v2254 = vadd.f32 %v2252, %v2253
  %v2255 = vsel %vm2249, %v2188, 0.0
  %v2256 = vadd.f32 %v2254, %v2255
  %v2257 = vsel %vm2249, %v2189, 0.0
  %v2258 = vadd.f32 %v2256, %v2257
  %v2259 = vsel %vm2249, %v2190, 0.0
  %v2260 = vadd.f32 %v2258, %v2259
  %v2261 = vsel %vm2249, %v2191, 0.0
  %v2262 = vadd.f32 %v2260, %v2261
  %v2263 = vsel %vm2249, %v2192, 0.0
  %v2264 = vadd.f32 %v2262, %v2263
  %v2265 = vsel %vm2249, %v2193, 0.0
  %v2266 = vadd.f32 %v2264, %v2265
  %v2267 = vsel %vm2249, %v2194, 0.0
  %v2268 = vadd.f32 %v2266, %v2267
  %v2269 = vsel %vm2249, %v2195, 0.0
  %v2270 = vadd.f32 %v2268, %v2269
  %v2271 = vsel %vm2249, %v2196, 0.0
  %v2272 = vadd.f32 %v2270, %v2271
  %v2273 = vsel %vm2249, %v2197, 0.0
  %v2274 = vadd.f32 %v2272, %v2273
  %v2275 = vsel %vm2249, %v2198, 0.0
  %v2276 = vadd.f32 %v2274, %v2275
  %v2277 = vsel %vm2249, %v2199, 0.0
  %v2278 = vadd.f32 %v2276, %v2277
  %v2279 = vsel %vm2249, %v2200, 0.0
  %v2280 = vadd.f32 %v2278, %v2279
  %v2281 = vsel %vm2249, %v2201, 0.0
  %v2282 = vadd.f32 %v2280, %v2281
  %v2283 = vsel %vm2249, %v2202, 0.0
  %v2284 = vadd.f32 %v2282, %v2283
  %v2285 = vsel %vm2249, %v2203, 0.0
  %v2286 = vadd.f32 %v2284, %v2285
  %v2287 = vsel %vm2249, %v2204, 0.0
  %v2288 = vadd.f32 %v2286, %v2287
  %v2289 = vsel %vm2249, %v2205, 0.0
  %v2290 = vadd.f32 %v2288, %v2289
  %v2291 = vsel %vm2249, %v2206, 0.0
  %v2292 = vadd.f32 %v2290, %v2291
  %v2293 = vsel %vm2249, %v2207, 0.0
  %v2294 = vadd.f32 %v2292, %v2293
  %v2295 = vsel %vm2249, %v2208, 0.0
  %v2296 = vadd.f32 %v2294, %v2295
  %v2297 = vsel %vm2249, %v2209, 0.0
  %v2298 = vadd.f32 %v2296, %v2297
  %v2299 = vsel %vm2249, %v2210, 0.0
  %v2300 = vadd.f32 %v2298, %v2299
  %v2301 = vsel %vm2249, %v2211, 0.0
  %v2302 = vadd.f32 %v2300, %v2301
  %v2303 = vsel %vm2249, %v2212, 0.0
  %v2304 = vadd.f32 %v2302, %v2303
  %v2305 = vsel %vm2249, %v2213, 0.0
  %v2306 = vadd.f32 %v2304, %v2305
  %v2307 = vsel %vm2249, %v2214, 0.0
  %v2308 = vadd.f32 %v2306, %v2307
  %v2309 = vsel %vm2249, %v2215, 0.0
  %v2310 = vadd.f32 %v2308, %v2309
  %v2311 = vsel %vm2249, %v2216, 0.0
  %v2312 = vadd.f32 %v2310, %v2311
  %v2313 = vsel %vm2249, %v2217, 0.0
  %v2314 = vadd.f32 %v2312, %v2313
  %v2315 = vsel %vm2249, %v2218, 0.0
  %v2316 = vadd.f32 %v2314, %v2315
  %v2317 = vsel %vm2249, %v2219, 0.0
  %v2318 = vadd.f32 %v2316, %v2317
  %v2319 = vsel %vm2249, %v2220, 0.0
  %v2320 = vadd.f32 %v2318, %v2319
  %v2321 = vsel %vm2249, %v2221, 0.0
  %v2322 = vadd.f32 %v2320, %v2321
  %v2323 = vsel %vm2249, %v2222, 0.0
  %v2324 = vadd.f32 %v2322, %v2323
  %v2325 = vsel %vm2249, %v2223, 0.0
  %v2326 = vadd.f32 %v2324, %v2325
  %v2327 = vsel %vm2249, %v2224, 0.0
  %v2328 = vadd.f32 %v2326, %v2327
  %v2329 = vsel %vm2249, %v2225, 0.0
  %v2330 = vadd.f32 %v2328, %v2329
  %v2331 = vsel %vm2249, %v2226, 0.0
  %v2332 = vadd.f32 %v2330, %v2331
  %v2333 = vsel %vm2249, %v2227, 0.0
  %v2334 = vadd.f32 %v2332, %v2333
  %v2335 = vsel %vm2249, %v2228, 0.0
  %v2336 = vadd.f32 %v2334, %v2335
  %v2337 = vsel %vm2249, %v2229, 0.0
  %v2338 = vadd.f32 %v2336, %v2337
  %v2339 = vsel %vm2249, %v2230, 0.0
  %v2340 = vadd.f32 %v2338, %v2339
  %v2341 = vsel %vm2249, %v2231, 0.0
  %v2342 = vadd.f32 %v2340, %v2341
  %v2343 = vsel %vm2249, %v2232, 0.0
  %v2344 = vadd.f32 %v2342, %v2343
  %v2345 = vsel %vm2249, %v2233, 0.0
  %v2346 = vadd.f32 %v2344, %v2345
  %v2347 = vsel %vm2249, %v2234, 0.0
  %v2348 = vadd.f32 %v2346, %v2347
  %v2349 = vsel %vm2249, %v2235, 0.0
  %v2350 = vadd.f32 %v2348, %v2349
  %v2351 = vsel %vm2249, %v2236, 0.0
  %v2352 = vadd.f32 %v2350, %v2351
  %v2353 = vsel %vm2249, %v2237, 0.0
  %v2354 = vadd.f32 %v2352, %v2353
  %v2355 = vsel %vm2249, %v2238, 0.0
  %v2356 = vadd.f32 %v2354, %v2355
  %v2357 = vsel %vm2249, %v2239, 0.0
  %v2358 = vadd.f32 %v2356, %v2357
  %v2359 = vsel %vm2249, %v2240, 0.0
  %v2360 = vadd.f32 %v2358, %v2359
  %v2361 = vsel %vm2249, %v2241, 0.0
  %v2362 = vadd.f32 %v2360, %v2361
  %v2363 = vsel %vm2249, %v2242, 0.0
  %v2364 = vadd.f32 %v2362, %v2363
  %v2365 = vsel %vm2249, %v2243, 0.0
  %v2366 = vadd.f32 %v2364, %v2365
  %v2367 = vsel %vm2249, %v2244, 0.0
  %v2368 = vadd.f32 %v2366, %v2367
  %v2369 = vsel %vm2249, %v2245, 0.0
  %v2370 = vadd.f32 %v2368, %v2369
  %v2371 = vsel %vm2249, %v2246, 0.0
  %v2372 = vadd.f32 %v2370, %v2371
  %v2373 = vsel %vm2249, %v2247, 0.0
  %v2374 = vadd.f32 %v2372, %v2373
  %v2375 = vsel %vm2249, %v2248, 0.0
  %v2376 = vadd.f32 %v2374, %v2375
  %2377 = vadd.xlane.f32.xlu0 %v2376
  %v2378 = vpop.xlane.xlu0 %2377
  %v2379 = vrot.slane %v2378, 4
  %v2380 = vadd.f32 %v2378, %v2379
  %v2381 = vrot.slane %v2380, 2
  %v2382 = vadd.f32 %v2380, %v2381
  %v2383 = vrot.slane %v2382, 1
  %v2384 = vadd.f32 %v2382, %v2383
  %s2385 = vtos %v2384
  %v2386 = vlaneseq
  %v2387 = vand.u32 %v2386, 127
  %vm2388 = vcmp.eq.s32.totalorder %v2387, 0
  %v2389 = vstv %s2385
  %v2390 = vsel %vm2388, %v2389, 0.0
  %2391 = vst [vmem:[%s1] sm:$0x1] %v2390
  // Predicated region
  $region6: #{deep_sim_raw.6} parent=0 // pred_check
    _
  $region7: #{deep_sim_raw.6} parent=0 // pred_check_branch
    %2393 = sbr.rel (0) target = $region9
  $region8: #{deep_sim_raw.6} parent=0 // pred_region
    _
  $region9: #{deep_sim_raw.6} parent=0 // pred_fallthru
    _
  // Predicated region
  $region10: #{deep_sim_raw.6} parent=0 // pred_check
    _
  $region11: #{deep_sim_raw.6} parent=0 // pred_check_branch
    %2395 = sbr.rel (0) target = $region13
  $region12: #{deep_sim_raw.6} parent=0 // pred_region
    _
  $region13: #{deep_sim_raw.6} parent=0 // pred_fallthru
    _

// kernel: deep_sim_raw.4
$region0: #{deep_sim_raw.4}
  #allocation0 [shape = 'u32[]', space=smem, size = 0x4, offset = 0x4, fixed_abs, tag = 'smem constant byte address 0x4 - core index']
  #allocation1 [shape = 'u32[72,128]{1,0:T(1,128)}', space=vmem, size = 0x9000, scoped, tag = 'internal scratch']
  %s0 = inlined_call_operand.vmem [shape: bf16[1024,36], index: 0, kind: input, shape index: {}]
  %s1 = inlined_call_operand.vmem [shape: bf16[36,128], index: 1, kind: input, shape index: {}]
  %s2 = inlined_call_operand.vmem [shape: f32[1,128], index: 2, kind: input, shape index: {}]
  %s3 = inlined_call_operand.vmem [shape: f32[1024,128], index: 3, kind: output, shape index: {}]
  %s4 = sld [smem:[#allocation0]]
  $region22: #{deep_sim_raw.4} parent=0
    _
  %s6 = ssub.s32 1, %s4
  %s7 = scalar_select 0, %s6, %s4
  // Predicated region
  $region2: #{deep_sim_raw.4} parent=0 // pred_check
    _
  $region3: #{deep_sim_raw.4} parent=0 // pred_check_branch
    %9 = sbr.rel (0) target = $region5
  $region4: #{deep_sim_raw.4} parent=0 // pred_region
    _
  $region5: #{deep_sim_raw.4} parent=0 // pred_fallthru
    _
  // Predicated region
  $region6: #{deep_sim_raw.4} parent=0 // pred_check
    _
  $region7: #{deep_sim_raw.4} parent=0 // pred_check_branch
    %11 = sbr.rel (0) target = $region9
  $region8: #{deep_sim_raw.4} parent=0 // pred_region
    _
  $region9: #{deep_sim_raw.4} parent=0 // pred_fallthru
    _
  // Predicated region
  $region10: #{deep_sim_raw.4} parent=0 // pred_check
    _
  $region11: #{deep_sim_raw.4} parent=0 // pred_check_branch
    %13 = sbr.rel (0) target = $region13
  $region12: #{deep_sim_raw.4} parent=0 // pred_region
    _
  $region13: #{deep_sim_raw.4} parent=0 // pred_fallthru
    _
  %v15 = vld [vmem:[%s0] sm:$0xf]
  %v16 = vld [vmem:[%s0 + $0x4] sm:$0xf]
  %v17 = vld [vmem:[%s0 + $0x8] sm:$0xf]
  %v18 = vld [vmem:[%s0 + $0xc] sm:$0xf]
  %v19 = vld [vmem:[%s0 + $0x10] sm:$0xf]
  %v20 = vld [vmem:[%s0 + $0x14] sm:$0xf]
  %v21 = vld [vmem:[%s0 + $0x18] sm:$0xf]
  %v22 = vld [vmem:[%s0 + $0x1c] sm:$0xf]
  %v23 = vld [vmem:[%s0 + $0x20] sm:$0xf]
  %v24 = vld [vmem:[%s0 + $0x24] sm:$0xf]
  %v25 = vld [vmem:[%s0 + $0x28] sm:$0xf]
  %v26 = vld [vmem:[%s0 + $0x2c] sm:$0xf]
  %v27 = vld [vmem:[%s0 + $0x30] sm:$0xf]
  %v28 = vld [vmem:[%s0 + $0x34] sm:$0xf]
  %v29 = vld [vmem:[%s0 + $0x38] sm:$0xf]
  %v30 = vld [vmem:[%s0 + $0x3c] sm:$0xf]
  %v31 = vld [vmem:[%s0 + $0x40] sm:$0xf]
  %v32 = vld [vmem:[%s0 + $0x44] sm:$0xf]
  %v33 = vld [vmem:[%s0 + $0x48] sm:$0xf]
  %v34 = vld [vmem:[%s0 + $0x4c] sm:$0xf]
  %v35 = vld [vmem:[%s0 + $0x50] sm:$0xf]
  %v36 = vld [vmem:[%s0 + $0x54] sm:$0xf]
  %v37 = vld [vmem:[%s0 + $0x58] sm:$0xf]
  %v38 = vld [vmem:[%s0 + $0x5c] sm:$0xf]
  %v39 = vld [vmem:[%s0 + $0x60] sm:$0xf]
  %v40 = vld [vmem:[%s0 + $0x64] sm:$0xf]
  %v41 = vld [vmem:[%s0 + $0x68] sm:$0xf]
  %v42 = vld [vmem:[%s0 + $0x6c] sm:$0xf]
  %v43 = vld [vmem:[%s0 + $0x70] sm:$0xf]
  %v44 = vld [vmem:[%s0 + $0x74] sm:$0xf]
  %v45 = vld [vmem:[%s0 + $0x78] sm:$0xf]
  %v46 = vld [vmem:[%s0 + $0x7c] sm:$0xf]
  %v47 = vld [vmem:[%s0 + $0x80] sm:$0xf]
  %v48 = vld [vmem:[%s0 + $0x84] sm:$0xf]
  %v49 = vld [vmem:[%s0 + $0x88] sm:$0xf]
  %v50 = vld [vmem:[%s0 + $0x8c] sm:$0xf]
  %v51 = vld [vmem:[%s0 + $0x90] sm:$0xf]
  %v52 = vld [vmem:[%s0 + $0x94] sm:$0xf]
  %v53 = vld [vmem:[%s0 + $0x98] sm:$0xf]
  %v54 = vld [vmem:[%s0 + $0x9c] sm:$0xf]
  %v55 = vld [vmem:[%s0 + $0xa0] sm:$0xf]
  %v56 = vld [vmem:[%s0 + $0xa4] sm:$0xf]
  %v57 = vld [vmem:[%s0 + $0xa8] sm:$0xf]
  %v58 = vld [vmem:[%s0 + $0xac] sm:$0xf]
  %v59 = vld [vmem:[%s0 + $0xb0] sm:$0xf]
  %v60 = vld [vmem:[%s0 + $0xb4] sm:$0xf]
  %v61 = vld [vmem:[%s0 + $0xb8] sm:$0xf]
  %v62 = vld [vmem:[%s0 + $0xbc] sm:$0xf]
  %v63 = vld [vmem:[%s0 + $0xc0] sm:$0xf]
  %v64 = vld [vmem:[%s0 + $0xc4] sm:$0xf]
  %v65 = vld [vmem:[%s0 + $0xc8] sm:$0xf]
  %v66 = vld [vmem:[%s0 + $0xcc] sm:$0xf]
  %v67 = vld [vmem:[%s0 + $0xd0] sm:$0xf]
  %v68 = vld [vmem:[%s0 + $0xd4] sm:$0xf]
  %v69 = vld [vmem:[%s0 + $0xd8] sm:$0xf]
  %v70 = vld [vmem:[%s0 + $0xdc] sm:$0xf]
  %v71 = vld [vmem:[%s0 + $0xe0] sm:$0xf]
  %v72 = vld [vmem:[%s0 + $0xe4] sm:$0xf]
  %v73 = vld [vmem:[%s0 + $0xe8] sm:$0xf]
  %v74 = vld [vmem:[%s0 + $0xec] sm:$0xf]
  %v75 = vld [vmem:[%s0 + $0xf0] sm:$0xf]
  %v76 = vld [vmem:[%s0 + $0xf4] sm:$0xf]
  %v77 = vld [vmem:[%s0 + $0xf8] sm:$0xf]
  %v78 = vld [vmem:[%s0 + $0xfc] sm:$0xf]
  %v79 = vld [vmem:[%s0 + $0x100] sm:$0xf]
  %v80 = vld [vmem:[%s0 + $0x104] sm:$0xf]
  %v81 = vld [vmem:[%s0 + $0x108] sm:$0xf]
  %v82 = vld [vmem:[%s0 + $0x10c] sm:$0xf]
  %v83 = vld [vmem:[%s0 + $0x110] sm:$0xf]
  %v84 = vld [vmem:[%s0 + $0x114] sm:$0xf]
  %v85 = vld [vmem:[%s0 + $0x118] sm:$0xf]
  %v86 = vld [vmem:[%s0 + $0x11c] sm:$0xf]
  %v87 = vld [vmem:[%s0 + $0x120] sm:$0xf]
  %v88 = vld [vmem:[%s0 + $0x124] sm:$0xf]
  %v89 = vld [vmem:[%s0 + $0x128] sm:$0xf]
  %v90 = vld [vmem:[%s0 + $0x12c] sm:$0xf]
  %v91 = vld [vmem:[%s0 + $0x130] sm:$0xf]
  %v92 = vld [vmem:[%s0 + $0x134] sm:$0xf]
  %v93 = vld [vmem:[%s0 + $0x138] sm:$0xf]
  %v94 = vld [vmem:[%s0 + $0x13c] sm:$0xf]
  %v95 = vld [vmem:[%s0 + $0x140] sm:$0xf]
  %v96 = vld [vmem:[%s0 + $0x144] sm:$0xf]
  %v97 = vld [vmem:[%s0 + $0x148] sm:$0xf]
  %v98 = vld [vmem:[%s0 + $0x14c] sm:$0xf]
  %v99 = vld [vmem:[%s0 + $0x150] sm:$0xf]
  %v100 = vld [vmem:[%s0 + $0x154] sm:$0xf]
  %v101 = vld [vmem:[%s0 + $0x158] sm:$0xf]
  %v102 = vld [vmem:[%s0 + $0x15c] sm:$0xf]
  %v103 = vld [vmem:[%s0 + $0x160] sm:$0xf]
  %v104 = vld [vmem:[%s0 + $0x164] sm:$0xf]
  %v105 = vld [vmem:[%s0 + $0x168] sm:$0xf]
  %v106 = vld [vmem:[%s0 + $0x16c] sm:$0xf]
  %v107 = vld [vmem:[%s0 + $0x170] sm:$0xf]
  %v108 = vld [vmem:[%s0 + $0x174] sm:$0xf]
  %v109 = vld [vmem:[%s0 + $0x178] sm:$0xf]
  %v110 = vld [vmem:[%s0 + $0x17c] sm:$0xf]
  %v111 = vld [vmem:[%s0 + $0x180] sm:$0xf]
  %v112 = vld [vmem:[%s0 + $0x184] sm:$0xf]
  %v113 = vld [vmem:[%s0 + $0x188] sm:$0xf]
  %v114 = vld [vmem:[%s0 + $0x18c] sm:$0xf]
  %v115 = vld [vmem:[%s0 + $0x190] sm:$0xf]
  %v116 = vld [vmem:[%s0 + $0x194] sm:$0xf]
  %v117 = vld [vmem:[%s0 + $0x198] sm:$0xf]
  %v118 = vld [vmem:[%s0 + $0x19c] sm:$0xf]
  %v119 = vld [vmem:[%s0 + $0x1a0] sm:$0xf]
  %v120 = vld [vmem:[%s0 + $0x1a4] sm:$0xf]
  %v121 = vld [vmem:[%s0 + $0x1a8] sm:$0xf]
  %v122 = vld [vmem:[%s0 + $0x1ac] sm:$0xf]
  %v123 = vld [vmem:[%s0 + $0x1b0] sm:$0xf]
  %v124 = vld [vmem:[%s0 + $0x1b4] sm:$0xf]
  %v125 = vld [vmem:[%s0 + $0x1b8] sm:$0xf]
  %v126 = vld [vmem:[%s0 + $0x1bc] sm:$0xf]
  %v127 = vld [vmem:[%s0 + $0x1c0] sm:$0xf]
  %v128 = vld [vmem:[%s0 + $0x1c4] sm:$0xf]
  %v129 = vld [vmem:[%s0 + $0x1c8] sm:$0xf]
  %v130 = vld [vmem:[%s0 + $0x1cc] sm:$0xf]
  %v131 = vld [vmem:[%s0 + $0x1d0] sm:$0xf]
  %v132 = vld [vmem:[%s0 + $0x1d4] sm:$0xf]
  %v133 = vld [vmem:[%s0 + $0x1d8] sm:$0xf]
  %v134 = vld [vmem:[%s0 + $0x1dc] sm:$0xf]
  %v135 = vld [vmem:[%s0 + $0x1e0] sm:$0xf]
  %v136 = vld [vmem:[%s0 + $0x1e4] sm:$0xf]
  %v137 = vld [vmem:[%s0 + $0x1e8] sm:$0xf]
  %v138 = vld [vmem:[%s0 + $0x1ec] sm:$0xf]
  %v139 = vld [vmem:[%s0 + $0x1f0] sm:$0xf]
  %v140 = vld [vmem:[%s0 + $0x1f4] sm:$0xf]
  %v141 = vld [vmem:[%s0 + $0x1f8] sm:$0xf]
  %v142 = vld [vmem:[%s0 + $0x1fc] sm:$0xf]
  %v143 = vld [vmem:[%s1] sm:$0xf]
  %v144 = vld [vmem:[%s1 + $0x4] sm:$0xf]
  %v145 = vld [vmem:[%s1 + $0x8] sm:$0xf]
  %v146 = vld [vmem:[%s1 + $0xc] sm:$0xf]
  %v147 = vld [vmem:[%s1 + $0x10] sm:$0x3]
  %v148 = vld [vmem:[%s2] sm:$0x1]
  %v150 = vperm.slane %v148, 0
  %v280 = vunpack.c.l.b16 %v15
  %v281 = vunpack.c.l.b16 %v16
  %v282 = vunpack.c.l.b16 %v17
  %v283 = vunpack.c.l.b16 %v18
  %v284 = vunpack.c.l.b16 %v19
  %v285 = vunpack.c.l.b16 %v20
  %v286 = vunpack.c.l.b16 %v21
  %v287 = vunpack.c.l.b16 %v22
  %v288 = vunpack.c.l.b16 %v23
  %v289 = vunpack.c.l.b16 %v24
  %v290 = vunpack.c.l.b16 %v25
  %v291 = vunpack.c.l.b16 %v26
  %v292 = vunpack.c.l.b16 %v27
  %v293 = vunpack.c.l.b16 %v28
  %v294 = vunpack.c.l.b16 %v29
  %v295 = vunpack.c.l.b16 %v30
  %v296 = vunpack.c.l.b16 %v31
  %v297 = vunpack.c.l.b16 %v32
  %v298 = vunpack.c.l.b16 %v33
  %v299 = vunpack.c.l.b16 %v34
  %v300 = vunpack.c.l.b16 %v35
  %v301 = vunpack.c.l.b16 %v36
  %v302 = vunpack.c.l.b16 %v37
  %v303 = vunpack.c.l.b16 %v38
  %v304 = vunpack.c.l.b16 %v39
  %v305 = vunpack.c.l.b16 %v40
  %v306 = vunpack.c.l.b16 %v41
  %v307 = vunpack.c.l.b16 %v42
  %v308 = vunpack.c.l.b16 %v43
  %v309 = vunpack.c.l.b16 %v44
  %v310 = vunpack.c.l.b16 %v45
  %v311 = vunpack.c.l.b16 %v46
  %v312 = vunpack.c.l.b16 %v47
  %v313 = vunpack.c.l.b16 %v48
  %v314 = vunpack.c.l.b16 %v49
  %v315 = vunpack.c.l.b16 %v50
  %v316 = vunpack.c.l.b16 %v51
  %v317 = vunpack.c.l.b16 %v52
  %v318 = vunpack.c.l.b16 %v53
  %v319 = vunpack.c.l.b16 %v54
  %v320 = vunpack.c.l.b16 %v55
  %v321 = vunpack.c.l.b16 %v56
  %v322 = vunpack.c.l.b16 %v57
  %v323 = vunpack.c.l.b16 %v58
  %v324 = vunpack.c.l.b16 %v59
  %v325 = vunpack.c.l.b16 %v60
  %v326 = vunpack.c.l.b16 %v61
  %v327 = vunpack.c.l.b16 %v62
  %v328 = vunpack.c.l.b16 %v63
  %v329 = vunpack.c.l.b16 %v64
  %v330 = vunpack.c.l.b16 %v65
  %v331 = vunpack.c.l.b16 %v66
  %v332 = vunpack.c.l.b16 %v67
  %v333 = vunpack.c.l.b16 %v68
  %v334 = vunpack.c.l.b16 %v69
  %v335 = vunpack.c.l.b16 %v70
  %v336 = vunpack.c.l.b16 %v71
  %v337 = vunpack.c.l.b16 %v72
  %v338 = vunpack.c.l.b16 %v73
  %v339 = vunpack.c.l.b16 %v74
  %v340 = vunpack.c.l.b16 %v75
  %v341 = vunpack.c.l.b16 %v76
  %v342 = vunpack.c.l.b16 %v77
  %v343 = vunpack.c.l.b16 %v78
  %v344 = vunpack.c.l.b16 %v79
  %v345 = vunpack.c.l.b16 %v80
  %v346 = vunpack.c.l.b16 %v81
  %v347 = vunpack.c.l.b16 %v82
  %v348 = vunpack.c.l.b16 %v83
  %v349 = vunpack.c.l.b16 %v84
  %v350 = vunpack.c.l.b16 %v85
  %v351 = vunpack.c.l.b16 %v86
  %v352 = vunpack.c.l.b16 %v87
  %v353 = vunpack.c.l.b16 %v88
  %v354 = vunpack.c.l.b16 %v89
  %v355 = vunpack.c.l.b16 %v90
  %v356 = vunpack.c.l.b16 %v91
  %v357 = vunpack.c.l.b16 %v92
  %v358 = vunpack.c.l.b16 %v93
  %v359 = vunpack.c.l.b16 %v94
  %v360 = vunpack.c.l.b16 %v95
  %v361 = vunpack.c.l.b16 %v96
  %v362 = vunpack.c.l.b16 %v97
  %v363 = vunpack.c.l.b16 %v98
  %v364 = vunpack.c.l.b16 %v99
  %v365 = vunpack.c.l.b16 %v100
  %v366 = vunpack.c.l.b16 %v101
  %v367 = vunpack.c.l.b16 %v102
  %v368 = vunpack.c.l.b16 %v103
  %v369 = vunpack.c.l.b16 %v104
  %v370 = vunpack.c.l.b16 %v105
  %v371 = vunpack.c.l.b16 %v106
  %v372 = vunpack.c.l.b16 %v107
  %v373 = vunpack.c.l.b16 %v108
  %v374 = vunpack.c.l.b16 %v109
  %v375 = vunpack.c.l.b16 %v110
  %v376 = vunpack.c.l.b16 %v111
  %v377 = vunpack.c.l.b16 %v112
  %v378 = vunpack.c.l.b16 %v113
  %v379 = vunpack.c.l.b16 %v114
  %v380 = vunpack.c.l.b16 %v115
  %v381 = vunpack.c.l.b16 %v116
  %v382 = vunpack.c.l.b16 %v117
  %v383 = vunpack.c.l.b16 %v118
  %v384 = vunpack.c.l.b16 %v119
  %v385 = vunpack.c.l.b16 %v120
  %v386 = vunpack.c.l.b16 %v121
  %v387 = vunpack.c.l.b16 %v122
  %v388 = vunpack.c.l.b16 %v123
  %v389 = vunpack.c.l.b16 %v124
  %v390 = vunpack.c.l.b16 %v125
  %v391 = vunpack.c.l.b16 %v126
  %v392 = vunpack.c.l.b16 %v127
  %v393 = vunpack.c.l.b16 %v128
  %v394 = vunpack.c.l.b16 %v129
  %v395 = vunpack.c.l.b16 %v130
  %v396 = vunpack.c.l.b16 %v131
  %v397 = vunpack.c.l.b16 %v132
  %v398 = vunpack.c.l.b16 %v133
  %v399 = vunpack.c.l.b16 %v134
  %v400 = vunpack.c.l.b16 %v135
  %v401 = vunpack.c.l.b16 %v136
  %v402 = vunpack.c.l.b16 %v137
  %v403 = vunpack.c.l.b16 %v138
  %v404 = vunpack.c.l.b16 %v139
  %v405 = vunpack.c.l.b16 %v140
  %v406 = vunpack.c.l.b16 %v141
  %v407 = vunpack.c.l.b16 %v142
  %v408 = vpack.c.b16 %v281, %v280
  %v409 = vpack.c.b16 %v283, %v282
  %v410 = vpack.c.b16 %v285, %v284
  %v411 = vpack.c.b16 %v287, %v286
  %v412 = vpack.c.b16 %v289, %v288
  %v413 = vpack.c.b16 %v291, %v290
  %v414 = vpack.c.b16 %v293, %v292
  %v415 = vpack.c.b16 %v295, %v294
  %v416 = vpack.c.b16 %v297, %v296
  %v417 = vpack.c.b16 %v299, %v298
  %v418 = vpack.c.b16 %v301, %v300
  %v419 = vpack.c.b16 %v303, %v302
  %v420 = vpack.c.b16 %v305, %v304
  %v421 = vpack.c.b16 %v307, %v306
  %v422 = vpack.c.b16 %v309, %v308
  %v423 = vpack.c.b16 %v311, %v310
  %v424 = vpack.c.b16 %v313, %v312
  %v425 = vpack.c.b16 %v315, %v314
  %v426 = vpack.c.b16 %v317, %v316
  %v427 = vpack.c.b16 %v319, %v318
  %v428 = vpack.c.b16 %v321, %v320
  %v429 = vpack.c.b16 %v323, %v322
  %v430 = vpack.c.b16 %v325, %v324
  %v431 = vpack.c.b16 %v327, %v326
  %v432 = vpack.c.b16 %v329, %v328
  %v433 = vpack.c.b16 %v331, %v330
  %v434 = vpack.c.b16 %v333, %v332
  %v435 = vpack.c.b16 %v335, %v334
  %v436 = vpack.c.b16 %v337, %v336
  %v437 = vpack.c.b16 %v339, %v338
  %v438 = vpack.c.b16 %v341, %v340
  %v439 = vpack.c.b16 %v343, %v342
  %v440 = vpack.c.b16 %v345, %v344
  %v441 = vpack.c.b16 %v347, %v346
  %v442 = vpack.c.b16 %v349, %v348
  %v443 = vpack.c.b16 %v351, %v350
  %v444 = vpack.c.b16 %v353, %v352
  %v445 = vpack.c.b16 %v355, %v354
  %v446 = vpack.c.b16 %v357, %v356
  %v447 = vpack.c.b16 %v359, %v358
  %v448 = vpack.c.b16 %v361, %v360
  %v449 = vpack.c.b16 %v363, %v362
  %v450 = vpack.c.b16 %v365, %v364
  %v451 = vpack.c.b16 %v367, %v366
  %v452 = vpack.c.b16 %v369, %v368
  %v453 = vpack.c.b16 %v371, %v370
  %v454 = vpack.c.b16 %v373, %v372
  %v455 = vpack.c.b16 %v375, %v374
  %v456 = vpack.c.b16 %v377, %v376
  %v457 = vpack.c.b16 %v379, %v378
  %v458 = vpack.c.b16 %v381, %v380
  %v459 = vpack.c.b16 %v383, %v382
  %v460 = vpack.c.b16 %v385, %v384
  %v461 = vpack.c.b16 %v387, %v386
  %v462 = vpack.c.b16 %v389, %v388
  %v463 = vpack.c.b16 %v391, %v390
  %v464 = vpack.c.b16 %v393, %v392
  %v465 = vpack.c.b16 %v395, %v394
  %v466 = vpack.c.b16 %v397, %v396
  %v467 = vpack.c.b16 %v399, %v398
  %v468 = vpack.c.b16 %v401, %v400
  %v469 = vpack.c.b16 %v403, %v402
  %v470 = vpack.c.b16 %v405, %v404
  %v471 = vpack.c.b16 %v407, %v406
  %v477 = vunpack.c.l.b16 %v143
  %v478 = vunpack.c.l.b16 %v144
  %v479 = vunpack.c.l.b16 %v145
  %v480 = vunpack.c.l.b16 %v146
  %v481 = vunpack.c.l.b16 %v147
  %v482 = vpack.c.b16 %v478, %v477
  %v483 = vpack.c.b16 %v480, %v479
  %v484 = vpack.c.b16 %v481, %v481
  %vm487 = vcmask 293888
  %v489 = vsel %vm487, %v408, 0
  %v492 = vsel %vm487, %v409, 0
  %v495 = vsel %vm487, %v410, 0
  %v498 = vsel %vm487, %v411, 0
  %v501 = vsel %vm487, %v412, 0
  %v504 = vsel %vm487, %v413, 0
  %v507 = vsel %vm487, %v414, 0
  %v510 = vsel %vm487, %v415, 0
  %v513 = vsel %vm487, %v416, 0
  %v516 = vsel %vm487, %v417, 0
  %v519 = vsel %vm487, %v418, 0
  %v522 = vsel %vm487, %v419, 0
  %v525 = vsel %vm487, %v420, 0
  %v528 = vsel %vm487, %v421, 0
  %v531 = vsel %vm487, %v422, 0
  %v534 = vsel %vm487, %v423, 0
  %v537 = vsel %vm487, %v424, 0
  %v540 = vsel %vm487, %v425, 0
  %v543 = vsel %vm487, %v426, 0
  %v546 = vsel %vm487, %v427, 0
  %v549 = vsel %vm487, %v428, 0
  %v552 = vsel %vm487, %v429, 0
  %v555 = vsel %vm487, %v430, 0
  %v558 = vsel %vm487, %v431, 0
  %v561 = vsel %vm487, %v432, 0
  %v564 = vsel %vm487, %v433, 0
  %v567 = vsel %vm487, %v434, 0
  %v570 = vsel %vm487, %v435, 0
  %v573 = vsel %vm487, %v436, 0
  %v576 = vsel %vm487, %v437, 0
  %v579 = vsel %vm487, %v438, 0
  %v582 = vsel %vm487, %v439, 0
  %v585 = vsel %vm487, %v440, 0
  %v588 = vsel %vm487, %v441, 0
  %v591 = vsel %vm487, %v442, 0
  %v594 = vsel %vm487, %v443, 0
  %v597 = vsel %vm487, %v444, 0
  %v600 = vsel %vm487, %v445, 0
  %v603 = vsel %vm487, %v446, 0
  %v606 = vsel %vm487, %v447, 0
  %v609 = vsel %vm487, %v448, 0
  %v612 = vsel %vm487, %v449, 0
  %v615 = vsel %vm487, %v450, 0
  %v618 = vsel %vm487, %v451, 0
  %v621 = vsel %vm487, %v452, 0
  %v624 = vsel %vm487, %v453, 0
  %v627 = vsel %vm487, %v454, 0
  %v630 = vsel %vm487, %v455, 0
  %v633 = vsel %vm487, %v456, 0
  %v636 = vsel %vm487, %v457, 0
  %v639 = vsel %vm487, %v458, 0
  %v642 = vsel %vm487, %v459, 0
  %v645 = vsel %vm487, %v460, 0
  %v648 = vsel %vm487, %v461, 0
  %v651 = vsel %vm487, %v462, 0
  %v654 = vsel %vm487, %v463, 0
  %v657 = vsel %vm487, %v464, 0
  %v660 = vsel %vm487, %v465, 0
  %v663 = vsel %vm487, %v466, 0
  %v666 = vsel %vm487, %v467, 0
  %v669 = vsel %vm487, %v468, 0
  %v672 = vsel %vm487, %v469, 0
  %v675 = vsel %vm487, %v470, 0
  %v678 = vsel %vm487, %v471, 0
  %vm680 = vcmask 1041408
  %v682 = vsel %vm680, %v484, 0
  %684 = vmatpush.bf16.msra.mxu0 0
  %685 = vmatpush.bf16.msra.mxu0 0
  %686 = vmatpush.bf16.msra.mxu0 0
  %687 = vmatpush.bf16.msra.mxu0 0
  %688 = vmatpush.bf16.msra.mxu0 0
  %689 = vmatpush.bf16.msra.mxu0 %v682
  %690 = vmatpush.bf16.msra.mxu0 %v483
  %691 = vmatpush.bf16.msra.mxu0 %v482
  %692 = vmatmul.bf16.gmra.mxu0 %v489
  %v693 = vpop.f32.mrf.mxu0
  %v694 = vadd.f32 %v150, %v693
  %v695 = vpop.f32.mrf.mxu0
  %v696 = vadd.f32 %v150, %v695
  %697 = vmatmul.bf16.gmra.mxu0 %v492
  %v698 = vpop.f32.mrf.mxu0
  %v699 = vadd.f32 %v150, %v698
  %v700 = vpop.f32.mrf.mxu0
  %v701 = vadd.f32 %v150, %v700
  %702 = vmatmul.bf16.gmra.mxu0 %v495
  %v703 = vpop.f32.mrf.mxu0
  %v704 = vadd.f32 %v150, %v703
  %v705 = vpop.f32.mrf.mxu0
  %v706 = vadd.f32 %v150, %v705
  %707 = vmatmul.bf16.gmra.mxu0 %v498
  %v708 = vpop.f32.mrf.mxu0
  %v709 = vadd.f32 %v150, %v708
  %v710 = vpop.f32.mrf.mxu0
  %v711 = vadd.f32 %v150, %v710
  %712 = vmatmul.bf16.gmra.mxu0 %v501
  %v713 = vpop.f32.mrf.mxu0
  %v714 = vadd.f32 %v150, %v713
  %v715 = vpop.f32.mrf.mxu0
  %v716 = vadd.f32 %v150, %v715
  %717 = vmatmul.bf16.gmra.mxu0 %v504
  %v718 = vpop.f32.mrf.mxu0
  %v719 = vadd.f32 %v150, %v718
  %v720 = vpop.f32.mrf.mxu0
  %v721 = vadd.f32 %v150, %v720
  %722 = vmatmul.bf16.gmra.mxu0 %v507
  %v723 = vpop.f32.mrf.mxu0
  %v724 = vadd.f32 %v150, %v723
  %v725 = vpop.f32.mrf.mxu0
  %v726 = vadd.f32 %v150, %v725
  %727 = vmatmul.bf16.gmra.mxu0 %v510
  %v728 = vpop.f32.mrf.mxu0
  %v729 = vadd.f32 %v150, %v728
  %v730 = vpop.f32.mrf.mxu0
  %v731 = vadd.f32 %v150, %v730
  %732 = vmatmul.bf16.gmra.mxu0 %v513
  %v733 = vpop.f32.mrf.mxu0
  %v734 = vadd.f32 %v150, %v733
  %v735 = vpop.f32.mrf.mxu0
  %v736 = vadd.f32 %v150, %v735
  %737 = vmatmul.bf16.gmra.mxu0 %v516
  %v738 = vpop.f32.mrf.mxu0
  %v739 = vadd.f32 %v150, %v738
  %v740 = vpop.f32.mrf.mxu0
  %v741 = vadd.f32 %v150, %v740
  %742 = vmatmul.bf16.gmra.mxu0 %v519
  %v743 = vpop.f32.mrf.mxu0
  %v744 = vadd.f32 %v150, %v743
  %v745 = vpop.f32.mrf.mxu0
  %v746 = vadd.f32 %v150, %v745
  %747 = vmatmul.bf16.gmra.mxu0 %v522
  %v748 = vpop.f32.mrf.mxu0
  %v749 = vadd.f32 %v150, %v748
  %v750 = vpop.f32.mrf.mxu0
  %v751 = vadd.f32 %v150, %v750
  %752 = vmatmul.bf16.gmra.mxu0 %v525
  %v753 = vpop.f32.mrf.mxu0
  %v754 = vadd.f32 %v150, %v753
  %v755 = vpop.f32.mrf.mxu0
  %v756 = vadd.f32 %v150, %v755
  %757 = vmatmul.bf16.gmra.mxu0 %v528
  %v758 = vpop.f32.mrf.mxu0
  %v759 = vadd.f32 %v150, %v758
  %v760 = vpop.f32.mrf.mxu0
  %v761 = vadd.f32 %v150, %v760
  %762 = vmatmul.bf16.gmra.mxu0 %v531
  %v763 = vpop.f32.mrf.mxu0
  %v764 = vadd.f32 %v150, %v763
  %v765 = vpop.f32.mrf.mxu0
  %v766 = vadd.f32 %v150, %v765
  %767 = vmatmul.bf16.gmra.mxu0 %v534
  %v768 = vpop.f32.mrf.mxu0
  %v769 = vadd.f32 %v150, %v768
  %v770 = vpop.f32.mrf.mxu0
  %v771 = vadd.f32 %v150, %v770
  %772 = vmatmul.bf16.gmra.mxu0 %v537
  %v773 = vpop.f32.mrf.mxu0
  %v774 = vadd.f32 %v150, %v773
  %v775 = vpop.f32.mrf.mxu0
  %v776 = vadd.f32 %v150, %v775
  %777 = vmatmul.bf16.gmra.mxu0 %v540
  %v778 = vpop.f32.mrf.mxu0
  %v779 = vadd.f32 %v150, %v778
  %v780 = vpop.f32.mrf.mxu0
  %v781 = vadd.f32 %v150, %v780
  %782 = vmatmul.bf16.gmra.mxu0 %v543
  %v783 = vpop.f32.mrf.mxu0
  %v784 = vadd.f32 %v150, %v783
  %v785 = vpop.f32.mrf.mxu0
  %v786 = vadd.f32 %v150, %v785
  %787 = vmatmul.bf16.gmra.mxu0 %v546
  %v788 = vpop.f32.mrf.mxu0
  %v789 = vadd.f32 %v150, %v788
  %v790 = vpop.f32.mrf.mxu0
  %v791 = vadd.f32 %v150, %v790
  %792 = vmatmul.bf16.gmra.mxu0 %v549
  %v793 = vpop.f32.mrf.mxu0
  %v794 = vadd.f32 %v150, %v793
  %v795 = vpop.f32.mrf.mxu0
  %v796 = vadd.f32 %v150, %v795
  %797 = vmatmul.bf16.gmra.mxu0 %v552
  %v798 = vpop.f32.mrf.mxu0
  %v799 = vadd.f32 %v150, %v798
  %v800 = vpop.f32.mrf.mxu0
  %v801 = vadd.f32 %v150, %v800
  %802 = vmatmul.bf16.gmra.mxu0 %v555
  %v803 = vpop.f32.mrf.mxu0
  %v804 = vadd.f32 %v150, %v803
  %v805 = vpop.f32.mrf.mxu0
  %v806 = vadd.f32 %v150, %v805
  %807 = vmatmul.bf16.gmra.mxu0 %v558
  %v808 = vpop.f32.mrf.mxu0
  %v809 = vadd.f32 %v150, %v808
  %v810 = vpop.f32.mrf.mxu0
  %v811 = vadd.f32 %v150, %v810
  %812 = vmatmul.bf16.gmra.mxu0 %v561
  %v813 = vpop.f32.mrf.mxu0
  %v814 = vadd.f32 %v150, %v813
  %v815 = vpop.f32.mrf.mxu0
  %v816 = vadd.f32 %v150, %v815
  %817 = vmatmul.bf16.gmra.mxu0 %v564
  %v818 = vpop.f32.mrf.mxu0
  %v819 = vadd.f32 %v150, %v818
  %v820 = vpop.f32.mrf.mxu0
  %v821 = vadd.f32 %v150, %v820
  %822 = vmatmul.bf16.gmra.mxu0 %v567
  %v823 = vpop.f32.mrf.mxu0
  %v824 = vadd.f32 %v150, %v823
  %v825 = vpop.f32.mrf.mxu0
  %v826 = vadd.f32 %v150, %v825
  %827 = vmatmul.bf16.gmra.mxu0 %v570
  %v828 = vpop.f32.mrf.mxu0
  %v829 = vadd.f32 %v150, %v828
  %v830 = vpop.f32.mrf.mxu0
  %v831 = vadd.f32 %v150, %v830
  %832 = vmatmul.bf16.gmra.mxu0 %v573
  %v833 = vpop.f32.mrf.mxu0
  %v834 = vadd.f32 %v150, %v833
  %v835 = vpop.f32.mrf.mxu0
  %v836 = vadd.f32 %v150, %v835
  %837 = vmatmul.bf16.gmra.mxu0 %v576
  %v838 = vpop.f32.mrf.mxu0
  %v839 = vadd.f32 %v150, %v838
  %v840 = vpop.f32.mrf.mxu0
  %v841 = vadd.f32 %v150, %v840
  %842 = vmatmul.bf16.gmra.mxu0 %v579
  %v843 = vpop.f32.mrf.mxu0
  %v844 = vadd.f32 %v150, %v843
  %v845 = vpop.f32.mrf.mxu0
  %v846 = vadd.f32 %v150, %v845
  %847 = vmatmul.bf16.gmra.mxu0 %v582
  %v848 = vpop.f32.mrf.mxu0
  %v849 = vadd.f32 %v150, %v848
  %v850 = vpop.f32.mrf.mxu0
  %v851 = vadd.f32 %v150, %v850
  %852 = vmatmul.bf16.gmra.mxu0 %v585
  %v853 = vpop.f32.mrf.mxu0
  %v854 = vadd.f32 %v150, %v853
  %v855 = vpop.f32.mrf.mxu0
  %v856 = vadd.f32 %v150, %v855
  %857 = vmatmul.bf16.gmra.mxu0 %v588
  %v858 = vpop.f32.mrf.mxu0
  %v859 = vadd.f32 %v150, %v858
  %v860 = vpop.f32.mrf.mxu0
  %v861 = vadd.f32 %v150, %v860
  %862 = vmatmul.bf16.gmra.mxu0 %v591
  %v863 = vpop.f32.mrf.mxu0
  %v864 = vadd.f32 %v150, %v863
  %v865 = vpop.f32.mrf.mxu0
  %v866 = vadd.f32 %v150, %v865
  %867 = vmatmul.bf16.gmra.mxu0 %v594
  %v868 = vpop.f32.mrf.mxu0
  %v869 = vadd.f32 %v150, %v868
  %v870 = vpop.f32.mrf.mxu0
  %v871 = vadd.f32 %v150, %v870
  %872 = vmatmul.bf16.gmra.mxu0 %v597
  %v873 = vpop.f32.mrf.mxu0
  %v874 = vadd.f32 %v150, %v873
  %v875 = vpop.f32.mrf.mxu0
  %v876 = vadd.f32 %v150, %v875
  %877 = vmatmul.bf16.gmra.mxu0 %v600
  %v878 = vpop.f32.mrf.mxu0
  %v879 = vadd.f32 %v150, %v878
  %v880 = vpop.f32.mrf.mxu0
  %v881 = vadd.f32 %v150, %v880
  %882 = vmatmul.bf16.gmra.mxu0 %v603
  %v883 = vpop.f32.mrf.mxu0
  %v884 = vadd.f32 %v150, %v883
  %v885 = vpop.f32.mrf.mxu0
  %v886 = vadd.f32 %v150, %v885
  %887 = vmatmul.bf16.gmra.mxu0 %v606
  %v888 = vpop.f32.mrf.mxu0
  %v889 = vadd.f32 %v150, %v888
  %v890 = vpop.f32.mrf.mxu0
  %v891 = vadd.f32 %v150, %v890
  %892 = vmatmul.bf16.gmra.mxu0 %v609
  %v893 = vpop.f32.mrf.mxu0
  %v894 = vadd.f32 %v150, %v893
  %v895 = vpop.f32.mrf.mxu0
  %v896 = vadd.f32 %v150, %v895
  %897 = vmatmul.bf16.gmra.mxu0 %v612
  %v898 = vpop.f32.mrf.mxu0
  %v899 = vadd.f32 %v150, %v898
  %v900 = vpop.f32.mrf.mxu0
  %v901 = vadd.f32 %v150, %v900
  %902 = vmatmul.bf16.gmra.mxu0 %v615
  %v903 = vpop.f32.mrf.mxu0
  %v904 = vadd.f32 %v150, %v903
  %v905 = vpop.f32.mrf.mxu0
  %v906 = vadd.f32 %v150, %v905
  %907 = vmatmul.bf16.gmra.mxu0 %v618
  %v908 = vpop.f32.mrf.mxu0
  %v909 = vadd.f32 %v150, %v908
  %v910 = vpop.f32.mrf.mxu0
  %v911 = vadd.f32 %v150, %v910
  %912 = vmatmul.bf16.gmra.mxu0 %v621
  %v913 = vpop.f32.mrf.mxu0
  %v914 = vadd.f32 %v150, %v913
  %v915 = vpop.f32.mrf.mxu0
  %v916 = vadd.f32 %v150, %v915
  %917 = vmatmul.bf16.gmra.mxu0 %v624
  %v918 = vpop.f32.mrf.mxu0
  %v919 = vadd.f32 %v150, %v918
  %v920 = vpop.f32.mrf.mxu0
  %v921 = vadd.f32 %v150, %v920
  %922 = vmatmul.bf16.gmra.mxu0 %v627
  %v923 = vpop.f32.mrf.mxu0
  %v924 = vadd.f32 %v150, %v923
  %v925 = vpop.f32.mrf.mxu0
  %v926 = vadd.f32 %v150, %v925
  %927 = vmatmul.bf16.gmra.mxu0 %v630
  %v928 = vpop.f32.mrf.mxu0
  %v929 = vadd.f32 %v150, %v928
  %v930 = vpop.f32.mrf.mxu0
  %v931 = vadd.f32 %v150, %v930
  %932 = vmatmul.bf16.gmra.mxu0 %v633
  %v933 = vpop.f32.mrf.mxu0
  %v934 = vadd.f32 %v150, %v933
  %v935 = vpop.f32.mrf.mxu0
  %v936 = vadd.f32 %v150, %v935
  %937 = vmatmul.bf16.gmra.mxu0 %v636
  %v938 = vpop.f32.mrf.mxu0
  %v939 = vadd.f32 %v150, %v938
  %v940 = vpop.f32.mrf.mxu0
  %v941 = vadd.f32 %v150, %v940
  %942 = vmatmul.bf16.gmra.mxu0 %v639
  %v943 = vpop.f32.mrf.mxu0
  %v944 = vadd.f32 %v150, %v943
  %v945 = vpop.f32.mrf.mxu0
  %v946 = vadd.f32 %v150, %v945
  %947 = vmatmul.bf16.gmra.mxu0 %v642
  %v948 = vpop.f32.mrf.mxu0
  %v949 = vadd.f32 %v150, %v948
  %v950 = vpop.f32.mrf.mxu0
  %v951 = vadd.f32 %v150, %v950
  %952 = vmatmul.bf16.gmra.mxu0 %v645
  %v953 = vpop.f32.mrf.mxu0
  %v954 = vadd.f32 %v150, %v953
  %v955 = vpop.f32.mrf.mxu0
  %v956 = vadd.f32 %v150, %v955
  %957 = vmatmul.bf16.gmra.mxu0 %v648
  %v958 = vpop.f32.mrf.mxu0
  %v959 = vadd.f32 %v150, %v958
  %v960 = vpop.f32.mrf.mxu0
  %v961 = vadd.f32 %v150, %v960
  %962 = vmatmul.bf16.gmra.mxu0 %v651
  %v963 = vpop.f32.mrf.mxu0
  %v964 = vadd.f32 %v150, %v963
  %v965 = vpop.f32.mrf.mxu0
  %v966 = vadd.f32 %v150, %v965
  %967 = vmatmul.bf16.gmra.mxu0 %v654
  %v968 = vpop.f32.mrf.mxu0
  %v969 = vadd.f32 %v150, %v968
  %v970 = vpop.f32.mrf.mxu0
  %v971 = vadd.f32 %v150, %v970
  %972 = vmatmul.bf16.gmra.mxu0 %v657
  %v973 = vpop.f32.mrf.mxu0
  %v974 = vadd.f32 %v150, %v973
  %v975 = vpop.f32.mrf.mxu0
  %v976 = vadd.f32 %v150, %v975
  %977 = vmatmul.bf16.gmra.mxu0 %v660
  %v978 = vpop.f32.mrf.mxu0
  %v979 = vadd.f32 %v150, %v978
  %v980 = vpop.f32.mrf.mxu0
  %v981 = vadd.f32 %v150, %v980
  %982 = vmatmul.bf16.gmra.mxu0 %v663
  %v983 = vpop.f32.mrf.mxu0
  %v984 = vadd.f32 %v150, %v983
  %v985 = vpop.f32.mrf.mxu0
  %v986 = vadd.f32 %v150, %v985
  %987 = vmatmul.bf16.gmra.mxu0 %v666
  %v988 = vpop.f32.mrf.mxu0
  %v989 = vadd.f32 %v150, %v988
  %v990 = vpop.f32.mrf.mxu0
  %v991 = vadd.f32 %v150, %v990
  %992 = vmatmul.bf16.gmra.mxu0 %v669
  %v993 = vpop.f32.mrf.mxu0
  %v994 = vadd.f32 %v150, %v993
  %v995 = vpop.f32.mrf.mxu0
  %v996 = vadd.f32 %v150, %v995
  %997 = vmatmul.bf16.gmra.mxu0 %v672
  %v998 = vpop.f32.mrf.mxu0
  %v999 = vadd.f32 %v150, %v998
  %v1000 = vpop.f32.mrf.mxu0
  %v1001 = vadd.f32 %v150, %v1000
  %1002 = vmatmul.bf16.gmra.mxu0 %v675
  %v1003 = vpop.f32.mrf.mxu0
  %v1004 = vadd.f32 %v150, %v1003
  %v1005 = vpop.f32.mrf.mxu0
  %v1006 = vadd.f32 %v150, %v1005
  %1007 = vmatmul.bf16.gmra.mxu0 %v678
  %v1008 = vpop.f32.mrf.mxu0
  %v1009 = vadd.f32 %v150, %v1008
  %v1010 = vpop.f32.mrf.mxu0
  %v1011 = vadd.f32 %v150, %v1010
  %1012 = vdwg.mxu0
  %v1013 = vmax.f32 %v694, 0.0
  %v1014 = vmax.f32 %v696, 0.0
  %v1015 = vmax.f32 %v699, 0.0
  %v1016 = vmax.f32 %v701, 0.0
  %v1017 = vmax.f32 %v704, 0.0
  %v1018 = vmax.f32 %v706, 0.0
  %v1019 = vmax.f32 %v709, 0.0
  %v1020 = vmax.f32 %v711, 0.0
  %v1021 = vmax.f32 %v714, 0.0
  %v1022 = vmax.f32 %v716, 0.0
  %v1023 = vmax.f32 %v719, 0.0
  %v1024 = vmax.f32 %v721, 0.0
  %v1025 = vmax.f32 %v724, 0.0
  %v1026 = vmax.f32 %v726, 0.0
  %v1027 = vmax.f32 %v729, 0.0
  %v1028 = vmax.f32 %v731, 0.0
  %v1029 = vmax.f32 %v734, 0.0
  %v1030 = vmax.f32 %v736, 0.0
  %v1031 = vmax.f32 %v739, 0.0
  %v1032 = vmax.f32 %v741, 0.0
  %v1033 = vmax.f32 %v744, 0.0
  %v1034 = vmax.f32 %v746, 0.0
  %v1035 = vmax.f32 %v749, 0.0
  %v1036 = vmax.f32 %v751, 0.0
  %v1037 = vmax.f32 %v754, 0.0
  %v1038 = vmax.f32 %v756, 0.0
  %v1039 = vmax.f32 %v759, 0.0
  %v1040 = vmax.f32 %v761, 0.0
  %v1041 = vmax.f32 %v764, 0.0
  %v1042 = vmax.f32 %v766, 0.0
  %v1043 = vmax.f32 %v769, 0.0
  %v1044 = vmax.f32 %v771, 0.0
  %v1045 = vmax.f32 %v774, 0.0
  %v1046 = vmax.f32 %v776, 0.0
  %v1047 = vmax.f32 %v779, 0.0
  %v1048 = vmax.f32 %v781, 0.0
  %v1049 = vmax.f32 %v784, 0.0
  %v1050 = vmax.f32 %v786, 0.0
  %v1051 = vmax.f32 %v789, 0.0
  %v1052 = vmax.f32 %v791, 0.0
  %v1053 = vmax.f32 %v794, 0.0
  %v1054 = vmax.f32 %v796, 0.0
  %v1055 = vmax.f32 %v799, 0.0
  %v1056 = vmax.f32 %v801, 0.0
  %v1057 = vmax.f32 %v804, 0.0
  %v1058 = vmax.f32 %v806, 0.0
  %v1059 = vmax.f32 %v809, 0.0
  %v1060 = vmax.f32 %v811, 0.0
  %v1061 = vmax.f32 %v814, 0.0
  %v1062 = vmax.f32 %v816, 0.0
  %v1063 = vmax.f32 %v819, 0.0
  %v1064 = vmax.f32 %v821, 0.0
  %v1065 = vmax.f32 %v824, 0.0
  %v1066 = vmax.f32 %v826, 0.0
  %v1067 = vmax.f32 %v829, 0.0
  %v1068 = vmax.f32 %v831, 0.0
  %v1069 = vmax.f32 %v834, 0.0
  %v1070 = vmax.f32 %v836, 0.0
  %v1071 = vmax.f32 %v839, 0.0
  %v1072 = vmax.f32 %v841, 0.0
  %v1073 = vmax.f32 %v844, 0.0
  %v1074 = vmax.f32 %v846, 0.0
  %v1075 = vmax.f32 %v849, 0.0
  %v1076 = vmax.f32 %v851, 0.0
  %v1077 = vmax.f32 %v854, 0.0
  %v1078 = vmax.f32 %v856, 0.0
  %v1079 = vmax.f32 %v859, 0.0
  %v1080 = vmax.f32 %v861, 0.0
  %v1081 = vmax.f32 %v864, 0.0
  %v1082 = vmax.f32 %v866, 0.0
  %v1083 = vmax.f32 %v869, 0.0
  %v1084 = vmax.f32 %v871, 0.0
  %v1085 = vmax.f32 %v874, 0.0
  %v1086 = vmax.f32 %v876, 0.0
  %v1087 = vmax.f32 %v879, 0.0
  %v1088 = vmax.f32 %v881, 0.0
  %v1089 = vmax.f32 %v884, 0.0
  %v1090 = vmax.f32 %v886, 0.0
  %v1091 = vmax.f32 %v889, 0.0
  %v1092 = vmax.f32 %v891, 0.0
  %v1093 = vmax.f32 %v894, 0.0
  %v1094 = vmax.f32 %v896, 0.0
  %v1095 = vmax.f32 %v899, 0.0
  %v1096 = vmax.f32 %v901, 0.0
  %v1097 = vmax.f32 %v904, 0.0
  %v1098 = vmax.f32 %v906, 0.0
  %v1099 = vmax.f32 %v909, 0.0
  %v1100 = vmax.f32 %v911, 0.0
  %v1101 = vmax.f32 %v914, 0.0
  %v1102 = vmax.f32 %v916, 0.0
  %v1103 = vmax.f32 %v919, 0.0
  %v1104 = vmax.f32 %v921, 0.0
  %v1105 = vmax.f32 %v924, 0.0
  %v1106 = vmax.f32 %v926, 0.0
  %v1107 = vmax.f32 %v929, 0.0
  %v1108 = vmax.f32 %v931, 0.0
  %v1109 = vmax.f32 %v934, 0.0
  %v1110 = vmax.f32 %v936, 0.0
  %v1111 = vmax.f32 %v939, 0.0
  %v1112 = vmax.f32 %v941, 0.0
  %v1113 = vmax.f32 %v944, 0.0
  %v1114 = vmax.f32 %v946, 0.0
  %v1115 = vmax.f32 %v949, 0.0
  %v1116 = vmax.f32 %v951, 0.0
  %v1117 = vmax.f32 %v954, 0.0
  %v1118 = vmax.f32 %v956, 0.0
  %v1119 = vmax.f32 %v959, 0.0
  %v1120 = vmax.f32 %v961, 0.0
  %v1121 = vmax.f32 %v964, 0.0
  %v1122 = vmax.f32 %v966, 0.0
  %v1123 = vmax.f32 %v969, 0.0
  %v1124 = vmax.f32 %v971, 0.0
  %v1125 = vmax.f32 %v974, 0.0
  %v1126 = vmax.f32 %v976, 0.0
  %v1127 = vmax.f32 %v979, 0.0
  %v1128 = vmax.f32 %v981, 0.0
  %v1129 = vmax.f32 %v984, 0.0
  %v1130 = vmax.f32 %v986, 0.0
  %v1131 = vmax.f32 %v989, 0.0
  %v1132 = vmax.f32 %v991, 0.0
  %v1133 = vmax.f32 %v994, 0.0
  %v1134 = vmax.f32 %v996, 0.0
  %v1135 = vmax.f32 %v999, 0.0
  %v1136 = vmax.f32 %v1001, 0.0
  %v1137 = vmax.f32 %v1004, 0.0
  %v1138 = vmax.f32 %v1006, 0.0
  %v1139 = vmax.f32 %v1009, 0.0
  %v1140 = vmax.f32 %v1011, 0.0
  %1141 = vst [vmem:[%s3] sm:$0xff] %v1013
  %1142 = vst [vmem:[%s3 + $0x8] sm:$0xff] %v1014
  %1143 = vst [vmem:[%s3 + $0x10] sm:$0xff] %v1015
  %1144 = vst [vmem:[%s3 + $0x18] sm:$0xff] %v1016
  %1145 = vst [vmem:[%s3 + $0x20] sm:$0xff] %v1017
  %1146 = vst [vmem:[%s3 + $0x28] sm:$0xff] %v1018
  %1147 = vst [vmem:[%s3 + $0x30] sm:$0xff] %v1019
  %1148 = vst [vmem:[%s3 + $0x38] sm:$0xff] %v1020
  %1149 = vst [vmem:[%s3 + $0x40] sm:$0xff] %v1021
  %1150 = vst [vmem:[%s3 + $0x48] sm:$0xff] %v1022
  %1151 = vst [vmem:[%s3 + $0x50] sm:$0xff] %v1023
  %1152 = vst [vmem:[%s3 + $0x58] sm:$0xff] %v1024
  %1153 = vst [vmem:[%s3 + $0x60] sm:$0xff] %v1025
  %1154 = vst [vmem:[%s3 + $0x68] sm:$0xff] %v1026
  %1155 = vst [vmem:[%s3 + $0x70] sm:$0xff] %v1027
  %1156 = vst [vmem:[%s3 + $0x78] sm:$0xff] %v1028
  %1157 = vst [vmem:[%s3 + $0x80] sm:$0xff] %v1029
  %1158 = vst [vmem:[%s3 + $0x88] sm:$0xff] %v1030
  %1159 = vst [vmem:[%s3 + $0x90] sm:$0xff] %v1031
  %1160 = vst [vmem:[%s3 + $0x98] sm:$0xff] %v1032
  %1161 = vst [vmem:[%s3 + $0xa0] sm:$0xff] %v1033
  %1162 = vst [vmem:[%s3 + $0xa8] sm:$0xff] %v1034
  %1163 = vst [vmem:[%s3 + $0xb0] sm:$0xff] %v1035
  %1164 = vst [vmem:[%s3 + $0xb8] sm:$0xff] %v1036
  %1165 = vst [vmem:[%s3 + $0xc0] sm:$0xff] %v1037
  %1166 = vst [vmem:[%s3 + $0xc8] sm:$0xff] %v1038
  %1167 = vst [vmem:[%s3 + $0xd0] sm:$0xff] %v1039
  %1168 = vst [vmem:[%s3 + $0xd8] sm:$0xff] %v1040
  %1169 = vst [vmem:[%s3 + $0xe0] sm:$0xff] %v1041
  %1170 = vst [vmem:[%s3 + $0xe8] sm:$0xff] %v1042
  %1171 = vst [vmem:[%s3 + $0xf0] sm:$0xff] %v1043
  %1172 = vst [vmem:[%s3 + $0xf8] sm:$0xff] %v1044
  %1173 = vst [vmem:[%s3 + $0x100] sm:$0xff] %v1045
  %1174 = vst [vmem:[%s3 + $0x108] sm:$0xff] %v1046
  %1175 = vst [vmem:[%s3 + $0x110] sm:$0xff] %v1047
  %1176 = vst [vmem:[%s3 + $0x118] sm:$0xff] %v1048
  %1177 = vst [vmem:[%s3 + $0x120] sm:$0xff] %v1049
  %1178 = vst [vmem:[%s3 + $0x128] sm:$0xff] %v1050
  %1179 = vst [vmem:[%s3 + $0x130] sm:$0xff] %v1051
  %1180 = vst [vmem:[%s3 + $0x138] sm:$0xff] %v1052
  %1181 = vst [vmem:[%s3 + $0x140] sm:$0xff] %v1053
  %1182 = vst [vmem:[%s3 + $0x148] sm:$0xff] %v1054
  %1183 = vst [vmem:[%s3 + $0x150] sm:$0xff] %v1055
  %1184 = vst [vmem:[%s3 + $0x158] sm:$0xff] %v1056
  %1185 = vst [vmem:[%s3 + $0x160] sm:$0xff] %v1057
  %1186 = vst [vmem:[%s3 + $0x168] sm:$0xff] %v1058
  %1187 = vst [vmem:[%s3 + $0x170] sm:$0xff] %v1059
  %1188 = vst [vmem:[%s3 + $0x178] sm:$0xff] %v1060
  %1189 = vst [vmem:[%s3 + $0x180] sm:$0xff] %v1061
  %1190 = vst [vmem:[%s3 + $0x188] sm:$0xff] %v1062
  %1191 = vst [vmem:[%s3 + $0x190] sm:$0xff] %v1063
  %1192 = vst [vmem:[%s3 + $0x198] sm:$0xff] %v1064
  %1193 = vst [vmem:[%s3 + $0x1a0] sm:$0xff] %v1065
  %1194 = vst [vmem:[%s3 + $0x1a8] sm:$0xff] %v1066
  %1195 = vst [vmem:[%s3 + $0x1b0] sm:$0xff] %v1067
  %1196 = vst [vmem:[%s3 + $0x1b8] sm:$0xff] %v1068
  %1197 = vst [vmem:[%s3 + $0x1c0] sm:$0xff] %v1069
  %1198 = vst [vmem:[%s3 + $0x1c8] sm:$0xff] %v1070
  %1199 = vst [vmem:[%s3 + $0x1d0] sm:$0xff] %v1071
  %1200 = vst [vmem:[%s3 + $0x1d8] sm:$0xff] %v1072
  %1201 = vst [vmem:[%s3 + $0x1e0] sm:$0xff] %v1073
  %1202 = vst [vmem:[%s3 + $0x1e8] sm:$0xff] %v1074
  %1203 = vst [vmem:[%s3 + $0x1f0] sm:$0xff] %v1075
  %1204 = vst [vmem:[%s3 + $0x1f8] sm:$0xff] %v1076
  %1205 = vst [vmem:[%s3 + $0x200] sm:$0xff] %v1077
  %1206 = vst [vmem:[%s3 + $0x208] sm:$0xff] %v1078
  %1207 = vst [vmem:[%s3 + $0x210] sm:$0xff] %v1079
  %1208 = vst [vmem:[%s3 + $0x218] sm:$0xff] %v1080
  %1209 = vst [vmem:[%s3 + $0x220] sm:$0xff] %v1081
  %1210 = vst [vmem:[%s3 + $0x228] sm:$0xff] %v1082
  %1211 = vst [vmem:[%s3 + $0x230] sm:$0xff] %v1083
  %1212 = vst [vmem:[%s3 + $0x238] sm:$0xff] %v1084
  %1213 = vst [vmem:[%s3 + $0x240] sm:$0xff] %v1085
  %1214 = vst [vmem:[%s3 + $0x248] sm:$0xff] %v1086
  %1215 = vst [vmem:[%s3 + $0x250] sm:$0xff] %v1087
  %1216 = vst [vmem:[%s3 + $0x258] sm:$0xff] %v1088
  %1217 = vst [vmem:[%s3 + $0x260] sm:$0xff] %v1089
  %1218 = vst [vmem:[%s3 + $0x268] sm:$0xff] %v1090
  %1219 = vst [vmem:[%s3 + $0x270] sm:$0xff] %v1091
  %1220 = vst [vmem:[%s3 + $0x278] sm:$0xff] %v1092
  %1221 = vst [vmem:[%s3 + $0x280] sm:$0xff] %v1093
  %1222 = vst [vmem:[%s3 + $0x288] sm:$0xff] %v1094
  %1223 = vst [vmem:[%s3 + $0x290] sm:$0xff] %v1095
  %1224 = vst [vmem:[%s3 + $0x298] sm:$0xff] %v1096
  %1225 = vst [vmem:[%s3 + $0x2a0] sm:$0xff] %v1097
  %1226 = vst [vmem:[%s3 + $0x2a8] sm:$0xff] %v1098
  %1227 = vst [vmem:[%s3 + $0x2b0] sm:$0xff] %v1099
  %1228 = vst [vmem:[%s3 + $0x2b8] sm:$0xff] %v1100
  %1229 = vst [vmem:[%s3 + $0x2c0] sm:$0xff] %v1101
  %1230 = vst [vmem:[%s3 + $0x2c8] sm:$0xff] %v1102
  %1231 = vst [vmem:[%s3 + $0x2d0] sm:$0xff] %v1103
  %1232 = vst [vmem:[%s3 + $0x2d8] sm:$0xff] %v1104
  %1233 = vst [vmem:[%s3 + $0x2e0] sm:$0xff] %v1105
  %1234 = vst [vmem:[%s3 + $0x2e8] sm:$0xff] %v1106
  %1235 = vst [vmem:[%s3 + $0x2f0] sm:$0xff] %v1107
  %1236 = vst [vmem:[%s3 + $0x2f8] sm:$0xff] %v1108
  %1237 = vst [vmem:[%s3 + $0x300] sm:$0xff] %v1109
  %1238 = vst [vmem:[%s3 + $0x308] sm:$0xff] %v1110
  %1239 = vst [vmem:[%s3 + $0x310] sm:$0xff] %v1111
  %1240 = vst [vmem:[%s3 + $0x318] sm:$0xff] %v1112
  %1241 = vst [vmem:[%s3 + $0x320] sm:$0xff] %v1113
  %1242 = vst [vmem:[%s3 + $0x328] sm:$0xff] %v1114
  %1243 = vst [vmem:[%s3 + $0x330] sm:$0xff] %v1115
  %1244 = vst [vmem:[%s3 + $0x338] sm:$0xff] %v1116
  %1245 = vst [vmem:[%s3 + $0x340] sm:$0xff] %v1117
  %1246 = vst [vmem:[%s3 + $0x348] sm:$0xff] %v1118
  %1247 = vst [vmem:[%s3 + $0x350] sm:$0xff] %v1119
  %1248 = vst [vmem:[%s3 + $0x358] sm:$0xff] %v1120
  %1249 = vst [vmem:[%s3 + $0x360] sm:$0xff] %v1121
  %1250 = vst [vmem:[%s3 + $0x368] sm:$0xff] %v1122
  %1251 = vst [vmem:[%s3 + $0x370] sm:$0xff] %v1123
  %1252 = vst [vmem:[%s3 + $0x378] sm:$0xff] %v1124
  %1253 = vst [vmem:[%s3 + $0x380] sm:$0xff] %v1125
  %1254 = vst [vmem:[%s3 + $0x388] sm:$0xff] %v1126
  %1255 = vst [vmem:[%s3 + $0x390] sm:$0xff] %v1127
  %1256 = vst [vmem:[%s3 + $0x398] sm:$0xff] %v1128
  %1257 = vst [vmem:[%s3 + $0x3a0] sm:$0xff] %v1129
  %1258 = vst [vmem:[%s3 + $0x3a8] sm:$0xff] %v1130
  %1259 = vst [vmem:[%s3 + $0x3b0] sm:$0xff] %v1131
  %1260 = vst [vmem:[%s3 + $0x3b8] sm:$0xff] %v1132
  %1261 = vst [vmem:[%s3 + $0x3c0] sm:$0xff] %v1133
  %1262 = vst [vmem:[%s3 + $0x3c8] sm:$0xff] %v1134
  %1263 = vst [vmem:[%s3 + $0x3d0] sm:$0xff] %v1135
  %1264 = vst [vmem:[%s3 + $0x3d8] sm:$0xff] %v1136
  %1265 = vst [vmem:[%s3 + $0x3e0] sm:$0xff] %v1137
  %1266 = vst [vmem:[%s3 + $0x3e8] sm:$0xff] %v1138
  %1267 = vst [vmem:[%s3 + $0x3f0] sm:$0xff] %v1139
  %1268 = vst [vmem:[%s3 + $0x3f8] sm:$0xff] %v1140
  // Predicated region
  $region14: #{deep_sim_raw.4} parent=0 // pred_check
    _
  $region15: #{deep_sim_raw.4} parent=0 // pred_check_branch
    %1270 = sbr.rel (0) target = $region17
  $region16: #{deep_sim_raw.4} parent=0 // pred_region
    _
  $region17: #{deep_sim_raw.4} parent=0 // pred_fallthru
    _
  // Predicated region
  $region18: #{deep_sim_raw.4} parent=0 // pred_check
    _
  $region19: #{deep_sim_raw.4} parent=0 // pred_check_branch
    %1272 = sbr.rel (0) target = $region21
  $region20: #{deep_sim_raw.4} parent=0 // pred_region
    _
  $region21: #{deep_sim_raw.4} parent=0 // pred_fallthru
    _

// kernel: deep_sim_raw.5
$region0: #{deep_sim_raw.5}
  #allocation0 [shape = 'u32[]', space=smem, size = 0x4, offset = 0x4, fixed_abs, tag = 'smem constant byte address 0x4 - core index']
  #allocation1 [shape = 'u32[72,128]{1,0:T(1,128)}', space=vmem, size = 0x9000, scoped, tag = 'internal scratch']
  %s0 = inlined_call_operand.vmem [shape: bf16[1024,144], index: 0, kind: input, shape index: {}]
  %s1 = inlined_call_operand.vmem [shape: bf16[144,128], index: 1, kind: input, shape index: {}]
  %s2 = inlined_call_operand.vmem [shape: f32[1,128], index: 2, kind: input, shape index: {}]
  %s3 = inlined_call_operand.vmem [shape: f32[1024,128], index: 3, kind: output, shape index: {}]
  %s4 = sld [smem:[#allocation0]]
  $region22: #{deep_sim_raw.5} parent=0
    _
  %s6 = ssub.s32 1, %s4
  %s7 = scalar_select 0, %s6, %s4
  // Predicated region
  $region2: #{deep_sim_raw.5} parent=0 // pred_check
    _
  $region3: #{deep_sim_raw.5} parent=0 // pred_check_branch
    %9 = sbr.rel (0) target = $region5
  $region4: #{deep_sim_raw.5} parent=0 // pred_region
    _
  $region5: #{deep_sim_raw.5} parent=0 // pred_fallthru
    _
  // Predicated region
  $region6: #{deep_sim_raw.5} parent=0 // pred_check
    _
  $region7: #{deep_sim_raw.5} parent=0 // pred_check_branch
    %11 = sbr.rel (0) target = $region9
  $region8: #{deep_sim_raw.5} parent=0 // pred_region
    _
  $region9: #{deep_sim_raw.5} parent=0 // pred_fallthru
    _
  // Predicated region
  $region10: #{deep_sim_raw.5} parent=0 // pred_check
    _
  $region11: #{deep_sim_raw.5} parent=0 // pred_check_branch
    %13 = sbr.rel (0) target = $region13
  $region12: #{deep_sim_raw.5} parent=0 // pred_region
    _
  $region13: #{deep_sim_raw.5} parent=0 // pred_fallthru
    _
  %v15 = vld [vmem:[%s0] sm:$0xff]
  %v16 = vld [vmem:[%s0 + $0x8] sm:$0xff]
  %v17 = vld [vmem:[%s0 + $0x10] sm:$0xff]
  %v18 = vld [vmem:[%s0 + $0x18] sm:$0xff]
  %v19 = vld [vmem:[%s0 + $0x20] sm:$0xff]
  %v20 = vld [vmem:[%s0 + $0x28] sm:$0xff]
  %v21 = vld [vmem:[%s0 + $0x30] sm:$0xff]
  %v22 = vld [vmem:[%s0 + $0x38] sm:$0xff]
  %v23 = vld [vmem:[%s0 + $0x40] sm:$0xff]
  %v24 = vld [vmem:[%s0 + $0x48] sm:$0xff]
  %v25 = vld [vmem:[%s0 + $0x50] sm:$0xff]
  %v26 = vld [vmem:[%s0 + $0x58] sm:$0xff]
  %v27 = vld [vmem:[%s0 + $0x60] sm:$0xff]
  %v28 = vld [vmem:[%s0 + $0x68] sm:$0xff]
  %v29 = vld [vmem:[%s0 + $0x70] sm:$0xff]
  %v30 = vld [vmem:[%s0 + $0x78] sm:$0xff]
  %v31 = vld [vmem:[%s0 + $0x80] sm:$0xff]
  %v32 = vld [vmem:[%s0 + $0x88] sm:$0xff]
  %v33 = vld [vmem:[%s0 + $0x90] sm:$0xff]
  %v34 = vld [vmem:[%s0 + $0x98] sm:$0xff]
  %v35 = vld [vmem:[%s0 + $0xa0] sm:$0xff]
  %v36 = vld [vmem:[%s0 + $0xa8] sm:$0xff]
  %v37 = vld [vmem:[%s0 + $0xb0] sm:$0xff]
  %v38 = vld [vmem:[%s0 + $0xb8] sm:$0xff]
  %v39 = vld [vmem:[%s0 + $0xc0] sm:$0xff]
  %v40 = vld [vmem:[%s0 + $0xc8] sm:$0xff]
  %v41 = vld [vmem:[%s0 + $0xd0] sm:$0xff]
  %v42 = vld [vmem:[%s0 + $0xd8] sm:$0xff]
  %v43 = vld [vmem:[%s0 + $0xe0] sm:$0xff]
  %v44 = vld [vmem:[%s0 + $0xe8] sm:$0xff]
  %v45 = vld [vmem:[%s0 + $0xf0] sm:$0xff]
  %v46 = vld [vmem:[%s0 + $0xf8] sm:$0xff]
  %v47 = vld [vmem:[%s0 + $0x100] sm:$0xff]
  %v48 = vld [vmem:[%s0 + $0x108] sm:$0xff]
  %v49 = vld [vmem:[%s0 + $0x110] sm:$0xff]
  %v50 = vld [vmem:[%s0 + $0x118] sm:$0xff]
  %v51 = vld [vmem:[%s0 + $0x120] sm:$0xff]
  %v52 = vld [vmem:[%s0 + $0x128] sm:$0xff]
  %v53 = vld [vmem:[%s0 + $0x130] sm:$0xff]
  %v54 = vld [vmem:[%s0 + $0x138] sm:$0xff]
  %v55 = vld [vmem:[%s0 + $0x140] sm:$0xff]
  %v56 = vld [vmem:[%s0 + $0x148] sm:$0xff]
  %v57 = vld [vmem:[%s0 + $0x150] sm:$0xff]
  %v58 = vld [vmem:[%s0 + $0x158] sm:$0xff]
  %v59 = vld [vmem:[%s0 + $0x160] sm:$0xff]
  %v60 = vld [vmem:[%s0 + $0x168] sm:$0xff]
  %v61 = vld [vmem:[%s0 + $0x170] sm:$0xff]
  %v62 = vld [vmem:[%s0 + $0x178] sm:$0xff]
  %v63 = vld [vmem:[%s0 + $0x180] sm:$0xff]
  %v64 = vld [vmem:[%s0 + $0x188] sm:$0xff]
  %v65 = vld [vmem:[%s0 + $0x190] sm:$0xff]
  %v66 = vld [vmem:[%s0 + $0x198] sm:$0xff]
  %v67 = vld [vmem:[%s0 + $0x1a0] sm:$0xff]
  %v68 = vld [vmem:[%s0 + $0x1a8] sm:$0xff]
  %v69 = vld [vmem:[%s0 + $0x1b0] sm:$0xff]
  %v70 = vld [vmem:[%s0 + $0x1b8] sm:$0xff]
  %v71 = vld [vmem:[%s0 + $0x1c0] sm:$0xff]
  %v72 = vld [vmem:[%s0 + $0x1c8] sm:$0xff]
  %v73 = vld [vmem:[%s0 + $0x1d0] sm:$0xff]
  %v74 = vld [vmem:[%s0 + $0x1d8] sm:$0xff]
  %v75 = vld [vmem:[%s0 + $0x1e0] sm:$0xff]
  %v76 = vld [vmem:[%s0 + $0x1e8] sm:$0xff]
  %v77 = vld [vmem:[%s0 + $0x1f0] sm:$0xff]
  %v78 = vld [vmem:[%s0 + $0x1f8] sm:$0xff]
  %v79 = vld [vmem:[%s0 + $0x200] sm:$0xff]
  %v80 = vld [vmem:[%s0 + $0x208] sm:$0xff]
  %v81 = vld [vmem:[%s0 + $0x210] sm:$0xff]
  %v82 = vld [vmem:[%s0 + $0x218] sm:$0xff]
  %v83 = vld [vmem:[%s0 + $0x220] sm:$0xff]
  %v84 = vld [vmem:[%s0 + $0x228] sm:$0xff]
  %v85 = vld [vmem:[%s0 + $0x230] sm:$0xff]
  %v86 = vld [vmem:[%s0 + $0x238] sm:$0xff]
  %v87 = vld [vmem:[%s0 + $0x240] sm:$0xff]
  %v88 = vld [vmem:[%s0 + $0x248] sm:$0xff]
  %v89 = vld [vmem:[%s0 + $0x250] sm:$0xff]
  %v90 = vld [vmem:[%s0 + $0x258] sm:$0xff]
  %v91 = vld [vmem:[%s0 + $0x260] sm:$0xff]
  %v92 = vld [vmem:[%s0 + $0x268] sm:$0xff]
  %v93 = vld [vmem:[%s0 + $0x270] sm:$0xff]
  %v94 = vld [vmem:[%s0 + $0x278] sm:$0xff]
  %v95 = vld [vmem:[%s0 + $0x280] sm:$0xff]
  %v96 = vld [vmem:[%s0 + $0x288] sm:$0xff]
  %v97 = vld [vmem:[%s0 + $0x290] sm:$0xff]
  %v98 = vld [vmem:[%s0 + $0x298] sm:$0xff]
  %v99 = vld [vmem:[%s0 + $0x2a0] sm:$0xff]
  %v100 = vld [vmem:[%s0 + $0x2a8] sm:$0xff]
  %v101 = vld [vmem:[%s0 + $0x2b0] sm:$0xff]
  %v102 = vld [vmem:[%s0 + $0x2b8] sm:$0xff]
  %v103 = vld [vmem:[%s0 + $0x2c0] sm:$0xff]
  %v104 = vld [vmem:[%s0 + $0x2c8] sm:$0xff]
  %v105 = vld [vmem:[%s0 + $0x2d0] sm:$0xff]
  %v106 = vld [vmem:[%s0 + $0x2d8] sm:$0xff]
  %v107 = vld [vmem:[%s0 + $0x2e0] sm:$0xff]
  %v108 = vld [vmem:[%s0 + $0x2e8] sm:$0xff]
  %v109 = vld [vmem:[%s0 + $0x2f0] sm:$0xff]
  %v110 = vld [vmem:[%s0 + $0x2f8] sm:$0xff]
  %v111 = vld [vmem:[%s0 + $0x300] sm:$0xff]
  %v112 = vld [vmem:[%s0 + $0x308] sm:$0xff]
  %v113 = vld [vmem:[%s0 + $0x310] sm:$0xff]
  %v114 = vld [vmem:[%s0 + $0x318] sm:$0xff]
  %v115 = vld [vmem:[%s0 + $0x320] sm:$0xff]
  %v116 = vld [vmem:[%s0 + $0x328] sm:$0xff]
  %v117 = vld [vmem:[%s0 + $0x330] sm:$0xff]
  %v118 = vld [vmem:[%s0 + $0x338] sm:$0xff]
  %v119 = vld [vmem:[%s0 + $0x340] sm:$0xff]
  %v120 = vld [vmem:[%s0 + $0x348] sm:$0xff]
  %v121 = vld [vmem:[%s0 + $0x350] sm:$0xff]
  %v122 = vld [vmem:[%s0 + $0x358] sm:$0xff]
  %v123 = vld [vmem:[%s0 + $0x360] sm:$0xff]
  %v124 = vld [vmem:[%s0 + $0x368] sm:$0xff]
  %v125 = vld [vmem:[%s0 + $0x370] sm:$0xff]
  %v126 = vld [vmem:[%s0 + $0x378] sm:$0xff]
  %v127 = vld [vmem:[%s0 + $0x380] sm:$0xff]
  %v128 = vld [vmem:[%s0 + $0x388] sm:$0xff]
  %v129 = vld [vmem:[%s0 + $0x390] sm:$0xff]
  %v130 = vld [vmem:[%s0 + $0x398] sm:$0xff]
  %v131 = vld [vmem:[%s0 + $0x3a0] sm:$0xff]
  %v132 = vld [vmem:[%s0 + $0x3a8] sm:$0xff]
  %v133 = vld [vmem:[%s0 + $0x3b0] sm:$0xff]
  %v134 = vld [vmem:[%s0 + $0x3b8] sm:$0xff]
  %v135 = vld [vmem:[%s0 + $0x3c0] sm:$0xff]
  %v136 = vld [vmem:[%s0 + $0x3c8] sm:$0xff]
  %v137 = vld [vmem:[%s0 + $0x3d0] sm:$0xff]
  %v138 = vld [vmem:[%s0 + $0x3d8] sm:$0xff]
  %v139 = vld [vmem:[%s0 + $0x3e0] sm:$0xff]
  %v140 = vld [vmem:[%s0 + $0x3e8] sm:$0xff]
  %v141 = vld [vmem:[%s0 + $0x3f0] sm:$0xff]
  %v142 = vld [vmem:[%s0 + $0x3f8] sm:$0xff]
  %v143 = vld [vmem:[%s1] sm:$0xf]
  %v144 = vld [vmem:[%s1 + $0x4] sm:$0xf]
  %v145 = vld [vmem:[%s1 + $0x8] sm:$0xf]
  %v146 = vld [vmem:[%s1 + $0xc] sm:$0xf]
  %v147 = vld [vmem:[%s1 + $0x10] sm:$0xf]
  %v148 = vld [vmem:[%s1 + $0x14] sm:$0xf]
  %v149 = vld [vmem:[%s1 + $0x18] sm:$0xf]
  %v150 = vld [vmem:[%s1 + $0x1c] sm:$0xf]
  %v151 = vld [vmem:[%s1 + $0x20] sm:$0xf]
  %v152 = vld [vmem:[%s1 + $0x24] sm:$0xf]
  %v153 = vld [vmem:[%s1 + $0x28] sm:$0xf]
  %v154 = vld [vmem:[%s1 + $0x2c] sm:$0xf]
  %v155 = vld [vmem:[%s1 + $0x30] sm:$0xf]
  %v156 = vld [vmem:[%s1 + $0x34] sm:$0xf]
  %v157 = vld [vmem:[%s1 + $0x38] sm:$0xf]
  %v158 = vld [vmem:[%s1 + $0x3c] sm:$0xf]
  %v159 = vld [vmem:[%s1 + $0x40] sm:$0xf]
  %v160 = vld [vmem:[%s1 + $0x44] sm:$0xf]
  %v161 = vld [vmem:[%s2] sm:$0x1]
  %v163 = vperm.slane %v161, 0
  %v293 = vunpack.c.l.b16 %v15
  %v294 = vunpack.c.h.b16 %v15
  %v295 = vunpack.c.l.b16 %v16
  %v296 = vunpack.c.h.b16 %v16
  %v297 = vunpack.c.l.b16 %v17
  %v298 = vunpack.c.h.b16 %v17
  %v299 = vunpack.c.l.b16 %v18
  %v300 = vunpack.c.h.b16 %v18
  %v301 = vunpack.c.l.b16 %v19
  %v302 = vunpack.c.h.b16 %v19
  %v303 = vunpack.c.l.b16 %v20
  %v304 = vunpack.c.h.b16 %v20
  %v305 = vunpack.c.l.b16 %v21
  %v306 = vunpack.c.h.b16 %v21
  %v307 = vunpack.c.l.b16 %v22
  %v308 = vunpack.c.h.b16 %v22
  %v309 = vunpack.c.l.b16 %v23
  %v310 = vunpack.c.h.b16 %v23
  %v311 = vunpack.c.l.b16 %v24
  %v312 = vunpack.c.h.b16 %v24
  %v313 = vunpack.c.l.b16 %v25
  %v314 = vunpack.c.h.b16 %v25
  %v315 = vunpack.c.l.b16 %v26
  %v316 = vunpack.c.h.b16 %v26
  %v317 = vunpack.c.l.b16 %v27
  %v318 = vunpack.c.h.b16 %v27
  %v319 = vunpack.c.l.b16 %v28
  %v320 = vunpack.c.h.b16 %v28
  %v321 = vunpack.c.l.b16 %v29
  %v322 = vunpack.c.h.b16 %v29
  %v323 = vunpack.c.l.b16 %v30
  %v324 = vunpack.c.h.b16 %v30
  %v325 = vunpack.c.l.b16 %v31
  %v326 = vunpack.c.h.b16 %v31
  %v327 = vunpack.c.l.b16 %v32
  %v328 = vunpack.c.h.b16 %v32
  %v329 = vunpack.c.l.b16 %v33
  %v330 = vunpack.c.h.b16 %v33
  %v331 = vunpack.c.l.b16 %v34
  %v332 = vunpack.c.h.b16 %v34
  %v333 = vunpack.c.l.b16 %v35
  %v334 = vunpack.c.h.b16 %v35
  %v335 = vunpack.c.l.b16 %v36
  %v336 = vunpack.c.h.b16 %v36
  %v337 = vunpack.c.l.b16 %v37
  %v338 = vunpack.c.h.b16 %v37
  %v339 = vunpack.c.l.b16 %v38
  %v340 = vunpack.c.h.b16 %v38
  %v341 = vunpack.c.l.b16 %v39
  %v342 = vunpack.c.h.b16 %v39
  %v343 = vunpack.c.l.b16 %v40
  %v344 = vunpack.c.h.b16 %v40
  %v345 = vunpack.c.l.b16 %v41
  %v346 = vunpack.c.h.b16 %v41
  %v347 = vunpack.c.l.b16 %v42
  %v348 = vunpack.c.h.b16 %v42
  %v349 = vunpack.c.l.b16 %v43
  %v350 = vunpack.c.h.b16 %v43
  %v351 = vunpack.c.l.b16 %v44
  %v352 = vunpack.c.h.b16 %v44
  %v353 = vunpack.c.l.b16 %v45
  %v354 = vunpack.c.h.b16 %v45
  %v355 = vunpack.c.l.b16 %v46
  %v356 = vunpack.c.h.b16 %v46
  %v357 = vunpack.c.l.b16 %v47
  %v358 = vunpack.c.h.b16 %v47
  %v359 = vunpack.c.l.b16 %v48
  %v360 = vunpack.c.h.b16 %v48
  %v361 = vunpack.c.l.b16 %v49
  %v362 = vunpack.c.h.b16 %v49
  %v363 = vunpack.c.l.b16 %v50
  %v364 = vunpack.c.h.b16 %v50
  %v365 = vunpack.c.l.b16 %v51
  %v366 = vunpack.c.h.b16 %v51
  %v367 = vunpack.c.l.b16 %v52
  %v368 = vunpack.c.h.b16 %v52
  %v369 = vunpack.c.l.b16 %v53
  %v370 = vunpack.c.h.b16 %v53
  %v371 = vunpack.c.l.b16 %v54
  %v372 = vunpack.c.h.b16 %v54
  %v373 = vunpack.c.l.b16 %v55
  %v374 = vunpack.c.h.b16 %v55
  %v375 = vunpack.c.l.b16 %v56
  %v376 = vunpack.c.h.b16 %v56
  %v377 = vunpack.c.l.b16 %v57
  %v378 = vunpack.c.h.b16 %v57
  %v379 = vunpack.c.l.b16 %v58
  %v380 = vunpack.c.h.b16 %v58
  %v381 = vunpack.c.l.b16 %v59
  %v382 = vunpack.c.h.b16 %v59
  %v383 = vunpack.c.l.b16 %v60
  %v384 = vunpack.c.h.b16 %v60
  %v385 = vunpack.c.l.b16 %v61
  %v386 = vunpack.c.h.b16 %v61
  %v387 = vunpack.c.l.b16 %v62
  %v388 = vunpack.c.h.b16 %v62
  %v389 = vunpack.c.l.b16 %v63
  %v390 = vunpack.c.h.b16 %v63
  %v391 = vunpack.c.l.b16 %v64
  %v392 = vunpack.c.h.b16 %v64
  %v393 = vunpack.c.l.b16 %v65
  %v394 = vunpack.c.h.b16 %v65
  %v395 = vunpack.c.l.b16 %v66
  %v396 = vunpack.c.h.b16 %v66
  %v397 = vunpack.c.l.b16 %v67
  %v398 = vunpack.c.h.b16 %v67
  %v399 = vunpack.c.l.b16 %v68
  %v400 = vunpack.c.h.b16 %v68
  %v401 = vunpack.c.l.b16 %v69
  %v402 = vunpack.c.h.b16 %v69
  %v403 = vunpack.c.l.b16 %v70
  %v404 = vunpack.c.h.b16 %v70
  %v405 = vunpack.c.l.b16 %v71
  %v406 = vunpack.c.h.b16 %v71
  %v407 = vunpack.c.l.b16 %v72
  %v408 = vunpack.c.h.b16 %v72
  %v409 = vunpack.c.l.b16 %v73
  %v410 = vunpack.c.h.b16 %v73
  %v411 = vunpack.c.l.b16 %v74
  %v412 = vunpack.c.h.b16 %v74
  %v413 = vunpack.c.l.b16 %v75
  %v414 = vunpack.c.h.b16 %v75
  %v415 = vunpack.c.l.b16 %v76
  %v416 = vunpack.c.h.b16 %v76
  %v417 = vunpack.c.l.b16 %v77
  %v418 = vunpack.c.h.b16 %v77
  %v419 = vunpack.c.l.b16 %v78
  %v420 = vunpack.c.h.b16 %v78
  %v421 = vunpack.c.l.b16 %v79
  %v422 = vunpack.c.h.b16 %v79
  %v423 = vunpack.c.l.b16 %v80
  %v424 = vunpack.c.h.b16 %v80
  %v425 = vunpack.c.l.b16 %v81
  %v426 = vunpack.c.h.b16 %v81
  %v427 = vunpack.c.l.b16 %v82
  %v428 = vunpack.c.h.b16 %v82
  %v429 = vunpack.c.l.b16 %v83
  %v430 = vunpack.c.h.b16 %v83
  %v431 = vunpack.c.l.b16 %v84
  %v432 = vunpack.c.h.b16 %v84
  %v433 = vunpack.c.l.b16 %v85
  %v434 = vunpack.c.h.b16 %v85
  %v435 = vunpack.c.l.b16 %v86
  %v436 = vunpack.c.h.b16 %v86
  %v437 = vunpack.c.l.b16 %v87
  %v438 = vunpack.c.h.b16 %v87
  %v439 = vunpack.c.l.b16 %v88
  %v440 = vunpack.c.h.b16 %v88
  %v441 = vunpack.c.l.b16 %v89
  %v442 = vunpack.c.h.b16 %v89
  %v443 = vunpack.c.l.b16 %v90
  %v444 = vunpack.c.h.b16 %v90
  %v445 = vunpack.c.l.b16 %v91
  %v446 = vunpack.c.h.b16 %v91
  %v447 = vunpack.c.l.b16 %v92
  %v448 = vunpack.c.h.b16 %v92
  %v449 = vunpack.c.l.b16 %v93
  %v450 = vunpack.c.h.b16 %v93
  %v451 = vunpack.c.l.b16 %v94
  %v452 = vunpack.c.h.b16 %v94
  %v453 = vunpack.c.l.b16 %v95
  %v454 = vunpack.c.h.b16 %v95
  %v455 = vunpack.c.l.b16 %v96
  %v456 = vunpack.c.h.b16 %v96
  %v457 = vunpack.c.l.b16 %v97
  %v458 = vunpack.c.h.b16 %v97
  %v459 = vunpack.c.l.b16 %v98
  %v460 = vunpack.c.h.b16 %v98
  %v461 = vunpack.c.l.b16 %v99
  %v462 = vunpack.c.h.b16 %v99
  %v463 = vunpack.c.l.b16 %v100
  %v464 = vunpack.c.h.b16 %v100
  %v465 = vunpack.c.l.b16 %v101
  %v466 = vunpack.c.h.b16 %v101
  %v467 = vunpack.c.l.b16 %v102
  %v468 = vunpack.c.h.b16 %v102
  %v469 = vunpack.c.l.b16 %v103
  %v470 = vunpack.c.h.b16 %v103
  %v471 = vunpack.c.l.b16 %v104
  %v472 = vunpack.c.h.b16 %v104
  %v473 = vunpack.c.l.b16 %v105
  %v474 = vunpack.c.h.b16 %v105
  %v475 = vunpack.c.l.b16 %v106
  %v476 = vunpack.c.h.b16 %v106
  %v477 = vunpack.c.l.b16 %v107
  %v478 = vunpack.c.h.b16 %v107
  %v479 = vunpack.c.l.b16 %v108
  %v480 = vunpack.c.h.b16 %v108
  %v481 = vunpack.c.l.b16 %v109
  %v482 = vunpack.c.h.b16 %v109
  %v483 = vunpack.c.l.b16 %v110
  %v484 = vunpack.c.h.b16 %v110
  %v485 = vunpack.c.l.b16 %v111
  %v486 = vunpack.c.h.b16 %v111
  %v487 = vunpack.c.l.b16 %v112
  %v488 = vunpack.c.h.b16 %v112
  %v489 = vunpack.c.l.b16 %v113
  %v490 = vunpack.c.h.b16 %v113
  %v491 = vunpack.c.l.b16 %v114
  %v492 = vunpack.c.h.b16 %v114
  %v493 = vunpack.c.l.b16 %v115
  %v494 = vunpack.c.h.b16 %v115
  %v495 = vunpack.c.l.b16 %v116
  %v496 = vunpack.c.h.b16 %v116
  %v497 = vunpack.c.l.b16 %v117
  %v498 = vunpack.c.h.b16 %v117
  %v499 = vunpack.c.l.b16 %v118
  %v500 = vunpack.c.h.b16 %v118
  %v501 = vunpack.c.l.b16 %v119
  %v502 = vunpack.c.h.b16 %v119
  %v503 = vunpack.c.l.b16 %v120
  %v504 = vunpack.c.h.b16 %v120
  %v505 = vunpack.c.l.b16 %v121
  %v506 = vunpack.c.h.b16 %v121
  %v507 = vunpack.c.l.b16 %v122
  %v508 = vunpack.c.h.b16 %v122
  %v509 = vunpack.c.l.b16 %v123
  %v510 = vunpack.c.h.b16 %v123
  %v511 = vunpack.c.l.b16 %v124
  %v512 = vunpack.c.h.b16 %v124
  %v513 = vunpack.c.l.b16 %v125
  %v514 = vunpack.c.h.b16 %v125
  %v515 = vunpack.c.l.b16 %v126
  %v516 = vunpack.c.h.b16 %v126
  %v517 = vunpack.c.l.b16 %v127
  %v518 = vunpack.c.h.b16 %v127
  %v519 = vunpack.c.l.b16 %v128
  %v520 = vunpack.c.h.b16 %v128
  %v521 = vunpack.c.l.b16 %v129
  %v522 = vunpack.c.h.b16 %v129
  %v523 = vunpack.c.l.b16 %v130
  %v524 = vunpack.c.h.b16 %v130
  %v525 = vunpack.c.l.b16 %v131
  %v526 = vunpack.c.h.b16 %v131
  %v527 = vunpack.c.l.b16 %v132
  %v528 = vunpack.c.h.b16 %v132
  %v529 = vunpack.c.l.b16 %v133
  %v530 = vunpack.c.h.b16 %v133
  %v531 = vunpack.c.l.b16 %v134
  %v532 = vunpack.c.h.b16 %v134
  %v533 = vunpack.c.l.b16 %v135
  %v534 = vunpack.c.h.b16 %v135
  %v535 = vunpack.c.l.b16 %v136
  %v536 = vunpack.c.h.b16 %v136
  %v537 = vunpack.c.l.b16 %v137
  %v538 = vunpack.c.h.b16 %v137
  %v539 = vunpack.c.l.b16 %v138
  %v540 = vunpack.c.h.b16 %v138
  %v541 = vunpack.c.l.b16 %v139
  %v542 = vunpack.c.h.b16 %v139
  %v543 = vunpack.c.l.b16 %v140
  %v544 = vunpack.c.h.b16 %v140
  %v545 = vunpack.c.l.b16 %v141
  %v546 = vunpack.c.h.b16 %v141
  %v547 = vunpack.c.l.b16 %v142
  %v548 = vunpack.c.h.b16 %v142
  %v549 = vpack.c.b16 %v295, %v293
  %v550 = vpack.c.b16 %v296, %v294
  %v551 = vpack.c.b16 %v299, %v297
  %v552 = vpack.c.b16 %v300, %v298
  %v553 = vpack.c.b16 %v303, %v301
  %v554 = vpack.c.b16 %v304, %v302
  %v555 = vpack.c.b16 %v307, %v305
  %v556 = vpack.c.b16 %v308, %v306
  %v557 = vpack.c.b16 %v311, %v309
  %v558 = vpack.c.b16 %v312, %v310
  %v559 = vpack.c.b16 %v315, %v313
  %v560 = vpack.c.b16 %v316, %v314
  %v561 = vpack.c.b16 %v319, %v317
  %v562 = vpack.c.b16 %v320, %v318
  %v563 = vpack.c.b16 %v323, %v321
  %v564 = vpack.c.b16 %v324, %v322
  %v565 = vpack.c.b16 %v327, %v325
  %v566 = vpack.c.b16 %v328, %v326
  %v567 = vpack.c.b16 %v331, %v329
  %v568 = vpack.c.b16 %v332, %v330
  %v569 = vpack.c.b16 %v335, %v333
  %v570 = vpack.c.b16 %v336, %v334
  %v571 = vpack.c.b16 %v339, %v337
  %v572 = vpack.c.b16 %v340, %v338
  %v573 = vpack.c.b16 %v343, %v341
  %v574 = vpack.c.b16 %v344, %v342
  %v575 = vpack.c.b16 %v347, %v345
  %v576 = vpack.c.b16 %v348, %v346
  %v577 = vpack.c.b16 %v351, %v349
  %v578 = vpack.c.b16 %v352, %v350
  %v579 = vpack.c.b16 %v355, %v353
  %v580 = vpack.c.b16 %v356, %v354
  %v581 = vpack.c.b16 %v359, %v357
  %v582 = vpack.c.b16 %v360, %v358
  %v583 = vpack.c.b16 %v363, %v361
  %v584 = vpack.c.b16 %v364, %v362
  %v585 = vpack.c.b16 %v367, %v365
  %v586 = vpack.c.b16 %v368, %v366
  %v587 = vpack.c.b16 %v371, %v369
  %v588 = vpack.c.b16 %v372, %v370
  %v589 = vpack.c.b16 %v375, %v373
  %v590 = vpack.c.b16 %v376, %v374
  %v591 = vpack.c.b16 %v379, %v377
  %v592 = vpack.c.b16 %v380, %v378
  %v593 = vpack.c.b16 %v383, %v381
  %v594 = vpack.c.b16 %v384, %v382
  %v595 = vpack.c.b16 %v387, %v385
  %v596 = vpack.c.b16 %v388, %v386
  %v597 = vpack.c.b16 %v391, %v389
  %v598 = vpack.c.b16 %v392, %v390
  %v599 = vpack.c.b16 %v395, %v393
  %v600 = vpack.c.b16 %v396, %v394
  %v601 = vpack.c.b16 %v399, %v397
  %v602 = vpack.c.b16 %v400, %v398
  %v603 = vpack.c.b16 %v403, %v401
  %v604 = vpack.c.b16 %v404, %v402
  %v605 = vpack.c.b16 %v407, %v405
  %v606 = vpack.c.b16 %v408, %v406
  %v607 = vpack.c.b16 %v411, %v409
  %v608 = vpack.c.b16 %v412, %v410
  %v609 = vpack.c.b16 %v415, %v413
  %v610 = vpack.c.b16 %v416, %v414
  %v611 = vpack.c.b16 %v419, %v417
  %v612 = vpack.c.b16 %v420, %v418
  %v613 = vpack.c.b16 %v423, %v421
  %v614 = vpack.c.b16 %v424, %v422
  %v615 = vpack.c.b16 %v427, %v425
  %v616 = vpack.c.b16 %v428, %v426
  %v617 = vpack.c.b16 %v431, %v429
  %v618 = vpack.c.b16 %v432, %v430
  %v619 = vpack.c.b16 %v435, %v433
  %v620 = vpack.c.b16 %v436, %v434
  %v621 = vpack.c.b16 %v439, %v437
  %v622 = vpack.c.b16 %v440, %v438
  %v623 = vpack.c.b16 %v443, %v441
  %v624 = vpack.c.b16 %v444, %v442
  %v625 = vpack.c.b16 %v447, %v445
  %v626 = vpack.c.b16 %v448, %v446
  %v627 = vpack.c.b16 %v451, %v449
  %v628 = vpack.c.b16 %v452, %v450
  %v629 = vpack.c.b16 %v455, %v453
  %v630 = vpack.c.b16 %v456, %v454
  %v631 = vpack.c.b16 %v459, %v457
  %v632 = vpack.c.b16 %v460, %v458
  %v633 = vpack.c.b16 %v463, %v461
  %v634 = vpack.c.b16 %v464, %v462
  %v635 = vpack.c.b16 %v467, %v465
  %v636 = vpack.c.b16 %v468, %v466
  %v637 = vpack.c.b16 %v471, %v469
  %v638 = vpack.c.b16 %v472, %v470
  %v639 = vpack.c.b16 %v475, %v473
  %v640 = vpack.c.b16 %v476, %v474
  %v641 = vpack.c.b16 %v479, %v477
  %v642 = vpack.c.b16 %v480, %v478
  %v643 = vpack.c.b16 %v483, %v481
  %v644 = vpack.c.b16 %v484, %v482
  %v645 = vpack.c.b16 %v487, %v485
  %v646 = vpack.c.b16 %v488, %v486
  %v647 = vpack.c.b16 %v491, %v489
  %v648 = vpack.c.b16 %v492, %v490
  %v649 = vpack.c.b16 %v495, %v493
  %v650 = vpack.c.b16 %v496, %v494
  %v651 = vpack.c.b16 %v499, %v497
  %v652 = vpack.c.b16 %v500, %v498
  %v653 = vpack.c.b16 %v503, %v501
  %v654 = vpack.c.b16 %v504, %v502
  %v655 = vpack.c.b16 %v507, %v505
  %v656 = vpack.c.b16 %v508, %v506
  %v657 = vpack.c.b16 %v511, %v509
  %v658 = vpack.c.b16 %v512, %v510
  %v659 = vpack.c.b16 %v515, %v513
  %v660 = vpack.c.b16 %v516, %v514
  %v661 = vpack.c.b16 %v519, %v517
  %v662 = vpack.c.b16 %v520, %v518
  %v663 = vpack.c.b16 %v523, %v521
  %v664 = vpack.c.b16 %v524, %v522
  %v665 = vpack.c.b16 %v527, %v525
  %v666 = vpack.c.b16 %v528, %v526
  %v667 = vpack.c.b16 %v531, %v529
  %v668 = vpack.c.b16 %v532, %v530
  %v669 = vpack.c.b16 %v535, %v533
  %v670 = vpack.c.b16 %v536, %v534
  %v671 = vpack.c.b16 %v539, %v537
  %v672 = vpack.c.b16 %v540, %v538
  %v673 = vpack.c.b16 %v543, %v541
  %v674 = vpack.c.b16 %v544, %v542
  %v675 = vpack.c.b16 %v547, %v545
  %v676 = vpack.c.b16 %v548, %v546
  %v759 = vunpack.c.l.b16 %v143
  %v760 = vunpack.c.l.b16 %v144
  %v761 = vunpack.c.l.b16 %v145
  %v762 = vunpack.c.l.b16 %v146
  %v763 = vunpack.c.l.b16 %v147
  %v764 = vunpack.c.l.b16 %v148
  %v765 = vunpack.c.l.b16 %v149
  %v766 = vunpack.c.l.b16 %v150
  %v767 = vunpack.c.l.b16 %v151
  %v768 = vunpack.c.l.b16 %v152
  %v769 = vunpack.c.l.b16 %v153
  %v770 = vunpack.c.l.b16 %v154
  %v771 = vunpack.c.l.b16 %v155
  %v772 = vunpack.c.l.b16 %v156
  %v773 = vunpack.c.l.b16 %v157
  %v774 = vunpack.c.l.b16 %v158
  %v775 = vunpack.c.l.b16 %v159
  %v776 = vunpack.c.l.b16 %v160
  %v777 = vpack.c.b16 %v760, %v759
  %v778 = vpack.c.b16 %v762, %v761
  %v779 = vpack.c.b16 %v764, %v763
  %v780 = vpack.c.b16 %v766, %v765
  %v781 = vpack.c.b16 %v768, %v767
  %v782 = vpack.c.b16 %v770, %v769
  %v783 = vpack.c.b16 %v772, %v771
  %v784 = vpack.c.b16 %v774, %v773
  %v785 = vpack.c.b16 %v776, %v775
  %vm795 = vcmask 130048
  %v797 = vsel %vm795, %v550, 0
  %v800 = vsel %vm795, %v552, 0
  %v803 = vsel %vm795, %v554, 0
  %v806 = vsel %vm795, %v556, 0
  %v809 = vsel %vm795, %v558, 0
  %v812 = vsel %vm795, %v560, 0
  %v815 = vsel %vm795, %v562, 0
  %v818 = vsel %vm795, %v564, 0
  %v821 = vsel %vm795, %v566, 0
  %v824 = vsel %vm795, %v568, 0
  %v827 = vsel %vm795, %v570, 0
  %v830 = vsel %vm795, %v572, 0
  %v833 = vsel %vm795, %v574, 0
  %v836 = vsel %vm795, %v576, 0
  %v839 = vsel %vm795, %v578, 0
  %v842 = vsel %vm795, %v580, 0
  %v845 = vsel %vm795, %v582, 0
  %v848 = vsel %vm795, %v584, 0
  %v851 = vsel %vm795, %v586, 0
  %v854 = vsel %vm795, %v588, 0
  %v857 = vsel %vm795, %v590, 0
  %v860 = vsel %vm795, %v592, 0
  %v863 = vsel %vm795, %v594, 0
  %v866 = vsel %vm795, %v596, 0
  %v869 = vsel %vm795, %v598, 0
  %v872 = vsel %vm795, %v600, 0
  %v875 = vsel %vm795, %v602, 0
  %v878 = vsel %vm795, %v604, 0
  %v881 = vsel %vm795, %v606, 0
  %v884 = vsel %vm795, %v608, 0
  %v887 = vsel %vm795, %v610, 0
  %v890 = vsel %vm795, %v612, 0
  %v893 = vsel %vm795, %v614, 0
  %v896 = vsel %vm795, %v616, 0
  %v899 = vsel %vm795, %v618, 0
  %v902 = vsel %vm795, %v620, 0
  %v905 = vsel %vm795, %v622, 0
  %v908 = vsel %vm795, %v624, 0
  %v911 = vsel %vm795, %v626, 0
  %v914 = vsel %vm795, %v628, 0
  %v917 = vsel %vm795, %v630, 0
  %v920 = vsel %vm795, %v632, 0
  %v923 = vsel %vm795, %v634, 0
  %v926 = vsel %vm795, %v636, 0
  %v929 = vsel %vm795, %v638, 0
  %v932 = vsel %vm795, %v640, 0
  %v935 = vsel %vm795, %v642, 0
  %v938 = vsel %vm795, %v644, 0
  %v941 = vsel %vm795, %v646, 0
  %v944 = vsel %vm795, %v648, 0
  %v947 = vsel %vm795, %v650, 0
  %v950 = vsel %vm795, %v652, 0
  %v953 = vsel %vm795, %v654, 0
  %v956 = vsel %vm795, %v656, 0
  %v959 = vsel %vm795, %v658, 0
  %v962 = vsel %vm795, %v660, 0
  %v965 = vsel %vm795, %v662, 0
  %v968 = vsel %vm795, %v664, 0
  %v971 = vsel %vm795, %v666, 0
  %v974 = vsel %vm795, %v668, 0
  %v977 = vsel %vm795, %v670, 0
  %v980 = vsel %vm795, %v672, 0
  %v983 = vsel %vm795, %v674, 0
  %v986 = vsel %vm795, %v676, 0
  %988 = vmatpush.bf16.msra.mxu0 %v784
  %989 = vmatpush.bf16.msra.mxu0 %v783
  %990 = vmatpush.bf16.msra.mxu0 %v782
  %991 = vmatpush.bf16.msra.mxu0 %v781
  %992 = vmatpush.bf16.msra.mxu0 %v780
  %993 = vmatpush.bf16.msra.mxu0 %v779
  %994 = vmatpush.bf16.msra.mxu0 %v778
  %995 = vmatpush.bf16.msra.mxu0 %v777
  %996 = vmatmul.bf16.gmra.mxu0 %v549
  %v997 = vpop.f32.mrf.mxu0
  %v998 = vadd.f32 %v163, %v997
  %v999 = vpop.f32.mrf.mxu0
  %v1000 = vadd.f32 %v163, %v999
  %1001 = vmatmul.bf16.gmra.mxu0 %v551
  %v1002 = vpop.f32.mrf.mxu0
  %v1003 = vadd.f32 %v163, %v1002
  %v1004 = vpop.f32.mrf.mxu0
  %v1005 = vadd.f32 %v163, %v1004
  %1006 = vmatmul.bf16.gmra.mxu0 %v553
  %v1007 = vpop.f32.mrf.mxu0
  %v1008 = vadd.f32 %v163, %v1007
  %v1009 = vpop.f32.mrf.mxu0
  %v1010 = vadd.f32 %v163, %v1009
  %1011 = vmatmul.bf16.gmra.mxu0 %v555
  %v1012 = vpop.f32.mrf.mxu0
  %v1013 = vadd.f32 %v163, %v1012
  %v1014 = vpop.f32.mrf.mxu0
  %v1015 = vadd.f32 %v163, %v1014
  %1016 = vmatmul.bf16.gmra.mxu0 %v557
  %v1017 = vpop.f32.mrf.mxu0
  %v1018 = vadd.f32 %v163, %v1017
  %v1019 = vpop.f32.mrf.mxu0
  %v1020 = vadd.f32 %v163, %v1019
  %1021 = vmatmul.bf16.gmra.mxu0 %v559
  %v1022 = vpop.f32.mrf.mxu0
  %v1023 = vadd.f32 %v163, %v1022
  %v1024 = vpop.f32.mrf.mxu0
  %v1025 = vadd.f32 %v163, %v1024
  %1026 = vmatmul.bf16.gmra.mxu0 %v561
  %v1027 = vpop.f32.mrf.mxu0
  %v1028 = vadd.f32 %v163, %v1027
  %v1029 = vpop.f32.mrf.mxu0
  %v1030 = vadd.f32 %v163, %v1029
  %1031 = vmatmul.bf16.gmra.mxu0 %v563
  %v1032 = vpop.f32.mrf.mxu0
  %v1033 = vadd.f32 %v163, %v1032
  %v1034 = vpop.f32.mrf.mxu0
  %v1035 = vadd.f32 %v163, %v1034
  %1036 = vmatmul.bf16.gmra.mxu0 %v565
  %v1037 = vpop.f32.mrf.mxu0
  %v1038 = vadd.f32 %v163, %v1037
  %v1039 = vpop.f32.mrf.mxu0
  %v1040 = vadd.f32 %v163, %v1039
  %1041 = vmatmul.bf16.gmra.mxu0 %v567
  %v1042 = vpop.f32.mrf.mxu0
  %v1043 = vadd.f32 %v163, %v1042
  %v1044 = vpop.f32.mrf.mxu0
  %v1045 = vadd.f32 %v163, %v1044
  %1046 = vmatmul.bf16.gmra.mxu0 %v569
  %v1047 = vpop.f32.mrf.mxu0
  %v1048 = vadd.f32 %v163, %v1047
  %v1049 = vpop.f32.mrf.mxu0
  %v1050 = vadd.f32 %v163, %v1049
  %1051 = vmatmul.bf16.gmra.mxu0 %v571
  %v1052 = vpop.f32.mrf.mxu0
  %v1053 = vadd.f32 %v163, %v1052
  %v1054 = vpop.f32.mrf.mxu0
  %v1055 = vadd.f32 %v163, %v1054
  %1056 = vmatmul.bf16.gmra.mxu0 %v573
  %v1057 = vpop.f32.mrf.mxu0
  %v1058 = vadd.f32 %v163, %v1057
  %v1059 = vpop.f32.mrf.mxu0
  %v1060 = vadd.f32 %v163, %v1059
  %1061 = vmatmul.bf16.gmra.mxu0 %v575
  %v1062 = vpop.f32.mrf.mxu0
  %v1063 = vadd.f32 %v163, %v1062
  %v1064 = vpop.f32.mrf.mxu0
  %v1065 = vadd.f32 %v163, %v1064
  %1066 = vmatmul.bf16.gmra.mxu0 %v577
  %v1067 = vpop.f32.mrf.mxu0
  %v1068 = vadd.f32 %v163, %v1067
  %v1069 = vpop.f32.mrf.mxu0
  %v1070 = vadd.f32 %v163, %v1069
  %1071 = vmatmul.bf16.gmra.mxu0 %v579
  %v1072 = vpop.f32.mrf.mxu0
  %v1073 = vadd.f32 %v163, %v1072
  %v1074 = vpop.f32.mrf.mxu0
  %v1075 = vadd.f32 %v163, %v1074
  %1076 = vmatmul.bf16.gmra.mxu0 %v581
  %v1077 = vpop.f32.mrf.mxu0
  %v1078 = vadd.f32 %v163, %v1077
  %v1079 = vpop.f32.mrf.mxu0
  %v1080 = vadd.f32 %v163, %v1079
  %1081 = vmatmul.bf16.gmra.mxu0 %v583
  %v1082 = vpop.f32.mrf.mxu0
  %v1083 = vadd.f32 %v163, %v1082
  %v1084 = vpop.f32.mrf.mxu0
  %v1085 = vadd.f32 %v163, %v1084
  %1086 = vmatmul.bf16.gmra.mxu0 %v585
  %v1087 = vpop.f32.mrf.mxu0
  %v1088 = vadd.f32 %v163, %v1087
  %v1089 = vpop.f32.mrf.mxu0
  %v1090 = vadd.f32 %v163, %v1089
  %1091 = vmatmul.bf16.gmra.mxu0 %v587
  %v1092 = vpop.f32.mrf.mxu0
  %v1093 = vadd.f32 %v163, %v1092
  %v1094 = vpop.f32.mrf.mxu0
  %v1095 = vadd.f32 %v163, %v1094
  %1096 = vmatmul.bf16.gmra.mxu0 %v589
  %v1097 = vpop.f32.mrf.mxu0
  %v1098 = vadd.f32 %v163, %v1097
  %v1099 = vpop.f32.mrf.mxu0
  %v1100 = vadd.f32 %v163, %v1099
  %1101 = vmatmul.bf16.gmra.mxu0 %v591
  %v1102 = vpop.f32.mrf.mxu0
  %v1103 = vadd.f32 %v163, %v1102
  %v1104 = vpop.f32.mrf.mxu0
  %v1105 = vadd.f32 %v163, %v1104
  %1106 = vmatmul.bf16.gmra.mxu0 %v593
  %v1107 = vpop.f32.mrf.mxu0
  %v1108 = vadd.f32 %v163, %v1107
  %v1109 = vpop.f32.mrf.mxu0
  %v1110 = vadd.f32 %v163, %v1109
  %1111 = vmatmul.bf16.gmra.mxu0 %v595
  %v1112 = vpop.f32.mrf.mxu0
  %v1113 = vadd.f32 %v163, %v1112
  %v1114 = vpop.f32.mrf.mxu0
  %v1115 = vadd.f32 %v163, %v1114
  %1116 = vmatmul.bf16.gmra.mxu0 %v597
  %v1117 = vpop.f32.mrf.mxu0
  %v1118 = vadd.f32 %v163, %v1117
  %v1119 = vpop.f32.mrf.mxu0
  %v1120 = vadd.f32 %v163, %v1119
  %1121 = vmatmul.bf16.gmra.mxu0 %v599
  %v1122 = vpop.f32.mrf.mxu0
  %v1123 = vadd.f32 %v163, %v1122
  %v1124 = vpop.f32.mrf.mxu0
  %v1125 = vadd.f32 %v163, %v1124
  %1126 = vmatmul.bf16.gmra.mxu0 %v601
  %v1127 = vpop.f32.mrf.mxu0
  %v1128 = vadd.f32 %v163, %v1127
  %v1129 = vpop.f32.mrf.mxu0
  %v1130 = vadd.f32 %v163, %v1129
  %1131 = vmatmul.bf16.gmra.mxu0 %v603
  %v1132 = vpop.f32.mrf.mxu0
  %v1133 = vadd.f32 %v163, %v1132
  %v1134 = vpop.f32.mrf.mxu0
  %v1135 = vadd.f32 %v163, %v1134
  %1136 = vmatmul.bf16.gmra.mxu0 %v605
  %v1137 = vpop.f32.mrf.mxu0
  %v1138 = vadd.f32 %v163, %v1137
  %v1139 = vpop.f32.mrf.mxu0
  %v1140 = vadd.f32 %v163, %v1139
  %1141 = vmatmul.bf16.gmra.mxu0 %v607
  %v1142 = vpop.f32.mrf.mxu0
  %v1143 = vadd.f32 %v163, %v1142
  %v1144 = vpop.f32.mrf.mxu0
  %v1145 = vadd.f32 %v163, %v1144
  %1146 = vmatmul.bf16.gmra.mxu0 %v609
  %v1147 = vpop.f32.mrf.mxu0
  %v1148 = vadd.f32 %v163, %v1147
  %v1149 = vpop.f32.mrf.mxu0
  %v1150 = vadd.f32 %v163, %v1149
  %1151 = vmatmul.bf16.gmra.mxu0 %v611
  %v1152 = vpop.f32.mrf.mxu0
  %v1153 = vadd.f32 %v163, %v1152
  %v1154 = vpop.f32.mrf.mxu0
  %v1155 = vadd.f32 %v163, %v1154
  %1156 = vmatmul.bf16.gmra.mxu0 %v613
  %v1157 = vpop.f32.mrf.mxu0
  %v1158 = vadd.f32 %v163, %v1157
  %v1159 = vpop.f32.mrf.mxu0
  %v1160 = vadd.f32 %v163, %v1159
  %1161 = vmatmul.bf16.gmra.mxu0 %v615
  %v1162 = vpop.f32.mrf.mxu0
  %v1163 = vadd.f32 %v163, %v1162
  %v1164 = vpop.f32.mrf.mxu0
  %v1165 = vadd.f32 %v163, %v1164
  %1166 = vmatmul.bf16.gmra.mxu0 %v617
  %v1167 = vpop.f32.mrf.mxu0
  %v1168 = vadd.f32 %v163, %v1167
  %v1169 = vpop.f32.mrf.mxu0
  %v1170 = vadd.f32 %v163, %v1169
  %1171 = vmatmul.bf16.gmra.mxu0 %v619
  %v1172 = vpop.f32.mrf.mxu0
  %v1173 = vadd.f32 %v163, %v1172
  %v1174 = vpop.f32.mrf.mxu0
  %v1175 = vadd.f32 %v163, %v1174
  %1176 = vmatmul.bf16.gmra.mxu0 %v621
  %v1177 = vpop.f32.mrf.mxu0
  %v1178 = vadd.f32 %v163, %v1177
  %v1179 = vpop.f32.mrf.mxu0
  %v1180 = vadd.f32 %v163, %v1179
  %1181 = vmatmul.bf16.gmra.mxu0 %v623
  %v1182 = vpop.f32.mrf.mxu0
  %v1183 = vadd.f32 %v163, %v1182
  %v1184 = vpop.f32.mrf.mxu0
  %v1185 = vadd.f32 %v163, %v1184
  %1186 = vmatmul.bf16.gmra.mxu0 %v625
  %v1187 = vpop.f32.mrf.mxu0
  %v1188 = vadd.f32 %v163, %v1187
  %v1189 = vpop.f32.mrf.mxu0
  %v1190 = vadd.f32 %v163, %v1189
  %1191 = vmatmul.bf16.gmra.mxu0 %v627
  %v1192 = vpop.f32.mrf.mxu0
  %v1193 = vadd.f32 %v163, %v1192
  %v1194 = vpop.f32.mrf.mxu0
  %v1195 = vadd.f32 %v163, %v1194
  %1196 = vmatmul.bf16.gmra.mxu0 %v629
  %v1197 = vpop.f32.mrf.mxu0
  %v1198 = vadd.f32 %v163, %v1197
  %v1199 = vpop.f32.mrf.mxu0
  %v1200 = vadd.f32 %v163, %v1199
  %1201 = vmatmul.bf16.gmra.mxu0 %v631
  %v1202 = vpop.f32.mrf.mxu0
  %v1203 = vadd.f32 %v163, %v1202
  %v1204 = vpop.f32.mrf.mxu0
  %v1205 = vadd.f32 %v163, %v1204
  %1206 = vmatmul.bf16.gmra.mxu0 %v633
  %v1207 = vpop.f32.mrf.mxu0
  %v1208 = vadd.f32 %v163, %v1207
  %v1209 = vpop.f32.mrf.mxu0
  %v1210 = vadd.f32 %v163, %v1209
  %1211 = vmatmul.bf16.gmra.mxu0 %v635
  %v1212 = vpop.f32.mrf.mxu0
  %v1213 = vadd.f32 %v163, %v1212
  %v1214 = vpop.f32.mrf.mxu0
  %v1215 = vadd.f32 %v163, %v1214
  %1216 = vmatmul.bf16.gmra.mxu0 %v637
  %v1217 = vpop.f32.mrf.mxu0
  %v1218 = vadd.f32 %v163, %v1217
  %v1219 = vpop.f32.mrf.mxu0
  %v1220 = vadd.f32 %v163, %v1219
  %1221 = vmatmul.bf16.gmra.mxu0 %v639
  %v1222 = vpop.f32.mrf.mxu0
  %v1223 = vadd.f32 %v163, %v1222
  %v1224 = vpop.f32.mrf.mxu0
  %v1225 = vadd.f32 %v163, %v1224
  %1226 = vmatmul.bf16.gmra.mxu0 %v641
  %v1227 = vpop.f32.mrf.mxu0
  %v1228 = vadd.f32 %v163, %v1227
  %v1229 = vpop.f32.mrf.mxu0
  %v1230 = vadd.f32 %v163, %v1229
  %1231 = vmatmul.bf16.gmra.mxu0 %v643
  %v1232 = vpop.f32.mrf.mxu0
  %v1233 = vadd.f32 %v163, %v1232
  %v1234 = vpop.f32.mrf.mxu0
  %v1235 = vadd.f32 %v163, %v1234
  %1236 = vmatmul.bf16.gmra.mxu0 %v645
  %v1237 = vpop.f32.mrf.mxu0
  %v1238 = vadd.f32 %v163, %v1237
  %v1239 = vpop.f32.mrf.mxu0
  %v1240 = vadd.f32 %v163, %v1239
  %1241 = vmatmul.bf16.gmra.mxu0 %v647
  %v1242 = vpop.f32.mrf.mxu0
  %v1243 = vadd.f32 %v163, %v1242
  %v1244 = vpop.f32.mrf.mxu0
  %v1245 = vadd.f32 %v163, %v1244
  %1246 = vmatmul.bf16.gmra.mxu0 %v649
  %v1247 = vpop.f32.mrf.mxu0
  %v1248 = vadd.f32 %v163, %v1247
  %v1249 = vpop.f32.mrf.mxu0
  %v1250 = vadd.f32 %v163, %v1249
  %1251 = vmatmul.bf16.gmra.mxu0 %v651
  %v1252 = vpop.f32.mrf.mxu0
  %v1253 = vadd.f32 %v163, %v1252
  %v1254 = vpop.f32.mrf.mxu0
  %v1255 = vadd.f32 %v163, %v1254
  %1256 = vmatmul.bf16.gmra.mxu0 %v653
  %v1257 = vpop.f32.mrf.mxu0
  %v1258 = vadd.f32 %v163, %v1257
  %v1259 = vpop.f32.mrf.mxu0
  %v1260 = vadd.f32 %v163, %v1259
  %1261 = vmatmul.bf16.gmra.mxu0 %v655
  %v1262 = vpop.f32.mrf.mxu0
  %v1263 = vadd.f32 %v163, %v1262
  %v1264 = vpop.f32.mrf.mxu0
  %v1265 = vadd.f32 %v163, %v1264
  %1266 = vmatmul.bf16.gmra.mxu0 %v657
  %v1267 = vpop.f32.mrf.mxu0
  %v1268 = vadd.f32 %v163, %v1267
  %v1269 = vpop.f32.mrf.mxu0
  %v1270 = vadd.f32 %v163, %v1269
  %1271 = vmatmul.bf16.gmra.mxu0 %v659
  %v1272 = vpop.f32.mrf.mxu0
  %v1273 = vadd.f32 %v163, %v1272
  %v1274 = vpop.f32.mrf.mxu0
  %v1275 = vadd.f32 %v163, %v1274
  %1276 = vmatmul.bf16.gmra.mxu0 %v661
  %v1277 = vpop.f32.mrf.mxu0
  %v1278 = vadd.f32 %v163, %v1277
  %v1279 = vpop.f32.mrf.mxu0
  %v1280 = vadd.f32 %v163, %v1279
  %1281 = vmatmul.bf16.gmra.mxu0 %v663
  %v1282 = vpop.f32.mrf.mxu0
  %v1283 = vadd.f32 %v163, %v1282
  %v1284 = vpop.f32.mrf.mxu0
  %v1285 = vadd.f32 %v163, %v1284
  %1286 = vmatmul.bf16.gmra.mxu0 %v665
  %v1287 = vpop.f32.mrf.mxu0
  %v1288 = vadd.f32 %v163, %v1287
  %v1289 = vpop.f32.mrf.mxu0
  %v1290 = vadd.f32 %v163, %v1289
  %1291 = vmatmul.bf16.gmra.mxu0 %v667
  %v1292 = vpop.f32.mrf.mxu0
  %v1293 = vadd.f32 %v163, %v1292
  %v1294 = vpop.f32.mrf.mxu0
  %v1295 = vadd.f32 %v163, %v1294
  %1296 = vmatmul.bf16.gmra.mxu0 %v669
  %v1297 = vpop.f32.mrf.mxu0
  %v1298 = vadd.f32 %v163, %v1297
  %v1299 = vpop.f32.mrf.mxu0
  %v1300 = vadd.f32 %v163, %v1299
  %1301 = vmatmul.bf16.gmra.mxu0 %v671
  %v1302 = vpop.f32.mrf.mxu0
  %v1303 = vadd.f32 %v163, %v1302
  %v1304 = vpop.f32.mrf.mxu0
  %v1305 = vadd.f32 %v163, %v1304
  %1306 = vmatmul.bf16.gmra.mxu0 %v673
  %v1307 = vpop.f32.mrf.mxu0
  %v1308 = vadd.f32 %v163, %v1307
  %v1309 = vpop.f32.mrf.mxu0
  %v1310 = vadd.f32 %v163, %v1309
  %1311 = vmatmul.bf16.gmra.mxu0 %v675
  %v1312 = vpop.f32.mrf.mxu0
  %v1313 = vadd.f32 %v163, %v1312
  %v1314 = vpop.f32.mrf.mxu0
  %v1315 = vadd.f32 %v163, %v1314
  %1316 = vdwg.mxu0
  %1317 = vmatpush.bf16.msra.mxu0 0
  %1318 = vmatpush.bf16.msra.mxu0 0
  %1319 = vmatpush.bf16.msra.mxu0 0
  %1320 = vmatpush.bf16.msra.mxu0 0
  %1321 = vmatpush.bf16.msra.mxu0 0
  %1322 = vmatpush.bf16.msra.mxu0 0
  %1323 = vmatpush.bf16.msra.mxu0 0
  %1324 = vmatpush.bf16.msra.mxu0 %v785
  %1325 = vmatmul.bf16.gmra.mxu0 %v797
  %v1326 = vpop.f32.mrf.mxu0
  %v1327 = vadd.f32 %v998, %v1326
  %v1328 = vpop.f32.mrf.mxu0
  %v1329 = vadd.f32 %v1000, %v1328
  %1330 = vmatmul.bf16.gmra.mxu0 %v800
  %v1331 = vpop.f32.mrf.mxu0
  %v1332 = vadd.f32 %v1003, %v1331
  %v1333 = vpop.f32.mrf.mxu0
  %v1334 = vadd.f32 %v1005, %v1333
  %1335 = vmatmul.bf16.gmra.mxu0 %v803
  %v1336 = vpop.f32.mrf.mxu0
  %v1337 = vadd.f32 %v1008, %v1336
  %v1338 = vpop.f32.mrf.mxu0
  %v1339 = vadd.f32 %v1010, %v1338
  %1340 = vmatmul.bf16.gmra.mxu0 %v806
  %v1341 = vpop.f32.mrf.mxu0
  %v1342 = vadd.f32 %v1013, %v1341
  %v1343 = vpop.f32.mrf.mxu0
  %v1344 = vadd.f32 %v1015, %v1343
  %1345 = vmatmul.bf16.gmra.mxu0 %v809
  %v1346 = vpop.f32.mrf.mxu0
  %v1347 = vadd.f32 %v1018, %v1346
  %v1348 = vpop.f32.mrf.mxu0
  %v1349 = vadd.f32 %v1020, %v1348
  %1350 = vmatmul.bf16.gmra.mxu0 %v812
  %v1351 = vpop.f32.mrf.mxu0
  %v1352 = vadd.f32 %v1023, %v1351
  %v1353 = vpop.f32.mrf.mxu0
  %v1354 = vadd.f32 %v1025, %v1353
  %1355 = vmatmul.bf16.gmra.mxu0 %v815
  %v1356 = vpop.f32.mrf.mxu0
  %v1357 = vadd.f32 %v1028, %v1356
  %v1358 = vpop.f32.mrf.mxu0
  %v1359 = vadd.f32 %v1030, %v1358
  %1360 = vmatmul.bf16.gmra.mxu0 %v818
  %v1361 = vpop.f32.mrf.mxu0
  %v1362 = vadd.f32 %v1033, %v1361
  %v1363 = vpop.f32.mrf.mxu0
  %v1364 = vadd.f32 %v1035, %v1363
  %1365 = vmatmul.bf16.gmra.mxu0 %v821
  %v1366 = vpop.f32.mrf.mxu0
  %v1367 = vadd.f32 %v1038, %v1366
  %v1368 = vpop.f32.mrf.mxu0
  %v1369 = vadd.f32 %v1040, %v1368
  %1370 = vmatmul.bf16.gmra.mxu0 %v824
  %v1371 = vpop.f32.mrf.mxu0
  %v1372 = vadd.f32 %v1043, %v1371
  %v1373 = vpop.f32.mrf.mxu0
  %v1374 = vadd.f32 %v1045, %v1373
  %1375 = vmatmul.bf16.gmra.mxu0 %v827
  %v1376 = vpop.f32.mrf.mxu0
  %v1377 = vadd.f32 %v1048, %v1376
  %v1378 = vpop.f32.mrf.mxu0
  %v1379 = vadd.f32 %v1050, %v1378
  %1380 = vmatmul.bf16.gmra.mxu0 %v830
  %v1381 = vpop.f32.mrf.mxu0
  %v1382 = vadd.f32 %v1053, %v1381
  %v1383 = vpop.f32.mrf.mxu0
  %v1384 = vadd.f32 %v1055, %v1383
  %1385 = vmatmul.bf16.gmra.mxu0 %v833
  %v1386 = vpop.f32.mrf.mxu0
  %v1387 = vadd.f32 %v1058, %v1386
  %v1388 = vpop.f32.mrf.mxu0
  %v1389 = vadd.f32 %v1060, %v1388
  %1390 = vmatmul.bf16.gmra.mxu0 %v836
  %v1391 = vpop.f32.mrf.mxu0
  %v1392 = vadd.f32 %v1063, %v1391
  %v1393 = vpop.f32.mrf.mxu0
  %v1394 = vadd.f32 %v1065, %v1393
  %1395 = vmatmul.bf16.gmra.mxu0 %v839
  %v1396 = vpop.f32.mrf.mxu0
  %v1397 = vadd.f32 %v1068, %v1396
  %v1398 = vpop.f32.mrf.mxu0
  %v1399 = vadd.f32 %v1070, %v1398
  %1400 = vmatmul.bf16.gmra.mxu0 %v842
  %v1401 = vpop.f32.mrf.mxu0
  %v1402 = vadd.f32 %v1073, %v1401
  %v1403 = vpop.f32.mrf.mxu0
  %v1404 = vadd.f32 %v1075, %v1403
  %1405 = vmatmul.bf16.gmra.mxu0 %v845
  %v1406 = vpop.f32.mrf.mxu0
  %v1407 = vadd.f32 %v1078, %v1406
  %v1408 = vpop.f32.mrf.mxu0
  %v1409 = vadd.f32 %v1080, %v1408
  %1410 = vmatmul.bf16.gmra.mxu0 %v848
  %v1411 = vpop.f32.mrf.mxu0
  %v1412 = vadd.f32 %v1083, %v1411
  %v1413 = vpop.f32.mrf.mxu0
  %v1414 = vadd.f32 %v1085, %v1413
  %1415 = vmatmul.bf16.gmra.mxu0 %v851
  %v1416 = vpop.f32.mrf.mxu0
  %v1417 = vadd.f32 %v1088, %v1416
  %v1418 = vpop.f32.mrf.mxu0
  %v1419 = vadd.f32 %v1090, %v1418
  %1420 = vmatmul.bf16.gmra.mxu0 %v854
  %v1421 = vpop.f32.mrf.mxu0
  %v1422 = vadd.f32 %v1093, %v1421
  %v1423 = vpop.f32.mrf.mxu0
  %v1424 = vadd.f32 %v1095, %v1423
  %1425 = vmatmul.bf16.gmra.mxu0 %v857
  %v1426 = vpop.f32.mrf.mxu0
  %v1427 = vadd.f32 %v1098, %v1426
  %v1428 = vpop.f32.mrf.mxu0
  %v1429 = vadd.f32 %v1100, %v1428
  %1430 = vmatmul.bf16.gmra.mxu0 %v860
  %v1431 = vpop.f32.mrf.mxu0
  %v1432 = vadd.f32 %v1103, %v1431
  %v1433 = vpop.f32.mrf.mxu0
  %v1434 = vadd.f32 %v1105, %v1433
  %1435 = vmatmul.bf16.gmra.mxu0 %v863
  %v1436 = vpop.f32.mrf.mxu0
  %v1437 = vadd.f32 %v1108, %v1436
  %v1438 = vpop.f32.mrf.mxu0
  %v1439 = vadd.f32 %v1110, %v1438
  %1440 = vmatmul.bf16.gmra.mxu0 %v866
  %v1441 = vpop.f32.mrf.mxu0
  %v1442 = vadd.f32 %v1113, %v1441
  %v1443 = vpop.f32.mrf.mxu0
  %v1444 = vadd.f32 %v1115, %v1443
  %1445 = vmatmul.bf16.gmra.mxu0 %v869
  %v1446 = vpop.f32.mrf.mxu0
  %v1447 = vadd.f32 %v1118, %v1446
  %v1448 = vpop.f32.mrf.mxu0
  %v1449 = vadd.f32 %v1120, %v1448
  %1450 = vmatmul.bf16.gmra.mxu0 %v872
  %v1451 = vpop.f32.mrf.mxu0
  %v1452 = vadd.f32 %v1123, %v1451
  %v1453 = vpop.f32.mrf.mxu0
  %v1454 = vadd.f32 %v1125, %v1453
  %1455 = vmatmul.bf16.gmra.mxu0 %v875
  %v1456 = vpop.f32.mrf.mxu0
  %v1457 = vadd.f32 %v1128, %v1456
  %v1458 = vpop.f32.mrf.mxu0
  %v1459 = vadd.f32 %v1130, %v1458
  %1460 = vmatmul.bf16.gmra.mxu0 %v878
  %v1461 = vpop.f32.mrf.mxu0
  %v1462 = vadd.f32 %v1133, %v1461
  %v1463 = vpop.f32.mrf.mxu0
  %v1464 = vadd.f32 %v1135, %v1463
  %1465 = vmatmul.bf16.gmra.mxu0 %v881
  %v1466 = vpop.f32.mrf.mxu0
  %v1467 = vadd.f32 %v1138, %v1466
  %v1468 = vpop.f32.mrf.mxu0
  %v1469 = vadd.f32 %v1140, %v1468
  %1470 = vmatmul.bf16.gmra.mxu0 %v884
  %v1471 = vpop.f32.mrf.mxu0
  %v1472 = vadd.f32 %v1143, %v1471
  %v1473 = vpop.f32.mrf.mxu0
  %v1474 = vadd.f32 %v1145, %v1473
  %1475 = vmatmul.bf16.gmra.mxu0 %v887
  %v1476 = vpop.f32.mrf.mxu0
  %v1477 = vadd.f32 %v1148, %v1476
  %v1478 = vpop.f32.mrf.mxu0
  %v1479 = vadd.f32 %v1150, %v1478
  %1480 = vmatmul.bf16.gmra.mxu0 %v890
  %v1481 = vpop.f32.mrf.mxu0
  %v1482 = vadd.f32 %v1153, %v1481
  %v1483 = vpop.f32.mrf.mxu0
  %v1484 = vadd.f32 %v1155, %v1483
  %1485 = vmatmul.bf16.gmra.mxu0 %v893
  %v1486 = vpop.f32.mrf.mxu0
  %v1487 = vadd.f32 %v1158, %v1486
  %v1488 = vpop.f32.mrf.mxu0
  %v1489 = vadd.f32 %v1160, %v1488
  %1490 = vmatmul.bf16.gmra.mxu0 %v896
  %v1491 = vpop.f32.mrf.mxu0
  %v1492 = vadd.f32 %v1163, %v1491
  %v1493 = vpop.f32.mrf.mxu0
  %v1494 = vadd.f32 %v1165, %v1493
  %1495 = vmatmul.bf16.gmra.mxu0 %v899
  %v1496 = vpop.f32.mrf.mxu0
  %v1497 = vadd.f32 %v1168, %v1496
  %v1498 = vpop.f32.mrf.mxu0
  %v1499 = vadd.f32 %v1170, %v1498
  %1500 = vmatmul.bf16.gmra.mxu0 %v902
  %v1501 = vpop.f32.mrf.mxu0
  %v1502 = vadd.f32 %v1173, %v1501
  %v1503 = vpop.f32.mrf.mxu0
  %v1504 = vadd.f32 %v1175, %v1503
  %1505 = vmatmul.bf16.gmra.mxu0 %v905
  %v1506 = vpop.f32.mrf.mxu0
  %v1507 = vadd.f32 %v1178, %v1506
  %v1508 = vpop.f32.mrf.mxu0
  %v1509 = vadd.f32 %v1180, %v1508
  %1510 = vmatmul.bf16.gmra.mxu0 %v908
  %v1511 = vpop.f32.mrf.mxu0
  %v1512 = vadd.f32 %v1183, %v1511
  %v1513 = vpop.f32.mrf.mxu0
  %v1514 = vadd.f32 %v1185, %v1513
  %1515 = vmatmul.bf16.gmra.mxu0 %v911
  %v1516 = vpop.f32.mrf.mxu0
  %v1517 = vadd.f32 %v1188, %v1516
  %v1518 = vpop.f32.mrf.mxu0
  %v1519 = vadd.f32 %v1190, %v1518
  %1520 = vmatmul.bf16.gmra.mxu0 %v914
  %v1521 = vpop.f32.mrf.mxu0
  %v1522 = vadd.f32 %v1193, %v1521
  %v1523 = vpop.f32.mrf.mxu0
  %v1524 = vadd.f32 %v1195, %v1523
  %1525 = vmatmul.bf16.gmra.mxu0 %v917
  %v1526 = vpop.f32.mrf.mxu0
  %v1527 = vadd.f32 %v1198, %v1526
  %v1528 = vpop.f32.mrf.mxu0
  %v1529 = vadd.f32 %v1200, %v1528
  %1530 = vmatmul.bf16.gmra.mxu0 %v920
  %v1531 = vpop.f32.mrf.mxu0
  %v1532 = vadd.f32 %v1203, %v1531
  %v1533 = vpop.f32.mrf.mxu0
  %v1534 = vadd.f32 %v1205, %v1533
  %1535 = vmatmul.bf16.gmra.mxu0 %v923
  %v1536 = vpop.f32.mrf.mxu0
  %v1537 = vadd.f32 %v1208, %v1536
  %v1538 = vpop.f32.mrf.mxu0
  %v1539 = vadd.f32 %v1210, %v1538
  %1540 = vmatmul.bf16.gmra.mxu0 %v926
  %v1541 = vpop.f32.mrf.mxu0
  %v1542 = vadd.f32 %v1213, %v1541
  %v1543 = vpop.f32.mrf.mxu0
  %v1544 = vadd.f32 %v1215, %v1543
  %1545 = vmatmul.bf16.gmra.mxu0 %v929
  %v1546 = vpop.f32.mrf.mxu0
  %v1547 = vadd.f32 %v1218, %v1546
  %v1548 = vpop.f32.mrf.mxu0
  %v1549 = vadd.f32 %v1220, %v1548
  %1550 = vmatmul.bf16.gmra.mxu0 %v932
  %v1551 = vpop.f32.mrf.mxu0
  %v1552 = vadd.f32 %v1223, %v1551
  %v1553 = vpop.f32.mrf.mxu0
  %v1554 = vadd.f32 %v1225, %v1553
  %1555 = vmatmul.bf16.gmra.mxu0 %v935
  %v1556 = vpop.f32.mrf.mxu0
  %v1557 = vadd.f32 %v1228, %v1556
  %v1558 = vpop.f32.mrf.mxu0
  %v1559 = vadd.f32 %v1230, %v1558
  %1560 = vmatmul.bf16.gmra.mxu0 %v938
  %v1561 = vpop.f32.mrf.mxu0
  %v1562 = vadd.f32 %v1233, %v1561
  %v1563 = vpop.f32.mrf.mxu0
  %v1564 = vadd.f32 %v1235, %v1563
  %1565 = vmatmul.bf16.gmra.mxu0 %v941
  %v1566 = vpop.f32.mrf.mxu0
  %v1567 = vadd.f32 %v1238, %v1566
  %v1568 = vpop.f32.mrf.mxu0
  %v1569 = vadd.f32 %v1240, %v1568
  %1570 = vmatmul.bf16.gmra.mxu0 %v944
  %v1571 = vpop.f32.mrf.mxu0
  %v1572 = vadd.f32 %v1243, %v1571
  %v1573 = vpop.f32.mrf.mxu0
  %v1574 = vadd.f32 %v1245, %v1573
  %1575 = vmatmul.bf16.gmra.mxu0 %v947
  %v1576 = vpop.f32.mrf.mxu0
  %v1577 = vadd.f32 %v1248, %v1576
  %v1578 = vpop.f32.mrf.mxu0
  %v1579 = vadd.f32 %v1250, %v1578
  %1580 = vmatmul.bf16.gmra.mxu0 %v950
  %v1581 = vpop.f32.mrf.mxu0
  %v1582 = vadd.f32 %v1253, %v1581
  %v1583 = vpop.f32.mrf.mxu0
  %v1584 = vadd.f32 %v1255, %v1583
  %1585 = vmatmul.bf16.gmra.mxu0 %v953
  %v1586 = vpop.f32.mrf.mxu0
  %v1587 = vadd.f32 %v1258, %v1586
  %v1588 = vpop.f32.mrf.mxu0
  %v1589 = vadd.f32 %v1260, %v1588
  %1590 = vmatmul.bf16.gmra.mxu0 %v956
  %v1591 = vpop.f32.mrf.mxu0
  %v1592 = vadd.f32 %v1263, %v1591
  %v1593 = vpop.f32.mrf.mxu0
  %v1594 = vadd.f32 %v1265, %v1593
  %1595 = vmatmul.bf16.gmra.mxu0 %v959
  %v1596 = vpop.f32.mrf.mxu0
  %v1597 = vadd.f32 %v1268, %v1596
  %v1598 = vpop.f32.mrf.mxu0
  %v1599 = vadd.f32 %v1270, %v1598
  %1600 = vmatmul.bf16.gmra.mxu0 %v962
  %v1601 = vpop.f32.mrf.mxu0
  %v1602 = vadd.f32 %v1273, %v1601
  %v1603 = vpop.f32.mrf.mxu0
  %v1604 = vadd.f32 %v1275, %v1603
  %1605 = vmatmul.bf16.gmra.mxu0 %v965
  %v1606 = vpop.f32.mrf.mxu0
  %v1607 = vadd.f32 %v1278, %v1606
  %v1608 = vpop.f32.mrf.mxu0
  %v1609 = vadd.f32 %v1280, %v1608
  %1610 = vmatmul.bf16.gmra.mxu0 %v968
  %v1611 = vpop.f32.mrf.mxu0
  %v1612 = vadd.f32 %v1283, %v1611
  %v1613 = vpop.f32.mrf.mxu0
  %v1614 = vadd.f32 %v1285, %v1613
  %1615 = vmatmul.bf16.gmra.mxu0 %v971
  %v1616 = vpop.f32.mrf.mxu0
  %v1617 = vadd.f32 %v1288, %v1616
  %v1618 = vpop.f32.mrf.mxu0
  %v1619 = vadd.f32 %v1290, %v1618
  %1620 = vmatmul.bf16.gmra.mxu0 %v974
  %v1621 = vpop.f32.mrf.mxu0
  %v1622 = vadd.f32 %v1293, %v1621
  %v1623 = vpop.f32.mrf.mxu0
  %v1624 = vadd.f32 %v1295, %v1623
  %1625 = vmatmul.bf16.gmra.mxu0 %v977
  %v1626 = vpop.f32.mrf.mxu0
  %v1627 = vadd.f32 %v1298, %v1626
  %v1628 = vpop.f32.mrf.mxu0
  %v1629 = vadd.f32 %v1300, %v1628
  %1630 = vmatmul.bf16.gmra.mxu0 %v980
  %v1631 = vpop.f32.mrf.mxu0
  %v1632 = vadd.f32 %v1303, %v1631
  %v1633 = vpop.f32.mrf.mxu0
  %v1634 = vadd.f32 %v1305, %v1633
  %1635 = vmatmul.bf16.gmra.mxu0 %v983
  %v1636 = vpop.f32.mrf.mxu0
  %v1637 = vadd.f32 %v1308, %v1636
  %v1638 = vpop.f32.mrf.mxu0
  %v1639 = vadd.f32 %v1310, %v1638
  %1640 = vmatmul.bf16.gmra.mxu0 %v986
  %v1641 = vpop.f32.mrf.mxu0
  %v1642 = vadd.f32 %v1313, %v1641
  %v1643 = vpop.f32.mrf.mxu0
  %v1644 = vadd.f32 %v1315, %v1643
  %1645 = vdwg.mxu0
  %v1646 = vmax.f32 %v1327, 0.0
  %v1647 = vmax.f32 %v1329, 0.0
  %v1648 = vmax.f32 %v1332, 0.0
  %v1649 = vmax.f32 %v1334, 0.0
  %v1650 = vmax.f32 %v1337, 0.0
  %v1651 = vmax.f32 %v1339, 0.0
  %v1652 = vmax.f32 %v1342, 0.0
  %v1653 = vmax.f32 %v1344, 0.0
  %v1654 = vmax.f32 %v1347, 0.0
  %v1655 = vmax.f32 %v1349, 0.0
  %v1656 = vmax.f32 %v1352, 0.0
  %v1657 = vmax.f32 %v1354, 0.0
  %v1658 = vmax.f32 %v1357, 0.0
  %v1659 = vmax.f32 %v1359, 0.0
  %v1660 = vmax.f32 %v1362, 0.0
  %v1661 = vmax.f32 %v1364, 0.0
  %v1662 = vmax.f32 %v1367, 0.0
  %v1663 = vmax.f32 %v1369, 0.0
  %v1664 = vmax.f32 %v1372, 0.0
  %v1665 = vmax.f32 %v1374, 0.0
  %v1666 = vmax.f32 %v1377, 0.0
  %v1667 = vmax.f32 %v1379, 0.0
  %v1668 = vmax.f32 %v1382, 0.0
  %v1669 = vmax.f32 %v1384, 0.0
  %v1670 = vmax.f32 %v1387, 0.0
  %v1671 = vmax.f32 %v1389, 0.0
  %v1672 = vmax.f32 %v1392, 0.0
  %v1673 = vmax.f32 %v1394, 0.0
  %v1674 = vmax.f32 %v1397, 0.0
  %v1675 = vmax.f32 %v1399, 0.0
  %v1676 = vmax.f32 %v1402, 0.0
  %v1677 = vmax.f32 %v1404, 0.0
  %v1678 = vmax.f32 %v1407, 0.0
  %v1679 = vmax.f32 %v1409, 0.0
  %v1680 = vmax.f32 %v1412, 0.0
  %v1681 = vmax.f32 %v1414, 0.0
  %v1682 = vmax.f32 %v1417, 0.0
  %v1683 = vmax.f32 %v1419, 0.0
  %v1684 = vmax.f32 %v1422, 0.0
  %v1685 = vmax.f32 %v1424, 0.0
  %v1686 = vmax.f32 %v1427, 0.0
  %v1687 = vmax.f32 %v1429, 0.0
  %v1688 = vmax.f32 %v1432, 0.0
  %v1689 = vmax.f32 %v1434, 0.0
  %v1690 = vmax.f32 %v1437, 0.0
  %v1691 = vmax.f32 %v1439, 0.0
  %v1692 = vmax.f32 %v1442, 0.0
  %v1693 = vmax.f32 %v1444, 0.0
  %v1694 = vmax.f32 %v1447, 0.0
  %v1695 = vmax.f32 %v1449, 0.0
  %v1696 = vmax.f32 %v1452, 0.0
  %v1697 = vmax.f32 %v1454, 0.0
  %v1698 = vmax.f32 %v1457, 0.0
  %v1699 = vmax.f32 %v1459, 0.0
  %v1700 = vmax.f32 %v1462, 0.0
  %v1701 = vmax.f32 %v1464, 0.0
  %v1702 = vmax.f32 %v1467, 0.0
  %v1703 = vmax.f32 %v1469, 0.0
  %v1704 = vmax.f32 %v1472, 0.0
  %v1705 = vmax.f32 %v1474, 0.0
  %v1706 = vmax.f32 %v1477, 0.0
  %v1707 = vmax.f32 %v1479, 0.0
  %v1708 = vmax.f32 %v1482, 0.0
  %v1709 = vmax.f32 %v1484, 0.0
  %v1710 = vmax.f32 %v1487, 0.0
  %v1711 = vmax.f32 %v1489, 0.0
  %v1712 = vmax.f32 %v1492, 0.0
  %v1713 = vmax.f32 %v1494, 0.0
  %v1714 = vmax.f32 %v1497, 0.0
  %v1715 = vmax.f32 %v1499, 0.0
  %v1716 = vmax.f32 %v1502, 0.0
  %v1717 = vmax.f32 %v1504, 0.0
  %v1718 = vmax.f32 %v1507, 0.0
  %v1719 = vmax.f32 %v1509, 0.0
  %v1720 = vmax.f32 %v1512, 0.0
  %v1721 = vmax.f32 %v1514, 0.0
  %v1722 = vmax.f32 %v1517, 0.0
  %v1723 = vmax.f32 %v1519, 0.0
  %v1724 = vmax.f32 %v1522, 0.0
  %v1725 = vmax.f32 %v1524, 0.0
  %v1726 = vmax.f32 %v1527, 0.0
  %v1727 = vmax.f32 %v1529, 0.0
  %v1728 = vmax.f32 %v1532, 0.0
  %v1729 = vmax.f32 %v1534, 0.0
  %v1730 = vmax.f32 %v1537, 0.0
  %v1731 = vmax.f32 %v1539, 0.0
  %v1732 = vmax.f32 %v1542, 0.0
  %v1733 = vmax.f32 %v1544, 0.0
  %v1734 = vmax.f32 %v1547, 0.0
  %v1735 = vmax.f32 %v1549, 0.0
  %v1736 = vmax.f32 %v1552, 0.0
  %v1737 = vmax.f32 %v1554, 0.0
  %v1738 = vmax.f32 %v1557, 0.0
  %v1739 = vmax.f32 %v1559, 0.0
  %v1740 = vmax.f32 %v1562, 0.0
  %v1741 = vmax.f32 %v1564, 0.0
  %v1742 = vmax.f32 %v1567, 0.0
  %v1743 = vmax.f32 %v1569, 0.0
  %v1744 = vmax.f32 %v1572, 0.0
  %v1745 = vmax.f32 %v1574, 0.0
  %v1746 = vmax.f32 %v1577, 0.0
  %v1747 = vmax.f32 %v1579, 0.0
  %v1748 = vmax.f32 %v1582, 0.0
  %v1749 = vmax.f32 %v1584, 0.0
  %v1750 = vmax.f32 %v1587, 0.0
  %v1751 = vmax.f32 %v1589, 0.0
  %v1752 = vmax.f32 %v1592, 0.0
  %v1753 = vmax.f32 %v1594, 0.0
  %v1754 = vmax.f32 %v1597, 0.0
  %v1755 = vmax.f32 %v1599, 0.0
  %v1756 = vmax.f32 %v1602, 0.0
  %v1757 = vmax.f32 %v1604, 0.0
  %v1758 = vmax.f32 %v1607, 0.0
  %v1759 = vmax.f32 %v1609, 0.0
  %v1760 = vmax.f32 %v1612, 0.0
  %v1761 = vmax.f32 %v1614, 0.0
  %v1762 = vmax.f32 %v1617, 0.0
  %v1763 = vmax.f32 %v1619, 0.0
  %v1764 = vmax.f32 %v1622, 0.0
  %v1765 = vmax.f32 %v1624, 0.0
  %v1766 = vmax.f32 %v1627, 0.0
  %v1767 = vmax.f32 %v1629, 0.0
  %v1768 = vmax.f32 %v1632, 0.0
  %v1769 = vmax.f32 %v1634, 0.0
  %v1770 = vmax.f32 %v1637, 0.0
  %v1771 = vmax.f32 %v1639, 0.0
  %v1772 = vmax.f32 %v1642, 0.0
  %v1773 = vmax.f32 %v1644, 0.0
  %1774 = vst [vmem:[%s3] sm:$0xff] %v1646
  %1775 = vst [vmem:[%s3 + $0x8] sm:$0xff] %v1647
  %1776 = vst [vmem:[%s3 + $0x10] sm:$0xff] %v1648
  %1777 = vst [vmem:[%s3 + $0x18] sm:$0xff] %v1649
  %1778 = vst [vmem:[%s3 + $0x20] sm:$0xff] %v1650
  %1779 = vst [vmem:[%s3 + $0x28] sm:$0xff] %v1651
  %1780 = vst [vmem:[%s3 + $0x30] sm:$0xff] %v1652
  %1781 = vst [vmem:[%s3 + $0x38] sm:$0xff] %v1653
  %1782 = vst [vmem:[%s3 + $0x40] sm:$0xff] %v1654
  %1783 = vst [vmem:[%s3 + $0x48] sm:$0xff] %v1655
  %1784 = vst [vmem:[%s3 + $0x50] sm:$0xff] %v1656
  %1785 = vst [vmem:[%s3 + $0x58] sm:$0xff] %v1657
  %1786 = vst [vmem:[%s3 + $0x60] sm:$0xff] %v1658
  %1787 = vst [vmem:[%s3 + $0x68] sm:$0xff] %v1659
  %1788 = vst [vmem:[%s3 + $0x70] sm:$0xff] %v1660
  %1789 = vst [vmem:[%s3 + $0x78] sm:$0xff] %v1661
  %1790 = vst [vmem:[%s3 + $0x80] sm:$0xff] %v1662
  %1791 = vst [vmem:[%s3 + $0x88] sm:$0xff] %v1663
  %1792 = vst [vmem:[%s3 + $0x90] sm:$0xff] %v1664
  %1793 = vst [vmem:[%s3 + $0x98] sm:$0xff] %v1665
  %1794 = vst [vmem:[%s3 + $0xa0] sm:$0xff] %v1666
  %1795 = vst [vmem:[%s3 + $0xa8] sm:$0xff] %v1667
  %1796 = vst [vmem:[%s3 + $0xb0] sm:$0xff] %v1668
  %1797 = vst [vmem:[%s3 + $0xb8] sm:$0xff] %v1669
  %1798 = vst [vmem:[%s3 + $0xc0] sm:$0xff] %v1670
  %1799 = vst [vmem:[%s3 + $0xc8] sm:$0xff] %v1671
  %1800 = vst [vmem:[%s3 + $0xd0] sm:$0xff] %v1672
  %1801 = vst [vmem:[%s3 + $0xd8] sm:$0xff] %v1673
  %1802 = vst [vmem:[%s3 + $0xe0] sm:$0xff] %v1674
  %1803 = vst [vmem:[%s3 + $0xe8] sm:$0xff] %v1675
  %1804 = vst [vmem:[%s3 + $0xf0] sm:$0xff] %v1676
  %1805 = vst [vmem:[%s3 + $0xf8] sm:$0xff] %v1677
  %1806 = vst [vmem:[%s3 + $0x100] sm:$0xff] %v1678
  %1807 = vst [vmem:[%s3 + $0x108] sm:$0xff] %v1679
  %1808 = vst [vmem:[%s3 + $0x110] sm:$0xff] %v1680
  %1809 = vst [vmem:[%s3 + $0x118] sm:$0xff] %v1681
  %1810 = vst [vmem:[%s3 + $0x120] sm:$0xff] %v1682
  %1811 = vst [vmem:[%s3 + $0x128] sm:$0xff] %v1683
  %1812 = vst [vmem:[%s3 + $0x130] sm:$0xff] %v1684
  %1813 = vst [vmem:[%s3 + $0x138] sm:$0xff] %v1685
  %1814 = vst [vmem:[%s3 + $0x140] sm:$0xff] %v1686
  %1815 = vst [vmem:[%s3 + $0x148] sm:$0xff] %v1687
  %1816 = vst [vmem:[%s3 + $0x150] sm:$0xff] %v1688
  %1817 = vst [vmem:[%s3 + $0x158] sm:$0xff] %v1689
  %1818 = vst [vmem:[%s3 + $0x160] sm:$0xff] %v1690
  %1819 = vst [vmem:[%s3 + $0x168] sm:$0xff] %v1691
  %1820 = vst [vmem:[%s3 + $0x170] sm:$0xff] %v1692
  %1821 = vst [vmem:[%s3 + $0x178] sm:$0xff] %v1693
  %1822 = vst [vmem:[%s3 + $0x180] sm:$0xff] %v1694
  %1823 = vst [vmem:[%s3 + $0x188] sm:$0xff] %v1695
  %1824 = vst [vmem:[%s3 + $0x190] sm:$0xff] %v1696
  %1825 = vst [vmem:[%s3 + $0x198] sm:$0xff] %v1697
  %1826 = vst [vmem:[%s3 + $0x1a0] sm:$0xff] %v1698
  %1827 = vst [vmem:[%s3 + $0x1a8] sm:$0xff] %v1699
  %1828 = vst [vmem:[%s3 + $0x1b0] sm:$0xff] %v1700
  %1829 = vst [vmem:[%s3 + $0x1b8] sm:$0xff] %v1701
  %1830 = vst [vmem:[%s3 + $0x1c0] sm:$0xff] %v1702
  %1831 = vst [vmem:[%s3 + $0x1c8] sm:$0xff] %v1703
  %1832 = vst [vmem:[%s3 + $0x1d0] sm:$0xff] %v1704
  %1833 = vst [vmem:[%s3 + $0x1d8] sm:$0xff] %v1705
  %1834 = vst [vmem:[%s3 + $0x1e0] sm:$0xff] %v1706
  %1835 = vst [vmem:[%s3 + $0x1e8] sm:$0xff] %v1707
  %1836 = vst [vmem:[%s3 + $0x1f0] sm:$0xff] %v1708
  %1837 = vst [vmem:[%s3 + $0x1f8] sm:$0xff] %v1709
  %1838 = vst [vmem:[%s3 + $0x200] sm:$0xff] %v1710
  %1839 = vst [vmem:[%s3 + $0x208] sm:$0xff] %v1711
  %1840 = vst [vmem:[%s3 + $0x210] sm:$0xff] %v1712
  %1841 = vst [vmem:[%s3 + $0x218] sm:$0xff] %v1713
  %1842 = vst [vmem:[%s3 + $0x220] sm:$0xff] %v1714
  %1843 = vst [vmem:[%s3 + $0x228] sm:$0xff] %v1715
  %1844 = vst [vmem:[%s3 + $0x230] sm:$0xff] %v1716
  %1845 = vst [vmem:[%s3 + $0x238] sm:$0xff] %v1717
  %1846 = vst [vmem:[%s3 + $0x240] sm:$0xff] %v1718
  %1847 = vst [vmem:[%s3 + $0x248] sm:$0xff] %v1719
  %1848 = vst [vmem:[%s3 + $0x250] sm:$0xff] %v1720
  %1849 = vst [vmem:[%s3 + $0x258] sm:$0xff] %v1721
  %1850 = vst [vmem:[%s3 + $0x260] sm:$0xff] %v1722
  %1851 = vst [vmem:[%s3 + $0x268] sm:$0xff] %v1723
  %1852 = vst [vmem:[%s3 + $0x270] sm:$0xff] %v1724
  %1853 = vst [vmem:[%s3 + $0x278] sm:$0xff] %v1725
  %1854 = vst [vmem:[%s3 + $0x280] sm:$0xff] %v1726
  %1855 = vst [vmem:[%s3 + $0x288] sm:$0xff] %v1727
  %1856 = vst [vmem:[%s3 + $0x290] sm:$0xff] %v1728
  %1857 = vst [vmem:[%s3 + $0x298] sm:$0xff] %v1729
  %1858 = vst [vmem:[%s3 + $0x2a0] sm:$0xff] %v1730
  %1859 = vst [vmem:[%s3 + $0x2a8] sm:$0xff] %v1731
  %1860 = vst [vmem:[%s3 + $0x2b0] sm:$0xff] %v1732
  %1861 = vst [vmem:[%s3 + $0x2b8] sm:$0xff] %v1733
  %1862 = vst [vmem:[%s3 + $0x2c0] sm:$0xff] %v1734
  %1863 = vst [vmem:[%s3 + $0x2c8] sm:$0xff] %v1735
  %1864 = vst [vmem:[%s3 + $0x2d0] sm:$0xff] %v1736
  %1865 = vst [vmem:[%s3 + $0x2d8] sm:$0xff] %v1737
  %1866 = vst [vmem:[%s3 + $0x2e0] sm:$0xff] %v1738
  %1867 = vst [vmem:[%s3 + $0x2e8] sm:$0xff] %v1739
  %1868 = vst [vmem:[%s3 + $0x2f0] sm:$0xff] %v1740
  %1869 = vst [vmem:[%s3 + $0x2f8] sm:$0xff] %v1741
  %1870 = vst [vmem:[%s3 + $0x300] sm:$0xff] %v1742
  %1871 = vst [vmem:[%s3 + $0x308] sm:$0xff] %v1743
  %1872 = vst [vmem:[%s3 + $0x310] sm:$0xff] %v1744
  %1873 = vst [vmem:[%s3 + $0x318] sm:$0xff] %v1745
  %1874 = vst [vmem:[%s3 + $0x320] sm:$0xff] %v1746
  %1875 = vst [vmem:[%s3 + $0x328] sm:$0xff] %v1747
  %1876 = vst [vmem:[%s3 + $0x330] sm:$0xff] %v1748
  %1877 = vst [vmem:[%s3 + $0x338] sm:$0xff] %v1749
  %1878 = vst [vmem:[%s3 + $0x340] sm:$0xff] %v1750
  %1879 = vst [vmem:[%s3 + $0x348] sm:$0xff] %v1751
  %1880 = vst [vmem:[%s3 + $0x350] sm:$0xff] %v1752
  %1881 = vst [vmem:[%s3 + $0x358] sm:$0xff] %v1753
  %1882 = vst [vmem:[%s3 + $0x360] sm:$0xff] %v1754
  %1883 = vst [vmem:[%s3 + $0x368] sm:$0xff] %v1755
  %1884 = vst [vmem:[%s3 + $0x370] sm:$0xff] %v1756
  %1885 = vst [vmem:[%s3 + $0x378] sm:$0xff] %v1757
  %1886 = vst [vmem:[%s3 + $0x380] sm:$0xff] %v1758
  %1887 = vst [vmem:[%s3 + $0x388] sm:$0xff] %v1759
  %1888 = vst [vmem:[%s3 + $0x390] sm:$0xff] %v1760
  %1889 = vst [vmem:[%s3 + $0x398] sm:$0xff] %v1761
  %1890 = vst [vmem:[%s3 + $0x3a0] sm:$0xff] %v1762
  %1891 = vst [vmem:[%s3 + $0x3a8] sm:$0xff] %v1763
  %1892 = vst [vmem:[%s3 + $0x3b0] sm:$0xff] %v1764
  %1893 = vst [vmem:[%s3 + $0x3b8] sm:$0xff] %v1765
  %1894 = vst [vmem:[%s3 + $0x3c0] sm:$0xff] %v1766
  %1895 = vst [vmem:[%s3 + $0x3c8] sm:$0xff] %v1767
  %1896 = vst [vmem:[%s3 + $0x3d0] sm:$0xff] %v1768
  %1897 = vst [vmem:[%s3 + $0x3d8] sm:$0xff] %v1769
  %1898 = vst [vmem:[%s3 + $0x3e0] sm:$0xff] %v1770
  %1899 = vst [vmem:[%s3 + $0x3e8] sm:$0xff] %v1771
  %1900 = vst [vmem:[%s3 + $0x3f0] sm:$0xff] %v1772
  %1901 = vst [vmem:[%s3 + $0x3f8] sm:$0xff] %v1773
  // Predicated region
  $region14: #{deep_sim_raw.5} parent=0 // pred_check
    _
  $region15: #{deep_sim_raw.5} parent=0 // pred_check_branch
    %1903 = sbr.rel (0) target = $region17
  $region16: #{deep_sim_raw.5} parent=0 // pred_region
    _
  $region17: #{deep_sim_raw.5} parent=0 // pred_fallthru
    _
  // Predicated region
  $region18: #{deep_sim_raw.5} parent=0 // pred_check
    _
  $region19: #{deep_sim_raw.5} parent=0 // pred_check_branch
    %1905 = sbr.rel (0) target = $region21
  $region20: #{deep_sim_raw.5} parent=0 // pred_region
    _
  $region21: #{deep_sim_raw.5} parent=0 // pred_fallthru
    _

</llo_original>
